<compile_context>
chip_gen: v5e
topology: v5e:2x2
jax: 0.10.0
libtpu: 0.0.40
codegen_flags: <defaults>
</compile_context>

<pallas_src>
import functools

import jax
import jax.numpy as jnp
from jax import lax
from jax.experimental import pallas as pl
from jax.experimental.pallas import tpu as pltpu


def _round_up(v, m):
    return ((v + m - 1) // m) * m


def _bf(x):
    return x.astype(jnp.bfloat16)


def _dot(a, b):
    return jnp.dot(a, b, preferred_element_type=jnp.float32)


def _dot_tn(a, b):  # a.T @ b without materializing the transpose
    return lax.dot_general(a, b, (((0,), (0,)), ((), ())),
                           preferred_element_type=jnp.float32)


def _pad2(w, rows, cols, dtype):
    w = w.astype(dtype)
    return jnp.pad(w, ((0, rows - w.shape[0]), (0, cols - w.shape[1])))


def _pad3(w, rows, cols, dtype):
    w = w.astype(dtype)
    return jnp.pad(w, ((0, 0), (0, rows - w.shape[1]), (0, cols - w.shape[2])))


def denoise_kernel(
        x_ref, eattr_ref, coord0_ref, srow_ref, scol_ref, bmat_ref,
        invdeg_ref, invg_ref, scales_ref, biases_ref,
        wne_ref, bne_ref, wee_ref, bee_ref,
        we1s_ref, we1t_ref, we1r_ref, we1e_ref, be1_ref, we2_ref, be2_ref,
        wc1_ref, bc1_ref, wc2r_ref,
        wn1x_ref, wn1a_ref, bn1_ref, wn2_ref, bn2_ref,
        wp1g_ref, wp1h_ref, bp1_ref, wp2_ref, bp2_ref, wp3_ref, bp3_ref,
        pred_ref, coordout_ref,
        st_ref, acc_ref):
    silu = jax.nn.silu
    Hp = scales_ref.shape[-1]
    l = pl.program_id(0)
    e = pl.program_id(1)
    last_l = pl.num_programs(0) - 1
    last_e = pl.num_programs(1) - 1

    # ---- one-time init: node/coord state slab  [h | coord] ------------------
    @pl.when(jnp.logical_and(l == 0, e == 0))
    def _():
        st_ref[:, :Hp] = _dot(_bf(x_ref[...]), wne_ref[...]) + bne_ref[...]
        st_ref[:, Hp:] = coord0_ref[...]

    # ---- per-layer init: FiLM conditioning + zero the scatter accumulator ---
    @pl.when(e == 0)
    def _():
        st_ref[:, :Hp] = scales_ref[0] * st_ref[:, :Hp] + biases_ref[0]
        acc_ref[...] = jnp.zeros_like(acc_ref)

    # ---- per-edge-tile work (E_GCL edge + coord message) --------------------
    srow = srow_ref[...]                       # (TE, Np) bf16 one-hot
    scol = scol_ref[...]
    slab = _bf(st_ref[...])                    # (Np, 2*Hp) = [h | coord]
    g_src = _dot(srow, slab)                   # fused gather: h[row] | coord[row]
    g_tgt = _dot(scol, slab)                   # fused gather: h[col] | coord[col]
    h_src, c_src = g_src[:, :Hp], g_src[:, Hp:]
    h_tgt, c_tgt = g_tgt[:, :Hp], g_tgt[:, Hp:]

    # coord2radial (normalize=True); coord lanes >=3 are exactly zero
    cd = c_src - c_tgt
    radial = jnp.sum(cd * cd, axis=-1, keepdims=True)          # (TE, 1)
    inv_norm = pl.reciprocal(jnp.sqrt(radial) + 1e-8, approx=True)
    cd = cd * inv_norm

    # edge embedding (K=1 -> VPU broadcast, not MXU)
    h_e = eattr_ref[...] * wee_ref[...] + bee_ref[...]          # (TE, Hp)

    # edge model: MLP over cat([h[row], h[col], radial, h_e])
    m = silu(_dot(_bf(h_src), we1s_ref[0]) + _dot(_bf(h_tgt), we1t_ref[0])
             + radial * we1r_ref[0]                              # K=1 -> VPU
             + _dot(_bf(h_e), we1e_ref[0]) + be1_ref[0])
    m = silu(_dot(_bf(m), we2_ref[0]) + be2_ref[0])              # (TE, Hp)

    # coord model weight (final (H,1) projection as VPU mul + lane reduce)
    t = silu(_dot(_bf(m), wc1_ref[0]) + bc1_ref[0])
    cw = jnp.sum(t * wc2r_ref[0], axis=-1, keepdims=True)        # (TE, 1)

    # fused scatter: one pass over s_row for both message and coord updates
    msg = jnp.concatenate([m, cd * cw], axis=-1)                 # (TE, 2*Hp)
    acc_ref[...] += _dot_tn(srow, _bf(msg))                      # (Np, 2*Hp)

    # ---- per-layer finalize: node model (residual) + coord mean update ------
    @pl.when(e == last_e)
    def _():
        h = st_ref[:, :Hp]
        agg = acc_ref[:, :Hp]
        o = silu(_dot(_bf(h), wn1x_ref[0]) + _dot(_bf(agg), wn1a_ref[0])
                 + bn1_ref[0])
        st_ref[:, :Hp] = h + _dot(_bf(o), wn2_ref[0]) + bn2_ref[0]
        st_ref[:, Hp:] = st_ref[:, Hp:] + acc_ref[:, Hp:] * invdeg_ref[...]

    # ---- kernel finalize: global mean pool + node prediction head -----------
    @pl.when(jnp.logical_and(l == last_l, e == last_e))
    def _():
        h = st_ref[:, :Hp]
        hb = _bf(h)
        bm = bmat_ref[...]                                       # (Np, Gp) bf16
        gmean = _dot_tn(bm, hb) * invg_ref[...]                  # (Gp, Hp)
        gemb = _dot(bm, _bf(gmean))                              # (Np, Hp)
        p = jnp.maximum(_dot(_bf(gemb), wp1g_ref[...])
                        + _dot(hb, wp1h_ref[...]) + bp1_ref[...], 0.0)
        p = jnp.maximum(_dot(_bf(p), wp2_ref[...]) + bp2_ref[...], 0.0)
        p = _dot(_bf(p), wp3_ref[...]) + bp3_ref[...]
        pred_ref[...] = p
        coordout_ref[...] = st_ref[:, Hp:]


def conditional_arg_denoising(params, x, edge_index, edge_attr, x_coord,
                              film_cond, batch, *, num_layers, hidden_dim,
                              pred_horizon, node_feature_dim, num_graphs,
                              edge_tile=None):
    H = hidden_dim
    L = num_layers
    N = x.shape[0]
    E = edge_index.shape[1]
    din = node_feature_dim * pred_horizon

    # lane-dense padded sizes
    Hp = _round_up(max(H, 128), 128)
    Dp = _round_up(max(din, 128), 128)
    Np = _round_up(N, 8)
    Gp = _round_up(num_graphs, 8)
    if edge_tile is None:
        edge_tile = min(512, _round_up(E, 8))
    TE = _round_up(edge_tile, 8)
    Ep = _round_up(E, TE)
    n_et = Ep // TE

    f32, bf16 = jnp.float32, jnp.bfloat16

    # ---- plain-JAX glue: pad, bf16 one-hot incidence, FiLM split, 1/deg -----
    x_flat = jnp.zeros((Np, din), f32).at[:N].set(x.reshape(N, -1).astype(f32))
    e_attr = jnp.zeros((Ep, 1), f32).at[:E, 0].set(
        edge_attr.astype(f32).reshape(-1))
    coord0 = jnp.zeros((Np, Hp), f32).at[:N, :3].set(x_coord.astype(f32))

    row = edge_index[0].astype(jnp.int32)
    col = edge_index[1].astype(jnp.int32)
    row_p = jnp.full((Ep,), Np, jnp.int32).at[:E].set(row)   # pad -> zero rows
    col_p = jnp.full((Ep,), Np, jnp.int32).at[:E].set(col)
    s_row = jax.nn.one_hot(row_p, Np, dtype=bf16)            # (Ep, Np)
    s_col = jax.nn.one_hot(col_p, Np, dtype=bf16)
    batch_i = batch.astype(jnp.int32)
    batch_p = jnp.full((Np,), Gp, jnp.int32).at[:N].set(batch_i)
    b_mat = jax.nn.one_hot(batch_p, Gp, dtype=bf16)          # (Np, Gp)

    deg = jax.ops.segment_sum(jnp.ones((E,), f32), row, num_segments=N)
    inv_deg = jnp.zeros((Np, 1), f32).at[:N, 0].set(1.0 / jnp.maximum(deg, 1.0))
    gcnt = jax.ops.segment_sum(jnp.ones((N,), f32), batch_i,
                               num_segments=num_graphs)
    inv_g = jnp.zeros((Gp, 1), f32).at[:num_graphs, 0].set(
        1.0 / jnp.maximum(gcnt, 1.0))

    embed = film_cond.astype(f32).reshape(L, 2, H)
    scales = jnp.zeros((L, 1, Hp), f32).at[:, 0, :H].set(embed[:, 0, :])
    biases = jnp.zeros((L, 1, Hp), f32).at[:, 0, :H].set(embed[:, 1, :])

    # ---- pad / split weights (zero-padded lanes stay exactly zero) ----------
    we1, wn1, wp1 = params['we1'], params['wn1'], params['wp1']
    w = {
        'wne': _pad2(params['wne'], din, Hp, bf16),
        'bne': _pad2(params['bne'], 1, Hp, f32),
        'wee': _pad2(params['wee'], 1, Hp, f32),                 # K=1 -> VPU
        'bee': _pad2(params['bee'], 1, Hp, f32),
        'we1s': _pad3(we1[:, 0:H, :], Hp, Hp, bf16),
        'we1t': _pad3(we1[:, H:2 * H, :], Hp, Hp, bf16),
        'we1r': _pad3(we1[:, 2 * H:2 * H + 1, :], 1, Hp, f32),   # K=1 -> VPU
        'we1e': _pad3(we1[:, 2 * H + 1:, :], Hp, Hp, bf16),
        'be1': _pad3(params['be1'], 1, Hp, f32),
        'we2': _pad3(params['we2'], Hp, Hp, bf16),
        'be2': _pad3(params['be2'], 1, Hp, f32),
        'wc1': _pad3(params['wc1'], Hp, Hp, bf16),
        'bc1': _pad3(params['bc1'], 1, Hp, f32),
        'wc2r': _pad3(jnp.swapaxes(params['wc2'], 1, 2), 1, Hp, f32),
        'wn1x': _pad3(wn1[:, 0:H, :], Hp, Hp, bf16),
        'wn1a': _pad3(wn1[:, H:, :], Hp, Hp, bf16),
        'bn1': _pad3(params['bn1'], 1, Hp, f32),
        'wn2': _pad3(params['wn2'], Hp, Hp, bf16),
        'bn2': _pad3(params['bn2'], 1, Hp, f32),
        'wp1g': _pad2(wp1[0:H, :], Hp, Hp, bf16),
        'wp1h': _pad2(wp1[H:, :], Hp, Hp, bf16),
        'bp1': _pad2(params['bp1'], 1, Hp, f32),
        'wp2': _pad2(params['wp2'], Hp, Hp, bf16),
        'bp2': _pad2(params['bp2'], 1, Hp, f32),
        'wp3': _pad2(params['wp3'], Hp, Dp, bf16),
        'bp3': _pad2(params['bp3'], 1, Dp, f32),
    }

    const = lambda shape: pl.BlockSpec(shape, lambda l, e: (0, 0))
    per_l = lambda shape: pl.BlockSpec(shape, lambda l, e: (l, 0, 0))
    per_e = lambda shape: pl.BlockSpec(shape, lambda l, e: (e, 0))

    args_specs = [
        (x_flat, const((Np, din))),
        (e_attr, per_e((TE, 1))),
        (coord0, const((Np, Hp))),
        (s_row, per_e((TE, Np))),
        (s_col, per_e((TE, Np))),
        (b_mat, const((Np, Gp))),
        (inv_deg, const((Np, 1))),
        (inv_g, const((Gp, 1))),
        (scales, per_l((1, 1, Hp))),
        (biases, per_l((1, 1, Hp))),
        (w['wne'], const((din, Hp))),
        (w['bne'], const((1, Hp))),
        (w['wee'], const((1, Hp))),
        (w['bee'], const((1, Hp))),
        (w['we1s'], per_l((1, Hp, Hp))),
        (w['we1t'], per_l((1, Hp, Hp))),
        (w['we1r'], per_l((1, 1, Hp))),
        (w['we1e'], per_l((1, Hp, Hp))),
        (w['be1'], per_l((1, 1, Hp))),
        (w['we2'], per_l((1, Hp, Hp))),
        (w['be2'], per_l((1, 1, Hp))),
        (w['wc1'], per_l((1, Hp, Hp))),
        (w['bc1'], per_l((1, 1, Hp))),
        (w['wc2r'], per_l((1, 1, Hp))),
        (w['wn1x'], per_l((1, Hp, Hp))),
        (w['wn1a'], per_l((1, Hp, Hp))),
        (w['bn1'], per_l((1, 1, Hp))),
        (w['wn2'], per_l((1, Hp, Hp))),
        (w['bn2'], per_l((1, 1, Hp))),
        (w['wp1g'], const((Hp, Hp))),
        (w['wp1h'], const((Hp, Hp))),
        (w['bp1'], const((1, Hp))),
        (w['wp2'], const((Hp, Hp))),
        (w['bp2'], const((1, Hp))),
        (w['wp3'], const((Hp, Dp))),
        (w['bp3'], const((1, Dp))),
    ]
    ins = tuple(a for a, _ in args_specs)
    in_specs = [s for _, s in args_specs]

    # advisory cost estimate so XLA schedules around the long custom call
    flops = int(L * (3 * 2 * Ep * Np * 2 * Hp        # fused gathers + scatter
                     + 5 * 2 * Ep * Hp * Hp          # edge / coord MLPs
                     + 3 * 2 * Np * Hp * Hp)         # node MLP
                + 2 * Np * Hp * (3 * Hp + Dp)        # prediction head
                + 2 * 2 * Np * Gp * Hp)              # pool + broadcast
    transcendentals = int(L * Ep * Hp * 3 + L * Np * Hp)
    bytes_accessed = int(sum(int(a.size) * a.dtype.itemsize for a in ins)
                         + Np * (Dp + Hp) * 4)

    pred_p, coord_p = pl.pallas_call(
        denoise_kernel,
        out_shape=(jax.ShapeDtypeStruct((Np, Dp), f32),
                   jax.ShapeDtypeStruct((Np, Hp), f32)),
        grid_spec=pltpu.PrefetchScalarGridSpec(
            num_scalar_prefetch=0,
            grid=(L, n_et),
            in_specs=in_specs,
            out_specs=(pl.BlockSpec((Np, Dp), lambda l, e: (0, 0)),
                       pl.BlockSpec((Np, Hp), lambda l, e: (0, 0))),
            scratch_shapes=[pltpu.VMEM((Np, 2 * Hp), f32),   # [h | coord] state
                            pltpu.VMEM((Np, 2 * Hp), f32)],  # scatter accum
        ),
        compiler_params=pltpu.CompilerParams(
            dimension_semantics=("arbitrary", "arbitrary"),
            vmem_limit_bytes=32 * 1024 * 1024),
        cost_estimate=pl.CostEstimate(flops=flops,
                                      transcendentals=transcendentals,
                                      bytes_accessed=bytes_accessed),
    )(*ins)

    pred = pred_p[:N, :din].reshape(N, pred_horizon, node_feature_dim)
    return pred, coord_p[:N, :3]


def init_params(key, node_feature_dim, pred_horizon, hidden_dim, num_layers):
    din = node_feature_dim * pred_horizon
    H, L = hidden_dim, num_layers

    def w(k, shape, scale=0.1):
        return (scale * jax.random.normal(k, shape)).astype(jnp.float32)

    ks = jax.random.split(key, 20)
    p = {}
    p['wne'] = w(ks[0], (din, H));        p['bne'] = w(ks[1], (1, H), 0.01)
    p['wee'] = w(ks[2], (1, H));          p['bee'] = w(ks[3], (1, H), 0.01)
    p['we1'] = w(ks[4], (L, 3 * H + 1, H)); p['be1'] = w(ks[5], (L, 1, H), 0.01)
    p['we2'] = w(ks[6], (L, H, H));       p['be2'] = w(ks[7], (L, 1, H), 0.01)
    p['wn1'] = w(ks[8], (L, 2 * H, H));   p['bn1'] = w(ks[9], (L, 1, H), 0.01)
    p['wn2'] = w(ks[10], (L, H, H));      p['bn2'] = w(ks[11], (L, 1, H), 0.01)
    p['wc1'] = w(ks[12], (L, H, H));      p['bc1'] = w(ks[13], (L, 1, H), 0.01)
    p['wc2'] = w(ks[14], (L, H, 1), 0.001)
    p['wp1'] = w(ks[15], (2 * H, H));     p['bp1'] = w(ks[16], (1, H), 0.01)
    p['wp2'] = w(ks[17], (H, H));         p['bp2'] = w(ks[18], (1, H), 0.01)
    p['wp3'] = w(ks[19], (H, din));       p['bp3'] = jnp.zeros((1, din), jnp.float32)
    return p


def reference_forward(params, x, edge_index, edge_attr, x_coord, film_cond,
                      batch, *, num_layers, hidden_dim, pred_horizon,
                      node_feature_dim, num_graphs):
    # pure-JAX f32 mirror of the PyTorch forward (gather/segment ops)
    with jax.default_matmul_precision("highest"):
        H = hidden_dim
        N = x.shape[0]
        x_flat = x.reshape(N, -1).astype(jnp.float32)
        e_attr = edge_attr.astype(jnp.float32).reshape(-1, 1)
        row, col = edge_index[0], edge_index[1]
        E = row.shape[0]
        embed = film_cond.astype(jnp.float32).reshape(num_layers, 2, H)
        scales, biases = embed[:, 0, :], embed[:, 1, :]

        h = x_flat @ params['wne'] + params['bne']
        h_e = e_attr @ params['wee'] + params['bee']
        coord = x_coord.astype(jnp.float32)
        ones_e = jnp.ones((E, 1), jnp.float32)

        for l in range(num_layers):
            h = scales[l] * h + biases[l]
            cd = coord[row] - coord[col]
            radial = jnp.sum(cd * cd, axis=1, keepdims=True)
            cd = cd / (jnp.sqrt(radial) + 1e-8)
            e_in = jnp.concatenate([h[row], h[col], radial, h_e], axis=1)
            m = jax.nn.silu(e_in @ params['we1'][l] + params['be1'][l])
            m = jax.nn.silu(m @ params['we2'][l] + params['be2'][l])
            cw = (jax.nn.silu(m @ params['wc1'][l] + params['bc1'][l])
                  @ params['wc2'][l])
            agg_c = jax.ops.segment_sum(cd * cw, row, num_segments=N)
            cnt = jnp.maximum(jax.ops.segment_sum(ones_e, row, num_segments=N),
                              1.0)
            coord = coord + agg_c / cnt
            agg = jax.ops.segment_sum(m, row, num_segments=N)
            n_in = jnp.concatenate([h, agg], axis=1)
            h = h + (jax.nn.silu(n_in @ params['wn1'][l] + params['bn1'][l])
                     @ params['wn2'][l] + params['bn2'][l])

        gsum = jax.ops.segment_sum(h, batch, num_segments=num_graphs)
        gcnt = jnp.maximum(
            jax.ops.segment_sum(jnp.ones((N, 1), jnp.float32), batch,
                                num_segments=num_graphs), 1.0)
        gemb = (gsum / gcnt)[batch]
        p = jnp.concatenate([gemb, h], axis=1)
        p = jax.nn.relu(p @ params['wp1'] + params['bp1'])
        p = jax.nn.relu(p @ params['wp2'] + params['bp2'])
        p = p @ params['wp3'] + params['bp3']
        return p.reshape(N, pred_horizon, node_feature_dim), coord


if __name__ == "__main__":
    node_feature_dim = 4
    pred_horizon = 4
    hidden_dim = 32
    num_layers = 3
    N, E, G = 10, 24, 2

    key = jax.random.PRNGKey(0)
    k1, k2, k3, k4, k5, kp = jax.random.split(key, 6)
    x = jax.random.normal(k1, (N, pred_horizon, node_feature_dim), jnp.float32)
    edge_index = jax.random.randint(k2, (2, E), 0, N, dtype=jnp.int32)
    edge_attr = jax.random.normal(k3, (E,), jnp.float32)
    x_coord = jax.random.normal(k4, (N, 3), jnp.float32)
    film_cond = 0.5 * jax.random.normal(
        k5, (num_layers * 2 * hidden_dim,), jnp.float32)
    batch = jnp.array([0] * (N // 2) + [1] * (N - N // 2), dtype=jnp.int32)

    params = init_params(kp, node_feature_dim, pred_horizon, hidden_dim,
                         num_layers)

    run = functools.partial(conditional_arg_denoising, num_layers=num_layers,
                            hidden_dim=hidden_dim, pred_horizon=pred_horizon,
                            node_feature_dim=node_feature_dim, num_graphs=G,
                            edge_tile=16)
    node_pred, x_v = run(params, x, edge_index, edge_attr, x_coord, film_cond,
                         batch)
    jax.block_until_ready((node_pred, x_v))

    ref_pred, ref_xv = reference_forward(
        params, x, edge_index, edge_attr, x_coord, film_cond, batch,
        num_layers=num_layers, hidden_dim=hidden_dim,
        pred_horizon=pred_horizon, node_feature_dim=node_feature_dim,
        num_graphs=G)

    assert node_pred.shape == (N, pred_horizon, node_feature_dim)
    assert x_v.shape == (N, 3)
    # kernel runs bf16-with-f32-accumulate; reference is full f32
    assert jnp.allclose(node_pred, ref_pred, atol=2e-2, rtol=2e-2), (
        float(jnp.max(jnp.abs(node_pred - ref_pred))))
    assert jnp.allclose(x_v, ref_xv, atol=2e-2, rtol=2e-2), (
        float(jnp.max(jnp.abs(x_v - ref_xv))))
    print("KERNEL_OK")
</pallas_src>

<mosaic_0001>
module attributes {stable_mosaic.version = 11 : i64} {
  func.func @denoise_kernel(%arg0: i32, %arg1: i32, %arg2: memref<16x16xf32, #tpu.memory_space<vmem>>, %arg3: memref<16x1xf32, #tpu.memory_space<vmem>>, %arg4: memref<16x128xf32, #tpu.memory_space<vmem>>, %arg5: memref<16x16xbf16, #tpu.memory_space<vmem>>, %arg6: memref<16x16xbf16, #tpu.memory_space<vmem>>, %arg7: memref<16x8xbf16, #tpu.memory_space<vmem>>, %arg8: memref<16x1xf32, #tpu.memory_space<vmem>>, %arg9: memref<8x1xf32, #tpu.memory_space<vmem>>, %arg10: memref<1x1x128xf32, #tpu.memory_space<vmem>>, %arg11: memref<1x1x128xf32, #tpu.memory_space<vmem>>, %arg12: memref<16x128xbf16, #tpu.memory_space<vmem>>, %arg13: memref<1x128xf32, #tpu.memory_space<vmem>>, %arg14: memref<1x128xf32, #tpu.memory_space<vmem>>, %arg15: memref<1x128xf32, #tpu.memory_space<vmem>>, %arg16: memref<1x128x128xbf16, #tpu.memory_space<vmem>>, %arg17: memref<1x128x128xbf16, #tpu.memory_space<vmem>>, %arg18: memref<1x1x128xf32, #tpu.memory_space<vmem>>, %arg19: memref<1x128x128xbf16, #tpu.memory_space<vmem>>, %arg20: memref<1x1x128xf32, #tpu.memory_space<vmem>>, %arg21: memref<1x128x128xbf16, #tpu.memory_space<vmem>>, %arg22: memref<1x1x128xf32, #tpu.memory_space<vmem>>, %arg23: memref<1x128x128xbf16, #tpu.memory_space<vmem>>, %arg24: memref<1x1x128xf32, #tpu.memory_space<vmem>>, %arg25: memref<1x1x128xf32, #tpu.memory_space<vmem>>, %arg26: memref<1x128x128xbf16, #tpu.memory_space<vmem>>, %arg27: memref<1x128x128xbf16, #tpu.memory_space<vmem>>, %arg28: memref<1x1x128xf32, #tpu.memory_space<vmem>>, %arg29: memref<1x128x128xbf16, #tpu.memory_space<vmem>>, %arg30: memref<1x1x128xf32, #tpu.memory_space<vmem>>, %arg31: memref<128x128xbf16, #tpu.memory_space<vmem>>, %arg32: memref<128x128xbf16, #tpu.memory_space<vmem>>, %arg33: memref<1x128xf32, #tpu.memory_space<vmem>>, %arg34: memref<128x128xbf16, #tpu.memory_space<vmem>>, %arg35: memref<1x128xf32, #tpu.memory_space<vmem>>, %arg36: memref<128x128xbf16, #tpu.memory_space<vmem>>, %arg37: memref<1x128xf32, #tpu.memory_space<vmem>>, %arg38: memref<16x128xf32, #tpu.memory_space<vmem>>, %arg39: memref<16x128xf32, #tpu.memory_space<vmem>>, %arg40: memref<16x256xf32, #tpu.memory_space<vmem>>, %arg41: memref<16x256xf32, #tpu.memory_space<vmem>>) attributes {dimension_semantics = [#tpu.dimension_semantics<arbitrary>, #tpu.dimension_semantics<arbitrary>], iteration_bounds = array<i64: 3, 2>, scalar_prefetch = 0 : i64, scratch_operands = 2 : i64, tpu.core_type = #tpu.core_type<tc>, window_params = [{pipeline_mode = #tpu.pipeline_mode<synchronous>, transform_indices = @transform_0, window_bounds = array<i64: 16, 16>}, {transform_indices = @transform_1, window_bounds = array<i64: 16, 1>}, {pipeline_mode = #tpu.pipeline_mode<synchronous>, transform_indices = @transform_2, window_bounds = array<i64: 16, 128>}, {transform_indices = @transform_3, window_bounds = array<i64: 16, 16>}, {transform_indices = @transform_4, window_bounds = array<i64: 16, 16>}, {pipeline_mode = #tpu.pipeline_mode<synchronous>, transform_indices = @transform_5, window_bounds = array<i64: 16, 8>}, {pipeline_mode = #tpu.pipeline_mode<synchronous>, transform_indices = @transform_6, window_bounds = array<i64: 16, 1>}, {pipeline_mode = #tpu.pipeline_mode<synchronous>, transform_indices = @transform_7, window_bounds = array<i64: 8, 1>}, {transform_indices = @transform_8, window_bounds = array<i64: 1, 1, 128>}, {transform_indices = @transform_9, window_bounds = array<i64: 1, 1, 128>}, {pipeline_mode = #tpu.pipeline_mode<synchronous>, transform_indices = @transform_10, window_bounds = array<i64: 16, 128>}, {pipeline_mode = #tpu.pipeline_mode<synchronous>, transform_indices = @transform_11, window_bounds = array<i64: 1, 128>}, {pipeline_mode = #tpu.pipeline_mode<synchronous>, transform_indices = @transform_12, window_bounds = array<i64: 1, 128>}, {pipeline_mode = #tpu.pipeline_mode<synchronous>, transform_indices = @transform_13, window_bounds = array<i64: 1, 128>}, {transform_indices = @transform_14, window_bounds = array<i64: 1, 128, 128>}, {transform_indices = @transform_15, window_bounds = array<i64: 1, 128, 128>}, {transform_indices = @transform_16, window_bounds = array<i64: 1, 1, 128>}, {transform_indices = @transform_17, window_bounds = array<i64: 1, 128, 128>}, {transform_indices = @transform_18, window_bounds = array<i64: 1, 1, 128>}, {transform_indices = @transform_19, window_bounds = array<i64: 1, 128, 128>}, {transform_indices = @transform_20, window_bounds = array<i64: 1, 1, 128>}, {transform_indices = @transform_21, window_bounds = array<i64: 1, 128, 128>}, {transform_indices = @transform_22, window_bounds = array<i64: 1, 1, 128>}, {transform_indices = @transform_23, window_bounds = array<i64: 1, 1, 128>}, {transform_indices = @transform_24, window_bounds = array<i64: 1, 128, 128>}, {transform_indices = @transform_25, window_bounds = array<i64: 1, 128, 128>}, {transform_indices = @transform_26, window_bounds = array<i64: 1, 1, 128>}, {transform_indices = @transform_27, window_bounds = array<i64: 1, 128, 128>}, {transform_indices = @transform_28, window_bounds = array<i64: 1, 1, 128>}, {pipeline_mode = #tpu.pipeline_mode<synchronous>, transform_indices = @transform_29, window_bounds = array<i64: 128, 128>}, {pipeline_mode = #tpu.pipeline_mode<synchronous>, transform_indices = @transform_30, window_bounds = array<i64: 128, 128>}, {pipeline_mode = #tpu.pipeline_mode<synchronous>, transform_indices = @transform_31, window_bounds = array<i64: 1, 128>}, {pipeline_mode = #tpu.pipeline_mode<synchronous>, transform_indices = @transform_32, window_bounds = array<i64: 128, 128>}, {pipeline_mode = #tpu.pipeline_mode<synchronous>, transform_indices = @transform_33, window_bounds = array<i64: 1, 128>}, {pipeline_mode = #tpu.pipeline_mode<synchronous>, transform_indices = @transform_34, window_bounds = array<i64: 128, 128>}, {pipeline_mode = #tpu.pipeline_mode<synchronous>, transform_indices = @transform_35, window_bounds = array<i64: 1, 128>}, {pipeline_mode = #tpu.pipeline_mode<synchronous>, transform_indices = @transform_36, window_bounds = array<i64: 16, 128>}, {pipeline_mode = #tpu.pipeline_mode<synchronous>, transform_indices = @transform_37, window_bounds = array<i64: 16, 128>}]} {
    %c0_i32 = arith.constant 0 : i32
    %0 = arith.cmpi eq, %arg0, %c0_i32 : i32
    %c0_i32_0 = arith.constant 0 : i32
    %1 = arith.cmpi eq, %arg1, %c0_i32_0 : i32
    %2 = arith.andi %0, %1 : i1
    %3 = arith.extui %2 : i1 to i32
    %c0_i32_1 = arith.constant 0 : i32
    %4 = arith.cmpi ne, %3, %c0_i32_1 : i32
    scf.if %4 {
      %c0_65 = arith.constant 0 : index
      %c0_66 = arith.constant 0 : index
      %116 = vector.load %arg2[%c0_65, %c0_66] : memref<16x16xf32, #tpu.memory_space<vmem>>, vector<16x16xf32>
      %117 = arith.truncf %116 : vector<16x16xf32> to vector<16x16xbf16>
      %c0_67 = arith.constant 0 : index
      %c0_68 = arith.constant 0 : index
      %118 = vector.load %arg12[%c0_67, %c0_68] : memref<16x128xbf16, #tpu.memory_space<vmem>>, vector<16x128xbf16>
      %cst_69 = arith.constant dense<0.000000e+00> : vector<16x128xf32>
      %119 = tpu.matmul %117, %118, %cst_69 {dimension_numbers = #tpu.dot_dimension_numbers<[1], [0], [0], [1], [0, 0, 1, 1], [], []>} : vector<16x16xbf16>, vector<16x128xbf16>, vector<16x128xf32> -> vector<16x128xf32>
      %c0_70 = arith.constant 0 : index
      %c0_71 = arith.constant 0 : index
      %120 = vector.load %arg13[%c0_70, %c0_71] : memref<1x128xf32, #tpu.memory_space<vmem>>, vector<1x128xf32>
      %121 = vector.broadcast %120 : vector<1x128xf32> to vector<16x128xf32>
      %122 = arith.addf %119, %121 : vector<16x128xf32>
      %c0_72 = arith.constant 0 : index
      %c0_73 = arith.constant 0 : index
      %123 = vector.load %arg40[%c0_72, %c0_73] : memref<16x256xf32, #tpu.memory_space<vmem>>, vector<16x128xf32>
      tpu.vector_store %arg40[%c0_72, %c0_73], %122 {strides = array<i32>} : memref<16x256xf32, #tpu.memory_space<vmem>>, vector<16x128xf32>,
      %c0_74 = arith.constant 0 : index
      %c0_75 = arith.constant 0 : index
      %124 = vector.load %arg4[%c0_74, %c0_75] : memref<16x128xf32, #tpu.memory_space<vmem>>, vector<16x128xf32>
      %c0_76 = arith.constant 0 : index
      %c128 = arith.constant 128 : index
      %125 = vector.load %arg40[%c0_76, %c128] : memref<16x256xf32, #tpu.memory_space<vmem>>, vector<16x128xf32>
      tpu.vector_store %arg40[%c0_76, %c128], %124 {strides = array<i32>} : memref<16x256xf32, #tpu.memory_space<vmem>>, vector<16x128xf32>,
    } else {
    }
    %c0_i32_2 = arith.constant 0 : i32
    %5 = arith.cmpi eq, %arg1, %c0_i32_2 : i32
    %6 = arith.extui %5 : i1 to i32
    %c0_i32_3 = arith.constant 0 : i32
    %7 = arith.cmpi ne, %6, %c0_i32_3 : i32
    scf.if %7 {
      %c0_65 = arith.constant 0 : index
      %c0_66 = arith.constant 0 : index
      %c0_67 = arith.constant 0 : index
      %116 = vector.load %arg10[%c0_65, %c0_66, %c0_67] : memref<1x1x128xf32, #tpu.memory_space<vmem>>, vector<1x1x128xf32>
      %117 = vector.shape_cast %116 : vector<1x1x128xf32> to vector<1x128xf32>
      %c0_68 = arith.constant 0 : index
      %c0_69 = arith.constant 0 : index
      %118 = vector.load %arg40[%c0_68, %c0_69] : memref<16x256xf32, #tpu.memory_space<vmem>>, vector<16x128xf32>
      %119 = vector.broadcast %117 : vector<1x128xf32> to vector<16x128xf32>
      %120 = arith.mulf %119, %118 : vector<16x128xf32>
      %c0_70 = arith.constant 0 : index
      %c0_71 = arith.constant 0 : index
      %c0_72 = arith.constant 0 : index
      %121 = vector.load %arg11[%c0_70, %c0_71, %c0_72] : memref<1x1x128xf32, #tpu.memory_space<vmem>>, vector<1x1x128xf32>
      %122 = vector.shape_cast %121 : vector<1x1x128xf32> to vector<1x128xf32>
      %123 = vector.broadcast %122 : vector<1x128xf32> to vector<16x128xf32>
      %124 = arith.addf %120, %123 : vector<16x128xf32>
      %c0_73 = arith.constant 0 : index
      %c0_74 = arith.constant 0 : index
      %125 = vector.load %arg40[%c0_73, %c0_74] : memref<16x256xf32, #tpu.memory_space<vmem>>, vector<16x128xf32>
      tpu.vector_store %arg40[%c0_73, %c0_74], %124 {strides = array<i32>} : memref<16x256xf32, #tpu.memory_space<vmem>>, vector<16x128xf32>,
      %cst_75 = arith.constant 0.000000e+00 : f32
      %126 = vector.broadcast %cst_75 : f32 to vector<16x256xf32>
      %c0_76 = arith.constant 0 : index
      %c0_77 = arith.constant 0 : index
      %127 = vector.load %arg41[%c0_76, %c0_77] : memref<16x256xf32, #tpu.memory_space<vmem>>, vector<16x256xf32>
      tpu.vector_store %arg41[%c0_76, %c0_77], %126 {strides = array<i32>} : memref<16x256xf32, #tpu.memory_space<vmem>>, vector<16x256xf32>,
    } else {
    }
    %c0 = arith.constant 0 : index
    %c0_4 = arith.constant 0 : index
    %8 = vector.load %arg5[%c0, %c0_4] : memref<16x16xbf16, #tpu.memory_space<vmem>>, vector<16x16xbf16>
    %c0_5 = arith.constant 0 : index
    %c0_6 = arith.constant 0 : index
    %9 = vector.load %arg6[%c0_5, %c0_6] : memref<16x16xbf16, #tpu.memory_space<vmem>>, vector<16x16xbf16>
    %c0_7 = arith.constant 0 : index
    %c0_8 = arith.constant 0 : index
    %10 = vector.load %arg40[%c0_7, %c0_8] : memref<16x256xf32, #tpu.memory_space<vmem>>, vector<16x256xf32>
    %11 = arith.truncf %10 : vector<16x256xf32> to vector<16x256xbf16>
    %cst = arith.constant dense<0.000000e+00> : vector<16x256xf32>
    %12 = tpu.matmul %8, %11, %cst {dimension_numbers = #tpu.dot_dimension_numbers<[1], [0], [0], [1], [0, 0, 1, 1], [], []>} : vector<16x16xbf16>, vector<16x256xbf16>, vector<16x256xf32> -> vector<16x256xf32>
    %cst_9 = arith.constant dense<0.000000e+00> : vector<16x256xf32>
    %13 = tpu.matmul %9, %11, %cst_9 {dimension_numbers = #tpu.dot_dimension_numbers<[1], [0], [0], [1], [0, 0, 1, 1], [], []>} : vector<16x16xbf16>, vector<16x256xbf16>, vector<16x256xf32> -> vector<16x256xf32>
    %14 = vector.extract_strided_slice %12 {offsets = [0, 0], sizes = [16, 128], strides = [1, 1]} : vector<16x256xf32> to vector<16x128xf32>
    %15 = vector.extract_strided_slice %12 {offsets = [0, 128], sizes = [16, 128], strides = [1, 1]} : vector<16x256xf32> to vector<16x128xf32>
    %16 = vector.extract_strided_slice %13 {offsets = [0, 0], sizes = [16, 128], strides = [1, 1]} : vector<16x256xf32> to vector<16x128xf32>
    %17 = vector.extract_strided_slice %13 {offsets = [0, 128], sizes = [16, 128], strides = [1, 1]} : vector<16x256xf32> to vector<16x128xf32>
    %18 = arith.subf %15, %17 : vector<16x128xf32>
    %19 = arith.mulf %18, %18 : vector<16x128xf32>
    %cst_10 = arith.constant dense<0.000000e+00> : vector<16xf32>
    %20 = vector.multi_reduction <add>, %19, %cst_10 [1] : vector<16x128xf32> to vector<16xf32>
    %21 = vector.shape_cast %20 : vector<16xf32> to vector<16x1xf32>
    %22 = math.sqrt %21 : vector<16x1xf32>
    %cst_11 = arith.constant 9.99999993E-9 : f32
    %23 = vector.broadcast %cst_11 : f32 to vector<16x1xf32>
    %24 = arith.addf %22, %23 : vector<16x1xf32>
    %25 = tpu.reciprocal %24 {approx = true} : vector<16x1xf32> -> vector<16x1xf32>
    %26 = vector.broadcast %25 : vector<16x1xf32> to vector<16x128xf32>
    %27 = arith.mulf %18, %26 : vector<16x128xf32>
    %c0_12 = arith.constant 0 : index
    %c0_13 = arith.constant 0 : index
    %28 = vector.load %arg3[%c0_12, %c0_13] : memref<16x1xf32, #tpu.memory_space<vmem>>, vector<16x1xf32>
    %c0_14 = arith.constant 0 : index
    %c0_15 = arith.constant 0 : index
    %29 = vector.load %arg14[%c0_14, %c0_15] : memref<1x128xf32, #tpu.memory_space<vmem>>, vector<1x128xf32>
    %30 = vector.broadcast %28 : vector<16x1xf32> to vector<16x128xf32>
    %31 = vector.broadcast %29 : vector<1x128xf32> to vector<16x128xf32>
    %32 = arith.mulf %30, %31 : vector<16x128xf32>
    %c0_16 = arith.constant 0 : index
    %c0_17 = arith.constant 0 : index
    %33 = vector.load %arg15[%c0_16, %c0_17] : memref<1x128xf32, #tpu.memory_space<vmem>>, vector<1x128xf32>
    %34 = vector.broadcast %33 : vector<1x128xf32> to vector<16x128xf32>
    %35 = arith.addf %32, %34 : vector<16x128xf32>
    %36 = arith.truncf %14 : vector<16x128xf32> to vector<16x128xbf16>
    %c0_18 = arith.constant 0 : index
    %c0_19 = arith.constant 0 : index
    %c0_20 = arith.constant 0 : index
    %37 = vector.load %arg16[%c0_18, %c0_19, %c0_20] : memref<1x128x128xbf16, #tpu.memory_space<vmem>>, vector<1x128x128xbf16>
    %38 = vector.shape_cast %37 : vector<1x128x128xbf16> to vector<128x128xbf16>
    %cst_21 = arith.constant dense<0.000000e+00> : vector<16x128xf32>
    %39 = tpu.matmul %36, %38, %cst_21 {dimension_numbers = #tpu.dot_dimension_numbers<[1], [0], [0], [1], [0, 0, 1, 1], [], []>} : vector<16x128xbf16>, vector<128x128xbf16>, vector<16x128xf32> -> vector<16x128xf32>
    %40 = arith.truncf %16 : vector<16x128xf32> to vector<16x128xbf16>
    %c0_22 = arith.constant 0 : index
    %c0_23 = arith.constant 0 : index
    %c0_24 = arith.constant 0 : index
    %41 = vector.load %arg17[%c0_22, %c0_23, %c0_24] : memref<1x128x128xbf16, #tpu.memory_space<vmem>>, vector<1x128x128xbf16>
    %42 = vector.shape_cast %41 : vector<1x128x128xbf16> to vector<128x128xbf16>
    %cst_25 = arith.constant dense<0.000000e+00> : vector<16x128xf32>
    %43 = tpu.matmul %40, %42, %cst_25 {dimension_numbers = #tpu.dot_dimension_numbers<[1], [0], [0], [1], [0, 0, 1, 1], [], []>} : vector<16x128xbf16>, vector<128x128xbf16>, vector<16x128xf32> -> vector<16x128xf32>
    %44 = arith.addf %39, %43 : vector<16x128xf32>
    %c0_26 = arith.constant 0 : index
    %c0_27 = arith.constant 0 : index
    %c0_28 = arith.constant 0 : index
    %45 = vector.load %arg18[%c0_26, %c0_27, %c0_28] : memref<1x1x128xf32, #tpu.memory_space<vmem>>, vector<1x1x128xf32>
    %46 = vector.shape_cast %45 : vector<1x1x128xf32> to vector<1x128xf32>
    %47 = vector.broadcast %21 : vector<16x1xf32> to vector<16x128xf32>
    %48 = vector.broadcast %46 : vector<1x128xf32> to vector<16x128xf32>
    %49 = arith.mulf %47, %48 : vector<16x128xf32>
    %50 = arith.addf %44, %49 : vector<16x128xf32>
    %51 = arith.truncf %35 : vector<16x128xf32> to vector<16x128xbf16>
    %c0_29 = arith.constant 0 : index
    %c0_30 = arith.constant 0 : index
    %c0_31 = arith.constant 0 : index
    %52 = vector.load %arg19[%c0_29, %c0_30, %c0_31] : memref<1x128x128xbf16, #tpu.memory_space<vmem>>, vector<1x128x128xbf16>
    %53 = vector.shape_cast %52 : vector<1x128x128xbf16> to vector<128x128xbf16>
    %cst_32 = arith.constant dense<0.000000e+00> : vector<16x128xf32>
    %54 = tpu.matmul %51, %53, %cst_32 {dimension_numbers = #tpu.dot_dimension_numbers<[1], [0], [0], [1], [0, 0, 1, 1], [], []>} : vector<16x128xbf16>, vector<128x128xbf16>, vector<16x128xf32> -> vector<16x128xf32>
    %55 = arith.addf %50, %54 : vector<16x128xf32>
    %c0_33 = arith.constant 0 : index
    %c0_34 = arith.constant 0 : index
    %c0_35 = arith.constant 0 : index
    %56 = vector.load %arg20[%c0_33, %c0_34, %c0_35] : memref<1x1x128xf32, #tpu.memory_space<vmem>>, vector<1x1x128xf32>
    %57 = vector.shape_cast %56 : vector<1x1x128xf32> to vector<1x128xf32>
    %58 = vector.broadcast %57 : vector<1x128xf32> to vector<16x128xf32>
    %59 = arith.addf %55, %58 : vector<16x128xf32>
    %60 = arith.negf %59 : vector<16x128xf32>
    %61 = math.exp %60 : vector<16x128xf32>
    %cst_36 = arith.constant 1.000000e+00 : f32
    %62 = vector.broadcast %cst_36 : f32 to vector<16x128xf32>
    %63 = arith.addf %62, %61 : vector<16x128xf32>
    %64 = arith.divf %62, %63 : vector<16x128xf32>
    %65 = arith.mulf %59, %64 : vector<16x128xf32>
    %66 = arith.truncf %65 : vector<16x128xf32> to vector<16x128xbf16>
    %c0_37 = arith.constant 0 : index
    %c0_38 = arith.constant 0 : index
    %c0_39 = arith.constant 0 : index
    %67 = vector.load %arg21[%c0_37, %c0_38, %c0_39] : memref<1x128x128xbf16, #tpu.memory_space<vmem>>, vector<1x128x128xbf16>
    %68 = vector.shape_cast %67 : vector<1x128x128xbf16> to vector<128x128xbf16>
    %cst_40 = arith.constant dense<0.000000e+00> : vector<16x128xf32>
    %69 = tpu.matmul %66, %68, %cst_40 {dimension_numbers = #tpu.dot_dimension_numbers<[1], [0], [0], [1], [0, 0, 1, 1], [], []>} : vector<16x128xbf16>, vector<128x128xbf16>, vector<16x128xf32> -> vector<16x128xf32>
    %c0_41 = arith.constant 0 : index
    %c0_42 = arith.constant 0 : index
    %c0_43 = arith.constant 0 : index
    %70 = vector.load %arg22[%c0_41, %c0_42, %c0_43] : memref<1x1x128xf32, #tpu.memory_space<vmem>>, vector<1x1x128xf32>
    %71 = vector.shape_cast %70 : vector<1x1x128xf32> to vector<1x128xf32>
    %72 = vector.broadcast %71 : vector<1x128xf32> to vector<16x128xf32>
    %73 = arith.addf %69, %72 : vector<16x128xf32>
    %74 = arith.negf %73 : vector<16x128xf32>
    %75 = math.exp %74 : vector<16x128xf32>
    %cst_44 = arith.constant 1.000000e+00 : f32
    %76 = vector.broadcast %cst_44 : f32 to vector<16x128xf32>
    %77 = arith.addf %76, %75 : vector<16x128xf32>
    %78 = arith.divf %76, %77 : vector<16x128xf32>
    %79 = arith.mulf %73, %78 : vector<16x128xf32>
    %80 = arith.truncf %79 : vector<16x128xf32> to vector<16x128xbf16>
    %c0_45 = arith.constant 0 : index
    %c0_46 = arith.constant 0 : index
    %c0_47 = arith.constant 0 : index
    %81 = vector.load %arg23[%c0_45, %c0_46, %c0_47] : memref<1x128x128xbf16, #tpu.memory_space<vmem>>, vector<1x128x128xbf16>
    %82 = vector.shape_cast %81 : vector<1x128x128xbf16> to vector<128x128xbf16>
    %cst_48 = arith.constant dense<0.000000e+00> : vector<16x128xf32>
    %83 = tpu.matmul %80, %82, %cst_48 {dimension_numbers = #tpu.dot_dimension_numbers<[1], [0], [0], [1], [0, 0, 1, 1], [], []>} : vector<16x128xbf16>, vector<128x128xbf16>, vector<16x128xf32> -> vector<16x128xf32>
    %c0_49 = arith.constant 0 : index
    %c0_50 = arith.constant 0 : index
    %c0_51 = arith.constant 0 : index
    %84 = vector.load %arg24[%c0_49, %c0_50, %c0_51] : memref<1x1x128xf32, #tpu.memory_space<vmem>>, vector<1x1x128xf32>
    %85 = vector.shape_cast %84 : vector<1x1x128xf32> to vector<1x128xf32>
    %86 = vector.broadcast %85 : vector<1x128xf32> to vector<16x128xf32>
    %87 = arith.addf %83, %86 : vector<16x128xf32>
    %88 = arith.negf %87 : vector<16x128xf32>
    %89 = math.exp %88 : vector<16x128xf32>
    %cst_52 = arith.constant 1.000000e+00 : f32
    %90 = vector.broadcast %cst_52 : f32 to vector<16x128xf32>
    %91 = arith.addf %90, %89 : vector<16x128xf32>
    %92 = arith.divf %90, %91 : vector<16x128xf32>
    %93 = arith.mulf %87, %92 : vector<16x128xf32>
    %c0_53 = arith.constant 0 : index
    %c0_54 = arith.constant 0 : index
    %c0_55 = arith.constant 0 : index
    %94 = vector.load %arg25[%c0_53, %c0_54, %c0_55] : memref<1x1x128xf32, #tpu.memory_space<vmem>>, vector<1x1x128xf32>
    %95 = vector.shape_cast %94 : vector<1x1x128xf32> to vector<1x128xf32>
    %96 = vector.broadcast %95 : vector<1x128xf32> to vector<16x128xf32>
    %97 = arith.mulf %93, %96 : vector<16x128xf32>
    %cst_56 = arith.constant dense<0.000000e+00> : vector<16xf32>
    %98 = vector.multi_reduction <add>, %97, %cst_56 [1] : vector<16x128xf32> to vector<16xf32>
    %99 = vector.shape_cast %98 : vector<16xf32> to vector<16x1xf32>
    %100 = vector.broadcast %99 : vector<16x1xf32> to vector<16x128xf32>
    %101 = arith.mulf %27, %100 : vector<16x128xf32>
    %102 = tpu.concatenate %79, %101 in 1 : vector<16x128xf32>, vector<16x128xf32> -> vector<16x256xf32>
    %c0_57 = arith.constant 0 : index
    %c0_58 = arith.constant 0 : index
    %103 = vector.load %arg41[%c0_57, %c0_58] : memref<16x256xf32, #tpu.memory_space<vmem>>, vector<16x256xf32>
    %104 = arith.truncf %102 : vector<16x256xf32> to vector<16x256xbf16>
    %cst_59 = arith.constant dense<0.000000e+00> : vector<16x256xf32>
    %105 = tpu.matmul %8, %104, %cst_59 {dimension_numbers = #tpu.dot_dimension_numbers<[0], [0], [1], [1], [0, 1, 1, 1], [], []>} : vector<16x16xbf16>, vector<16x256xbf16>, vector<16x256xf32> -> vector<16x256xf32>
    %106 = arith.addf %103, %105 : vector<16x256xf32>
    %c0_60 = arith.constant 0 : index
    %c0_61 = arith.constant 0 : index
    %107 = vector.load %arg41[%c0_60, %c0_61] : memref<16x256xf32, #tpu.memory_space<vmem>>, vector<16x256xf32>
    tpu.vector_store %arg41[%c0_60, %c0_61], %106 {strides = array<i32>} : memref<16x256xf32, #tpu.memory_space<vmem>>, vector<16x256xf32>,
    %c1_i32 = arith.constant 1 : i32
    %108 = arith.cmpi eq, %arg1, %c1_i32 : i32
    %109 = arith.extui %108 : i1 to i32
    %c0_i32_62 = arith.constant 0 : i32
    %110 = arith.cmpi ne, %109, %c0_i32_62 : i32
    scf.if %110 {
      %c0_65 = arith.constant 0 : index
      %c0_66 = arith.constant 0 : index
      %116 = vector.load %arg40[%c0_65, %c0_66] : memref<16x256xf32, #tpu.memory_space<vmem>>, vector<16x128xf32>
      %c0_67 = arith.constant 0 : index
      %c0_68 = arith.constant 0 : index
      %117 = vector.load %arg41[%c0_67, %c0_68] : memref<16x256xf32, #tpu.memory_space<vmem>>, vector<16x128xf32>
      %118 = arith.truncf %116 : vector<16x128xf32> to vector<16x128xbf16>
      %c0_69 = arith.constant 0 : index
      %c0_70 = arith.constant 0 : index
      %c0_71 = arith.constant 0 : index
      %119 = vector.load %arg26[%c0_69, %c0_70, %c0_71] : memref<1x128x128xbf16, #tpu.memory_space<vmem>>, vector<1x128x128xbf16>
      %120 = vector.shape_cast %119 : vector<1x128x128xbf16> to vector<128x128xbf16>
      %cst_72 = arith.constant dense<0.000000e+00> : vector<16x128xf32>
      %121 = tpu.matmul %118, %120, %cst_72 {dimension_numbers = #tpu.dot_dimension_numbers<[1], [0], [0], [1], [0, 0, 1, 1], [], []>} : vector<16x128xbf16>, vector<128x128xbf16>, vector<16x128xf32> -> vector<16x128xf32>
      %122 = arith.truncf %117 : vector<16x128xf32> to vector<16x128xbf16>
      %c0_73 = arith.constant 0 : index
      %c0_74 = arith.constant 0 : index
      %c0_75 = arith.constant 0 : index
      %123 = vector.load %arg27[%c0_73, %c0_74, %c0_75] : memref<1x128x128xbf16, #tpu.memory_space<vmem>>, vector<1x128x128xbf16>
      %124 = vector.shape_cast %123 : vector<1x128x128xbf16> to vector<128x128xbf16>
      %cst_76 = arith.constant dense<0.000000e+00> : vector<16x128xf32>
      %125 = tpu.matmul %122, %124, %cst_76 {dimension_numbers = #tpu.dot_dimension_numbers<[1], [0], [0], [1], [0, 0, 1, 1], [], []>} : vector<16x128xbf16>, vector<128x128xbf16>, vector<16x128xf32> -> vector<16x128xf32>
      %126 = arith.addf %121, %125 : vector<16x128xf32>
      %c0_77 = arith.constant 0 : index
      %c0_78 = arith.constant 0 : index
      %c0_79 = arith.constant 0 : index
      %127 = vector.load %arg28[%c0_77, %c0_78, %c0_79] : memref<1x1x128xf32, #tpu.memory_space<vmem>>, vector<1x1x128xf32>
      %128 = vector.shape_cast %127 : vector<1x1x128xf32> to vector<1x128xf32>
      %129 = vector.broadcast %128 : vector<1x128xf32> to vector<16x128xf32>
      %130 = arith.addf %126, %129 : vector<16x128xf32>
      %131 = arith.negf %130 : vector<16x128xf32>
      %132 = math.exp %131 : vector<16x128xf32>
      %cst_80 = arith.constant 1.000000e+00 : f32
      %133 = vector.broadcast %cst_80 : f32 to vector<16x128xf32>
      %134 = arith.addf %133, %132 : vector<16x128xf32>
      %135 = arith.divf %133, %134 : vector<16x128xf32>
      %136 = arith.mulf %130, %135 : vector<16x128xf32>
      %137 = arith.truncf %136 : vector<16x128xf32> to vector<16x128xbf16>
      %c0_81 = arith.constant 0 : index
      %c0_82 = arith.constant 0 : index
      %c0_83 = arith.constant 0 : index
      %138 = vector.load %arg29[%c0_81, %c0_82, %c0_83] : memref<1x128x128xbf16, #tpu.memory_space<vmem>>, vector<1x128x128xbf16>
      %139 = vector.shape_cast %138 : vector<1x128x128xbf16> to vector<128x128xbf16>
      %cst_84 = arith.constant dense<0.000000e+00> : vector<16x128xf32>
      %140 = tpu.matmul %137, %139, %cst_84 {dimension_numbers = #tpu.dot_dimension_numbers<[1], [0], [0], [1], [0, 0, 1, 1], [], []>} : vector<16x128xbf16>, vector<128x128xbf16>, vector<16x128xf32> -> vector<16x128xf32>
      %141 = arith.addf %116, %140 : vector<16x128xf32>
      %c0_85 = arith.constant 0 : index
      %c0_86 = arith.constant 0 : index
      %c0_87 = arith.constant 0 : index
      %142 = vector.load %arg30[%c0_85, %c0_86, %c0_87] : memref<1x1x128xf32, #tpu.memory_space<vmem>>, vector<1x1x128xf32>
      %143 = vector.shape_cast %142 : vector<1x1x128xf32> to vector<1x128xf32>
      %144 = vector.broadcast %143 : vector<1x128xf32> to vector<16x128xf32>
      %145 = arith.addf %141, %144 : vector<16x128xf32>
      %c0_88 = arith.constant 0 : index
      %c0_89 = arith.constant 0 : index
      %146 = vector.load %arg40[%c0_88, %c0_89] : memref<16x256xf32, #tpu.memory_space<vmem>>, vector<16x128xf32>
      tpu.vector_store %arg40[%c0_88, %c0_89], %145 {strides = array<i32>} : memref<16x256xf32, #tpu.memory_space<vmem>>, vector<16x128xf32>,
      %c0_90 = arith.constant 0 : index
      %c128 = arith.constant 128 : index
      %147 = vector.load %arg40[%c0_90, %c128] : memref<16x256xf32, #tpu.memory_space<vmem>>, vector<16x128xf32>
      %c0_91 = arith.constant 0 : index
      %c128_92 = arith.constant 128 : index
      %148 = vector.load %arg41[%c0_91, %c128_92] : memref<16x256xf32, #tpu.memory_space<vmem>>, vector<16x128xf32>
      %c0_93 = arith.constant 0 : index
      %c0_94 = arith.constant 0 : index
      %149 = vector.load %arg8[%c0_93, %c0_94] : memref<16x1xf32, #tpu.memory_space<vmem>>, vector<16x1xf32>
      %150 = vector.broadcast %149 : vector<16x1xf32> to vector<16x128xf32>
      %151 = arith.mulf %148, %150 : vector<16x128xf32>
      %152 = arith.addf %147, %151 : vector<16x128xf32>
      %c0_95 = arith.constant 0 : index
      %c128_96 = arith.constant 128 : index
      %153 = vector.load %arg40[%c0_95, %c128_96] : memref<16x256xf32, #tpu.memory_space<vmem>>, vector<16x128xf32>
      tpu.vector_store %arg40[%c0_95, %c128_96], %152 {strides = array<i32>} : memref<16x256xf32, #tpu.memory_space<vmem>>, vector<16x128xf32>,
    } else {
    }
    %c2_i32 = arith.constant 2 : i32
    %111 = arith.cmpi eq, %arg0, %c2_i32 : i32
    %c1_i32_63 = arith.constant 1 : i32
    %112 = arith.cmpi eq, %arg1, %c1_i32_63 : i32
    %113 = arith.andi %111, %112 : i1
    %114 = arith.extui %113 : i1 to i32
    %c0_i32_64 = arith.constant 0 : i32
    %115 = arith.cmpi ne, %114, %c0_i32_64 : i32
    scf.if %115 {
      %c0_65 = arith.constant 0 : index
      %c0_66 = arith.constant 0 : index
      %116 = vector.load %arg40[%c0_65, %c0_66] : memref<16x256xf32, #tpu.memory_space<vmem>>, vector<16x128xf32>
      %117 = arith.truncf %116 : vector<16x128xf32> to vector<16x128xbf16>
      %c0_67 = arith.constant 0 : index
      %c0_68 = arith.constant 0 : index
      %118 = vector.load %arg7[%c0_67, %c0_68] : memref<16x8xbf16, #tpu.memory_space<vmem>>, vector<16x8xbf16>
      %cst_69 = arith.constant dense<0.000000e+00> : vector<8x128xf32>
      %119 = tpu.matmul %118, %117, %cst_69 {dimension_numbers = #tpu.dot_dimension_numbers<[0], [0], [1], [1], [0, 1, 1, 1], [], []>} : vector<16x8xbf16>, vector<16x128xbf16>, vector<8x128xf32> -> vector<8x128xf32>
      %c0_70 = arith.constant 0 : index
      %c0_71 = arith.constant 0 : index
      %120 = vector.load %arg9[%c0_70, %c0_71] : memref<8x1xf32, #tpu.memory_space<vmem>>, vector<8x1xf32>
      %121 = vector.broadcast %120 : vector<8x1xf32> to vector<8x128xf32>
      %122 = arith.mulf %119, %121 : vector<8x128xf32>
      %123 = arith.truncf %122 : vector<8x128xf32> to vector<8x128xbf16>
      %cst_72 = arith.constant dense<0.000000e+00> : vector<16x128xf32>
      %124 = tpu.matmul %118, %123, %cst_72 {dimension_numbers = #tpu.dot_dimension_numbers<[1], [0], [0], [1], [0, 0, 1, 1], [], []>} : vector<16x8xbf16>, vector<8x128xbf16>, vector<16x128xf32> -> vector<16x128xf32>
      %125 = arith.truncf %124 : vector<16x128xf32> to vector<16x128xbf16>
      %c0_73 = arith.constant 0 : index
      %c0_74 = arith.constant 0 : index
      %126 = vector.load %arg31[%c0_73, %c0_74] : memref<128x128xbf16, #tpu.memory_space<vmem>>, vector<128x128xbf16>
      %cst_75 = arith.constant dense<0.000000e+00> : vector<16x128xf32>
      %127 = tpu.matmul %125, %126, %cst_75 {dimension_numbers = #tpu.dot_dimension_numbers<[1], [0], [0], [1], [0, 0, 1, 1], [], []>} : vector<16x128xbf16>, vector<128x128xbf16>, vector<16x128xf32> -> vector<16x128xf32>
      %c0_76 = arith.constant 0 : index
      %c0_77 = arith.constant 0 : index
      %128 = vector.load %arg32[%c0_76, %c0_77] : memref<128x128xbf16, #tpu.memory_space<vmem>>, vector<128x128xbf16>
      %cst_78 = arith.constant dense<0.000000e+00> : vector<16x128xf32>
      %129 = tpu.matmul %117, %128, %cst_78 {dimension_numbers = #tpu.dot_dimension_numbers<[1], [0], [0], [1], [0, 0, 1, 1], [], []>} : vector<16x128xbf16>, vector<128x128xbf16>, vector<16x128xf32> -> vector<16x128xf32>
      %130 = arith.addf %127, %129 : vector<16x128xf32>
      %c0_79 = arith.constant 0 : index
      %c0_80 = arith.constant 0 : index
      %131 = vector.load %arg33[%c0_79, %c0_80] : memref<1x128xf32, #tpu.memory_space<vmem>>, vector<1x128xf32>
      %132 = vector.broadcast %131 : vector<1x128xf32> to vector<16x128xf32>
      %133 = arith.addf %130, %132 : vector<16x128xf32>
      %cst_81 = arith.constant 0.000000e+00 : f32
      %134 = vector.broadcast %cst_81 : f32 to vector<16x128xf32>
      %135 = arith.maximumf %133, %134 : vector<16x128xf32>
      %136 = arith.truncf %135 : vector<16x128xf32> to vector<16x128xbf16>
      %c0_82 = arith.constant 0 : index
      %c0_83 = arith.constant 0 : index
      %137 = vector.load %arg34[%c0_82, %c0_83] : memref<128x128xbf16, #tpu.memory_space<vmem>>, vector<128x128xbf16>
      %cst_84 = arith.constant dense<0.000000e+00> : vector<16x128xf32>
      %138 = tpu.matmul %136, %137, %cst_84 {dimension_numbers = #tpu.dot_dimension_numbers<[1], [0], [0], [1], [0, 0, 1, 1], [], []>} : vector<16x128xbf16>, vector<128x128xbf16>, vector<16x128xf32> -> vector<16x128xf32>
      %c0_85 = arith.constant 0 : index
      %c0_86 = arith.constant 0 : index
      %139 = vector.load %arg35[%c0_85, %c0_86] : memref<1x128xf32, #tpu.memory_space<vmem>>, vector<1x128xf32>
      %140 = vector.broadcast %139 : vector<1x128xf32> to vector<16x128xf32>
      %141 = arith.addf %138, %140 : vector<16x128xf32>
      %cst_87 = arith.constant 0.000000e+00 : f32
      %142 = vector.broadcast %cst_87 : f32 to vector<16x128xf32>
      %143 = arith.maximumf %141, %142 : vector<16x128xf32>
      %144 = arith.truncf %143 : vector<16x128xf32> to vector<16x128xbf16>
      %c0_88 = arith.constant 0 : index
      %c0_89 = arith.constant 0 : index
      %145 = vector.load %arg36[%c0_88, %c0_89] : memref<128x128xbf16, #tpu.memory_space<vmem>>, vector<128x128xbf16>
      %cst_90 = arith.constant dense<0.000000e+00> : vector<16x128xf32>
      %146 = tpu.matmul %144, %145, %cst_90 {dimension_numbers = #tpu.dot_dimension_numbers<[1], [0], [0], [1], [0, 0, 1, 1], [], []>} : vector<16x128xbf16>, vector<128x128xbf16>, vector<16x128xf32> -> vector<16x128xf32>
      %c0_91 = arith.constant 0 : index
      %c0_92 = arith.constant 0 : index
      %147 = vector.load %arg37[%c0_91, %c0_92] : memref<1x128xf32, #tpu.memory_space<vmem>>, vector<1x128xf32>
      %148 = vector.broadcast %147 : vector<1x128xf32> to vector<16x128xf32>
      %149 = arith.addf %146, %148 : vector<16x128xf32>
      %c0_93 = arith.constant 0 : index
      %c0_94 = arith.constant 0 : index
      %150 = vector.load %arg38[%c0_93, %c0_94] : memref<16x128xf32, #tpu.memory_space<vmem>>, vector<16x128xf32>
      tpu.vector_store %arg38[%c0_93, %c0_94], %149 {strides = array<i32>} : memref<16x128xf32, #tpu.memory_space<vmem>>, vector<16x128xf32>,
      %c0_95 = arith.constant 0 : index
      %c128 = arith.constant 128 : index
      %151 = vector.load %arg40[%c0_95, %c128] : memref<16x256xf32, #tpu.memory_space<vmem>>, vector<16x128xf32>
      %c0_96 = arith.constant 0 : index
      %c0_97 = arith.constant 0 : index
      %152 = vector.load %arg39[%c0_96, %c0_97] : memref<16x128xf32, #tpu.memory_space<vmem>>, vector<16x128xf32>
      tpu.vector_store %arg39[%c0_96, %c0_97], %151 {strides = array<i32>} : memref<16x128xf32, #tpu.memory_space<vmem>>, vector<16x128xf32>,
    } else {
    }
    return
  }
  func.func @transform_0(%arg0: i32, %arg1: i32) -> (i32, i32) {
    %c0_i32 = arith.constant 0 : i32
    %c0_i32_0 = arith.constant 0 : i32
    %c0_i32_1 = arith.constant 0 : i32
    return %c0_i32, %c0_i32_0 : i32, i32
  }
  func.func @transform_1(%arg0: i32, %arg1: i32) -> (i32, i32) {
    %c0_i32 = arith.constant 0 : i32
    %c0_i32_0 = arith.constant 0 : i32
    return %arg1, %c0_i32 : i32, i32
  }
  func.func @transform_2(%arg0: i32, %arg1: i32) -> (i32, i32) {
    %c0_i32 = arith.constant 0 : i32
    %c0_i32_0 = arith.constant 0 : i32
    %c0_i32_1 = arith.constant 0 : i32
    return %c0_i32, %c0_i32_0 : i32, i32
  }
  func.func @transform_3(%arg0: i32, %arg1: i32) -> (i32, i32) {
    %c0_i32 = arith.constant 0 : i32
    %c0_i32_0 = arith.constant 0 : i32
    return %arg1, %c0_i32 : i32, i32
  }
  func.func @transform_4(%arg0: i32, %arg1: i32) -> (i32, i32) {
    %c0_i32 = arith.constant 0 : i32
    %c0_i32_0 = arith.constant 0 : i32
    return %arg1, %c0_i32 : i32, i32
  }
  func.func @transform_5(%arg0: i32, %arg1: i32) -> (i32, i32) {
    %c0_i32 = arith.constant 0 : i32
    %c0_i32_0 = arith.constant 0 : i32
    %c0_i32_1 = arith.constant 0 : i32
    return %c0_i32, %c0_i32_0 : i32, i32
  }
  func.func @transform_6(%arg0: i32, %arg1: i32) -> (i32, i32) {
    %c0_i32 = arith.constant 0 : i32
    %c0_i32_0 = arith.constant 0 : i32
    %c0_i32_1 = arith.constant 0 : i32
    return %c0_i32, %c0_i32_0 : i32, i32
  }
  func.func @transform_7(%arg0: i32, %arg1: i32) -> (i32, i32) {
    %c0_i32 = arith.constant 0 : i32
    %c0_i32_0 = arith.constant 0 : i32
    %c0_i32_1 = arith.constant 0 : i32
    return %c0_i32, %c0_i32_0 : i32, i32
  }
  func.func @transform_8(%arg0: i32, %arg1: i32) -> (i32, i32, i32) {
    %c0_i32 = arith.constant 0 : i32
    %c0_i32_0 = arith.constant 0 : i32
    %c0_i32_1 = arith.constant 0 : i32
    return %arg0, %c0_i32, %c0_i32_0 : i32, i32, i32
  }
  func.func @transform_9(%arg0: i32, %arg1: i32) -> (i32, i32, i32) {
    %c0_i32 = arith.constant 0 : i32
    %c0_i32_0 = arith.constant 0 : i32
    %c0_i32_1 = arith.constant 0 : i32
    return %arg0, %c0_i32, %c0_i32_0 : i32, i32, i32
  }
  func.func @transform_10(%arg0: i32, %arg1: i32) -> (i32, i32) {
    %c0_i32 = arith.constant 0 : i32
    %c0_i32_0 = arith.constant 0 : i32
    %c0_i32_1 = arith.constant 0 : i32
    return %c0_i32, %c0_i32_0 : i32, i32
  }
  func.func @transform_11(%arg0: i32, %arg1: i32) -> (i32, i32) {
    %c0_i32 = arith.constant 0 : i32
    %c0_i32_0 = arith.constant 0 : i32
    %c0_i32_1 = arith.constant 0 : i32
    return %c0_i32, %c0_i32_0 : i32, i32
  }
  func.func @transform_12(%arg0: i32, %arg1: i32) -> (i32, i32) {
    %c0_i32 = arith.constant 0 : i32
    %c0_i32_0 = arith.constant 0 : i32
    %c0_i32_1 = arith.constant 0 : i32
    return %c0_i32, %c0_i32_0 : i32, i32
  }
  func.func @transform_13(%arg0: i32, %arg1: i32) -> (i32, i32) {
    %c0_i32 = arith.constant 0 : i32
    %c0_i32_0 = arith.constant 0 : i32
    %c0_i32_1 = arith.constant 0 : i32
    return %c0_i32, %c0_i32_0 : i32, i32
  }
  func.func @transform_14(%arg0: i32, %arg1: i32) -> (i32, i32, i32) {
    %c0_i32 = arith.constant 0 : i32
    %c0_i32_0 = arith.constant 0 : i32
    %c0_i32_1 = arith.constant 0 : i32
    return %arg0, %c0_i32, %c0_i32_0 : i32, i32, i32
  }
  func.func @transform_15(%arg0: i32, %arg1: i32) -> (i32, i32, i32) {
    %c0_i32 = arith.constant 0 : i32
    %c0_i32_0 = arith.constant 0 : i32
    %c0_i32_1 = arith.constant 0 : i32
    return %arg0, %c0_i32, %c0_i32_0 : i32, i32, i32
  }
  func.func @transform_16(%arg0: i32, %arg1: i32) -> (i32, i32, i32) {
    %c0_i32 = arith.constant 0 : i32
    %c0_i32_0 = arith.constant 0 : i32
    %c0_i32_1 = arith.constant 0 : i32
    return %arg0, %c0_i32, %c0_i32_0 : i32, i32, i32
  }
  func.func @transform_17(%arg0: i32, %arg1: i32) -> (i32, i32, i32) {
    %c0_i32 = arith.constant 0 : i32
    %c0_i32_0 = arith.constant 0 : i32
    %c0_i32_1 = arith.constant 0 : i32
    return %arg0, %c0_i32, %c0_i32_0 : i32, i32, i32
  }
  func.func @transform_18(%arg0: i32, %arg1: i32) -> (i32, i32, i32) {
    %c0_i32 = arith.constant 0 : i32
    %c0_i32_0 = arith.constant 0 : i32
    %c0_i32_1 = arith.constant 0 : i32
    return %arg0, %c0_i32, %c0_i32_0 : i32, i32, i32
  }
  func.func @transform_19(%arg0: i32, %arg1: i32) -> (i32, i32, i32) {
    %c0_i32 = arith.constant 0 : i32
    %c0_i32_0 = arith.constant 0 : i32
    %c0_i32_1 = arith.constant 0 : i32
    return %arg0, %c0_i32, %c0_i32_0 : i32, i32, i32
  }
  func.func @transform_20(%arg0: i32, %arg1: i32) -> (i32, i32, i32) {
    %c0_i32 = arith.constant 0 : i32
    %c0_i32_0 = arith.constant 0 : i32
    %c0_i32_1 = arith.constant 0 : i32
    return %arg0, %c0_i32, %c0_i32_0 : i32, i32, i32
  }
  func.func @transform_21(%arg0: i32, %arg1: i32) -> (i32, i32, i32) {
    %c0_i32 = arith.constant 0 : i32
    %c0_i32_0 = arith.constant 0 : i32
    %c0_i32_1 = arith.constant 0 : i32
    return %arg0, %c0_i32, %c0_i32_0 : i32, i32, i32
  }
  func.func @transform_22(%arg0: i32, %arg1: i32) -> (i32, i32, i32) {
    %c0_i32 = arith.constant 0 : i32
    %c0_i32_0 = arith.constant 0 : i32
    %c0_i32_1 = arith.constant 0 : i32
    return %arg0, %c0_i32, %c0_i32_0 : i32, i32, i32
  }
  func.func @transform_23(%arg0: i32, %arg1: i32) -> (i32, i32, i32) {
    %c0_i32 = arith.constant 0 : i32
    %c0_i32_0 = arith.constant 0 : i32
    %c0_i32_1 = arith.constant 0 : i32
    return %arg0, %c0_i32, %c0_i32_0 : i32, i32, i32
  }
  func.func @transform_24(%arg0: i32, %arg1: i32) -> (i32, i32, i32) {
    %c0_i32 = arith.constant 0 : i32
    %c0_i32_0 = arith.constant 0 : i32
    %c0_i32_1 = arith.constant 0 : i32
    return %arg0, %c0_i32, %c0_i32_0 : i32, i32, i32
  }
  func.func @transform_25(%arg0: i32, %arg1: i32) -> (i32, i32, i32) {
    %c0_i32 = arith.constant 0 : i32
    %c0_i32_0 = arith.constant 0 : i32
    %c0_i32_1 = arith.constant 0 : i32
    return %arg0, %c0_i32, %c0_i32_0 : i32, i32, i32
  }
  func.func @transform_26(%arg0: i32, %arg1: i32) -> (i32, i32, i32) {
    %c0_i32 = arith.constant 0 : i32
    %c0_i32_0 = arith.constant 0 : i32
    %c0_i32_1 = arith.constant 0 : i32
    return %arg0, %c0_i32, %c0_i32_0 : i32, i32, i32
  }
  func.func @transform_27(%arg0: i32, %arg1: i32) -> (i32, i32, i32) {
    %c0_i32 = arith.constant 0 : i32
    %c0_i32_0 = arith.constant 0 : i32
    %c0_i32_1 = arith.constant 0 : i32
    return %arg0, %c0_i32, %c0_i32_0 : i32, i32, i32
  }
  func.func @transform_28(%arg0: i32, %arg1: i32) -> (i32, i32, i32) {
    %c0_i32 = arith.constant 0 : i32
    %c0_i32_0 = arith.constant 0 : i32
    %c0_i32_1 = arith.constant 0 : i32
    return %arg0, %c0_i32, %c0_i32_0 : i32, i32, i32
  }
  func.func @transform_29(%arg0: i32, %arg1: i32) -> (i32, i32) {
    %c0_i32 = arith.constant 0 : i32
    %c0_i32_0 = arith.constant 0 : i32
    %c0_i32_1 = arith.constant 0 : i32
    return %c0_i32, %c0_i32_0 : i32, i32
  }
  func.func @transform_30(%arg0: i32, %arg1: i32) -> (i32, i32) {
    %c0_i32 = arith.constant 0 : i32
    %c0_i32_0 = arith.constant 0 : i32
    %c0_i32_1 = arith.constant 0 : i32
    return %c0_i32, %c0_i32_0 : i32, i32
  }
  func.func @transform_31(%arg0: i32, %arg1: i32) -> (i32, i32) {
    %c0_i32 = arith.constant 0 : i32
    %c0_i32_0 = arith.constant 0 : i32
    %c0_i32_1 = arith.constant 0 : i32
    return %c0_i32, %c0_i32_0 : i32, i32
  }
  func.func @transform_32(%arg0: i32, %arg1: i32) -> (i32, i32) {
    %c0_i32 = arith.constant 0 : i32
    %c0_i32_0 = arith.constant 0 : i32
    %c0_i32_1 = arith.constant 0 : i32
    return %c0_i32, %c0_i32_0 : i32, i32
  }
  func.func @transform_33(%arg0: i32, %arg1: i32) -> (i32, i32) {
    %c0_i32 = arith.constant 0 : i32
    %c0_i32_0 = arith.constant 0 : i32
    %c0_i32_1 = arith.constant 0 : i32
    return %c0_i32, %c0_i32_0 : i32, i32
  }
  func.func @transform_34(%arg0: i32, %arg1: i32) -> (i32, i32) {
    %c0_i32 = arith.constant 0 : i32
    %c0_i32_0 = arith.constant 0 : i32
    %c0_i32_1 = arith.constant 0 : i32
    return %c0_i32, %c0_i32_0 : i32, i32
  }
  func.func @transform_35(%arg0: i32, %arg1: i32) -> (i32, i32) {
    %c0_i32 = arith.constant 0 : i32
    %c0_i32_0 = arith.constant 0 : i32
    %c0_i32_1 = arith.constant 0 : i32
    return %c0_i32, %c0_i32_0 : i32, i32
  }
  func.func @transform_36(%arg0: i32, %arg1: i32) -> (i32, i32) {
    %c0_i32 = arith.constant 0 : i32
    %c0_i32_0 = arith.constant 0 : i32
    %c0_i32_1 = arith.constant 0 : i32
    return %c0_i32, %c0_i32_0 : i32, i32
  }
  func.func @transform_37(%arg0: i32, %arg1: i32) -> (i32, i32) {
    %c0_i32 = arith.constant 0 : i32
    %c0_i32_0 = arith.constant 0 : i32
    %c0_i32_1 = arith.constant 0 : i32
    return %c0_i32, %c0_i32_0 : i32, i32
  }
}

</mosaic_0001>

<llo_original>
// kernel: tpu_custom_call.1
$region0: #{tpu_custom_call.1}
  #allocation0 [shape = 'u32[]', space=smem, size = 0x4, offset = 0x4, fixed_abs, tag = 'smem constant byte address 0x4 - core index']
  #allocation1 [shape = 'u32[72,128]{1,0:T(1,128)}', space=vmem, size = 0x9000, scoped, tag = 'internal scratch']
  #allocation2 [shape = 'f32[16,256]{1,0:T(8,128)}', space=vmem, size = 0x4000, scoped, tag = 'scratch operand']
  #allocation3 [shape = 'f32[16,256]{1,0:T(8,128)}', space=vmem, size = 0x4000, scoped, tag = 'scratch operand']
  %s0 = inlined_call_operand.smem [shape: u32[38], index: -1, kind: input, shape index: {}]
  %s1 = sld [smem:[%s0]]
  %s2 = scalar_lea.smem %s0, 1
  %s3 = sld [smem:[%s2]]
  %s4 = scalar_lea.smem %s0, 2
  %s5 = sld [smem:[%s4]]
  %s6 = scalar_lea.smem %s0, 3
  %s7 = sld [smem:[%s6]]
  %s8 = scalar_lea.smem %s0, 4
  %s9 = sld [smem:[%s8]]
  %s10 = scalar_lea.smem %s0, 5
  %s11 = sld [smem:[%s10]]
  %s12 = scalar_lea.smem %s0, 6
  %s13 = sld [smem:[%s12]]
  %s14 = scalar_lea.smem %s0, 7
  %s15 = sld [smem:[%s14]]
  %s16 = scalar_lea.smem %s0, 8
  %s17 = sld [smem:[%s16]]
  %s18 = scalar_lea.smem %s0, 9
  %s19 = sld [smem:[%s18]]
  %s20 = scalar_lea.smem %s0, 10
  %s21 = sld [smem:[%s20]]
  %s22 = scalar_lea.smem %s0, 11
  %s23 = sld [smem:[%s22]]
  %s24 = scalar_lea.smem %s0, 12
  %s25 = sld [smem:[%s24]]
  %s26 = scalar_lea.smem %s0, 13
  %s27 = sld [smem:[%s26]]
  %s28 = scalar_lea.smem %s0, 14
  %s29 = sld [smem:[%s28]]
  %s30 = scalar_lea.smem %s0, 15
  %s31 = sld [smem:[%s30]]
  %s32 = scalar_lea.smem %s0, 16
  %s33 = sld [smem:[%s32]]
  %s34 = scalar_lea.smem %s0, 17
  %s35 = sld [smem:[%s34]]
  %s36 = scalar_lea.smem %s0, 18
  %s37 = sld [smem:[%s36]]
  %s38 = scalar_lea.smem %s0, 19
  %s39 = sld [smem:[%s38]]
  %s40 = scalar_lea.smem %s0, 20
  %s41 = sld [smem:[%s40]]
  %s42 = scalar_lea.smem %s0, 21
  %s43 = sld [smem:[%s42]]
  %s44 = scalar_lea.smem %s0, 22
  %s45 = sld [smem:[%s44]]
  %s46 = scalar_lea.smem %s0, 23
  %s47 = sld [smem:[%s46]]
  %s48 = scalar_lea.smem %s0, 24
  %s49 = sld [smem:[%s48]]
  %s50 = scalar_lea.smem %s0, 25
  %s51 = sld [smem:[%s50]]
  %s52 = scalar_lea.smem %s0, 26
  %s53 = sld [smem:[%s52]]
  %s54 = scalar_lea.smem %s0, 27
  %s55 = sld [smem:[%s54]]
  %s56 = scalar_lea.smem %s0, 28
  %s57 = sld [smem:[%s56]]
  %s58 = scalar_lea.smem %s0, 29
  %s59 = sld [smem:[%s58]]
  %s60 = scalar_lea.smem %s0, 30
  %s61 = sld [smem:[%s60]]
  %s62 = scalar_lea.smem %s0, 31
  %s63 = sld [smem:[%s62]]
  %s64 = scalar_lea.smem %s0, 32
  %s65 = sld [smem:[%s64]]
  %s66 = scalar_lea.smem %s0, 33
  %s67 = sld [smem:[%s66]]
  %s68 = scalar_lea.smem %s0, 34
  %s69 = sld [smem:[%s68]]
  %s70 = scalar_lea.smem %s0, 35
  %s71 = sld [smem:[%s70]]
  %s72 = scalar_lea.smem %s0, 36
  %s73 = sld [smem:[%s72]]
  %s74 = scalar_lea.smem %s0, 37
  %s75 = sld [smem:[%s74]]
  %76 = xla_tuple %s73, %s75
  %s77 = sld [smem:[#allocation0]]
  $region281: #{tpu_custom_call.1} parent=0
    _
  %s79 = ssub.s32 1, %s77
  %s80 = scalar_select 0, %s79, %s77
  $region1: #{tpu_custom_call.1} parent=0
    #allocation4 [shape = 'u8[8192]{0}', space=vmem, size = 0x2000, scoped, tag = 'input window, operand 0, single buffered']
    #allocation5 [shape = 's32[2]{0}', space=sflag, size = 0x8, scoped, tag = 'scoped memory for tpu_custom_call.1']
    #allocation6 [shape = 's32[2]{0}', space=sflag, size = 0x8, scoped, tag = 'scoped memory for tpu_custom_call.1']
    #allocation7 [shape = 'u8[8192]{0}', space=vmem, size = 0x2000, scoped, tag = 'input window, operand 2, single buffered']
    #allocation8 [shape = 's32[1]{0}', space=sflag, size = 0x4, scoped, tag = 'scoped memory for tpu_custom_call.1']
    #allocation9 [shape = 'u8[1024]{0}', space=vmem, size = 0x400, scoped, tag = 'input window, operand 8']
    #allocation10 [shape = 'u8[1024]{0}', space=vmem, size = 0x400, scoped, tag = 'input window, operand 9']
    #allocation11 [shape = 'u8[4096]{0}', space=vmem, size = 0x1000, scoped, tag = 'input window, operand 10, single buffered']
    #allocation12 [shape = 'u8[512]{0}', space=vmem, size = 0x400, scoped, tag = 'input window, operand 11, single buffered']
    #allocation13 [shape = 's32[1]{0}', space=sflag, size = 0x4, scoped, tag = 'scoped memory for tpu_custom_call.1']
    #allocation14 [shape = 'u8[512]{0}', space=vmem, size = 0x400, scoped, tag = 'input window, operand 12, single buffered']
    #allocation15 [shape = 'u8[512]{0}', space=vmem, size = 0x400, scoped, tag = 'input window, operand 13, single buffered']
    #allocation16 [shape = 's32[1]{0}', space=sflag, size = 0x4, scoped, tag = 'scoped memory for tpu_custom_call.1']
    #allocation17 [shape = 'u8[65536]{0}', space=vmem, size = 0x10000, scoped, tag = 'input window, operand 14']
    #allocation18 [shape = 'u8[65536]{0}', space=vmem, size = 0x10000, scoped, tag = 'input window, operand 15']
    #allocation19 [shape = 'u8[65536]{0}', space=vmem, size = 0x10000, scoped, tag = 'input window, operand 17']
    #allocation20 [shape = 'u8[65536]{0}', space=vmem, size = 0x10000, scoped, tag = 'input window, operand 19']
    #allocation21 [shape = 'u8[65536]{0}', space=vmem, size = 0x10000, scoped, tag = 'input window, operand 21']
    #allocation22 [shape = 'u8[1024]{0}', space=vmem, size = 0x400, scoped, tag = 'input window, operand 23']
    #allocation23 [shape = 'u8[65536]{0}', space=vmem, size = 0x10000, scoped, tag = 'input window, operand 24']
    #allocation24 [shape = 'u8[65536]{0}', space=vmem, size = 0x10000, scoped, tag = 'input window, operand 25']
    #allocation25 [shape = 'u8[65536]{0}', space=vmem, size = 0x10000, scoped, tag = 'input window, operand 27']
    #allocation26 [shape = 'u8[1024]{0}', space=vmem, size = 0x400, scoped, tag = 'input window, operand 28']
    #allocation27 [shape = 'u8[32768]{0}', space=vmem, size = 0x8000, scoped, tag = 'input window, operand 32, single buffered']
    #allocation28 [shape = 'u8[32768]{0}', space=vmem, size = 0x8000, scoped, tag = 'input window, operand 34, single buffered']
    #allocation29 [shape = 'u8[8192]{0}', space=vmem, size = 0x2000, scoped, tag = 'output window, operand 0, single buffered']
    #allocation30 [shape = 'u8[8192]{0}', space=vmem, size = 0x2000, scoped, tag = 'output window, operand 1, single buffered']
    #allocation31 [shape = 's32[1]{0}', space=sflag, size = 0x4, scoped, tag = 'scoped memory for tpu_custom_call.1']
    %81 = vsyncpa [#allocation5], 0
    %82 = vsyncpa [#allocation8], 0
    %83 = vsyncpa [#allocation13], 0
    %84 = vsyncpa [#allocation16], 0
    %85 = vsyncpa [#allocation6], 0
    %86 = vsyncpa [#allocation31], 0
    loop: start=0, step=1, limit=8
    $region2: #{tpu_custom_call.1} parent=1 // loop_pre_header
      _
    $region3: #{tpu_custom_call.1} parent=1 // loop_header
      %s88 = sphi 0, %s92
      %p89 = scmp.ge.s32.totalorder %s88, 8
      %s95 = sphi 0, %s107
      %s96 = sphi 0, %s103
      %s97 = sphi 0, %s95
      %s98 = sphi 0, %s96
      %s99 = sphi 0, %s97
      %s100 = sphi 0, %s98
      %s108 = sphi 0, %s108
      %s110 = sphi 0, %s108
      %s111 = sphi 0, %s110
      %s125 = sphi 0, %s111
      %s131 = sphi 0, %s133
      %s134 = sphi 0, %s131
      %s135 = sphi 0, %s134
      %s151 = sphi 0, %s135
      %s155 = sphi 0, %s155
      %s157 = sphi 0, %s155
      %s158 = sphi 0, %s157
      %s172 = sphi 0, %s158
      %s178 = sphi 0, %s180
      %s181 = sphi 0, %s178
      %s182 = sphi 0, %s181
      %s198 = sphi 0, %s182
      %s204 = sphi 0, %s206
      %s207 = sphi 0, %s204
      %s208 = sphi 0, %s207
      %s224 = sphi 0, %s208
      %s228 = sphi 0, %s228
      %s230 = sphi 0, %s228
      %s231 = sphi 0, %s230
      %s245 = sphi 0, %s231
      %s249 = sphi 0, %s249
      %s251 = sphi 0, %s249
      %s252 = sphi 0, %s251
      %s266 = sphi 0, %s252
      %s270 = sphi 0, %s270
      %s272 = sphi 0, %s270
      %s273 = sphi 0, %s272
      %s287 = sphi 0, %s273
      %s293 = sphi 0, %s295
      %s296 = sphi 0, %s293
      %s297 = sphi 0, %s296
      %s313 = sphi 0, %s297
      %s319 = sphi 0, %s321
      %s322 = sphi 0, %s319
      %s323 = sphi 0, %s322
      %s339 = sphi 0, %s323
      %s343 = sphi 0, %s343
      %s345 = sphi 0, %s343
      %s346 = sphi 0, %s345
      %s360 = sphi 0, %s346
      %s364 = sphi 0, %s364
      %s366 = sphi 0, %s364
      %s367 = sphi 0, %s366
      %s381 = sphi 0, %s367
      %s385 = sphi 0, %s385
      %s387 = sphi 0, %s385
      %s388 = sphi 0, %s387
      %s402 = sphi 0, %s388
      %s406 = sphi 0, %s406
      %s408 = sphi 0, %s406
      %s409 = sphi 0, %s408
      %s423 = sphi 0, %s409
      %s429 = sphi 0, %s431
      %s432 = sphi 0, %s429
      %s433 = sphi 0, %s432
      %s449 = sphi 0, %s433
      %s455 = sphi 0, %s457
      %s458 = sphi 0, %s455
      %s459 = sphi 0, %s458
      %s475 = sphi 0, %s459
      %s481 = sphi 0, %s483
      %s484 = sphi 0, %s481
      %s485 = sphi 0, %s484
      %s501 = sphi 0, %s485
      %s507 = sphi 0, %s509
      %s510 = sphi 0, %s507
      %s511 = sphi 0, %s510
      %s527 = sphi 0, %s511
      %s533 = sphi 0, %s535
      %s536 = sphi 0, %s533
      %s537 = sphi 0, %s536
      %s553 = sphi 0, %s537
      %s559 = sphi 0, %s561
      %s562 = sphi 0, %s559
      %s563 = sphi 0, %s562
      %s579 = sphi 0, %s563
      %s585 = sphi 0, %s587
      %s588 = sphi 0, %s585
      %s589 = sphi 0, %s588
      %s605 = sphi 0, %s589
      %s611 = sphi 0, %s613
      %s614 = sphi 0, %s611
      %s615 = sphi 0, %s614
      %s631 = sphi 0, %s615
      %s637 = sphi 0, %s639
      %s640 = sphi 0, %s637
      %s641 = sphi 0, %s640
      %s657 = sphi 0, %s641
      %s663 = sphi 0, %s665
      %s666 = sphi 0, %s663
      %s667 = sphi 0, %s666
      %s683 = sphi 0, %s667
      %s689 = sphi 0, %s691
      %s692 = sphi 0, %s689
      %s693 = sphi 0, %s692
      %s709 = sphi 0, %s693
      %s715 = sphi 0, %s717
      %s718 = sphi 0, %s715
      %s719 = sphi 0, %s718
      %s735 = sphi 0, %s719
      %s741 = sphi 0, %s743
      %s744 = sphi 0, %s741
      %s745 = sphi 0, %s744
      %s761 = sphi 0, %s745
      %s767 = sphi 0, %s769
      %s770 = sphi 0, %s767
      %s771 = sphi 0, %s770
      %s787 = sphi 0, %s771
      %s793 = sphi 0, %s795
      %s796 = sphi 0, %s793
      %s797 = sphi 0, %s796
      %s813 = sphi 0, %s797
      %s817 = sphi 0, %s817
      %s819 = sphi 0, %s817
      %s820 = sphi 0, %s819
      %s834 = sphi 0, %s820
      %s838 = sphi 0, %s838
      %s840 = sphi 0, %s838
      %s841 = sphi 0, %s840
      %s855 = sphi 0, %s841
      %s859 = sphi 0, %s859
      %s861 = sphi 0, %s859
      %s862 = sphi 0, %s861
      %s876 = sphi 0, %s862
      %s880 = sphi 0, %s880
      %s882 = sphi 0, %s880
      %s883 = sphi 0, %s882
      %s897 = sphi 0, %s883
      %s901 = sphi 0, %s901
      %s903 = sphi 0, %s901
      %s904 = sphi 0, %s903
      %s918 = sphi 0, %s904
      %s922 = sphi 0, %s922
      %s924 = sphi 0, %s922
      %s925 = sphi 0, %s924
      %s939 = sphi 0, %s925
      %s943 = sphi 0, %s943
      %s945 = sphi 0, %s943
      %s946 = sphi 0, %s945
      %s960 = sphi 0, %s946
      %s964 = sphi 0, %s964
      %s966 = sphi 0, %s964
      %s967 = sphi 0, %s966
      %s981 = sphi 0, %s967
      %s985 = sphi 0, %s985
      %s987 = sphi 0, %s985
      %s988 = sphi 0, %s987
      %s1002 = sphi 0, %s988
    $region4: #{tpu_custom_call.1} parent=1 // loop_header_branch
      %91 = sbr.rel (%p89) target = $region8
    $region5: #{tpu_custom_call.1} parent=1 // loop_body
      %s93 = ssub.s32 %s88, 1
      %s94 = ssub.s32 %s88, 2
      %s101 = sadd.s32 1, %s96
      %p102 = scmp.ge.s32.totalorder %s101, 2
      %s103 = scalar_select %p102, 0, %s101
      %s104 = sadd.s32 1, %s95
      %s105 = scalar_select %p102, %s104, %s95
      %p106 = scmp.ge.s32.totalorder %s105, 3
      %s107 = scalar_select %p106, 0, %s105
      %s109 = sadd.s32 %s108, 1
      %p112 = scmp.eq.s32.totalorder %s88, 5
      %p113 = scmp.ne.s32.totalorder %s108, %s110
      %p114 = scmp.eq.s32.totalorder %s88, 0
      %p115 = por %p113, %p114
      %p116 = scmp.ne.s32.totalorder %s108, %s110
      %p117 = scmp.eq.s32.totalorder %s93, 5
      %p118 = por %p116, %p117
      %p119 = scmp.ne.s32.totalorder %s110, %s111
      %p120 = scmp.eq.s32.totalorder %s93, 0
      %p121 = por %p119, %p120
      %p122 = scmp.ne.s32.totalorder %s110, %s111
      %p123 = scmp.eq.s32.totalorder %s94, 5
      %p124 = por %p122, %p123
      %p126 = scmp.ne.s32.totalorder %s111, %s125
      %p127 = scmp.eq.s32.totalorder %s94, 0
      %p128 = por %p126, %p127
      %s129 = ssub.s32 %s96, %s103
      %p130 = scmp.eq.s32.totalorder %s129, 0
      %s132 = sadd.s32 %s131, 1
      %s133 = scalar_select %p130, %s131, %s132
      %p136 = pneg %p130
      %p137 = scmp.eq.s32.totalorder %s88, 5
      %p138 = por %p136, %p137
      %p139 = scmp.ne.s32.totalorder %s131, %s134
      %p140 = scmp.eq.s32.totalorder %s88, 0
      %p141 = por %p139, %p140
      %p142 = scmp.ne.s32.totalorder %s131, %s134
      %p143 = scmp.eq.s32.totalorder %s93, 5
      %p144 = por %p142, %p143
      %p145 = scmp.ne.s32.totalorder %s134, %s135
      %p146 = scmp.eq.s32.totalorder %s93, 0
      %p147 = por %p145, %p146
      %p148 = scmp.ne.s32.totalorder %s134, %s135
      %p149 = scmp.eq.s32.totalorder %s94, 5
      %p150 = por %p148, %p149
      %p152 = scmp.ne.s32.totalorder %s135, %s151
      %p153 = scmp.eq.s32.totalorder %s94, 0
      %p154 = por %p152, %p153
      %s156 = sadd.s32 %s155, 1
      %p159 = scmp.eq.s32.totalorder %s88, 5
      %p160 = scmp.ne.s32.totalorder %s155, %s157
      %p161 = scmp.eq.s32.totalorder %s88, 0
      %p162 = por %p160, %p161
      %p163 = scmp.ne.s32.totalorder %s155, %s157
      %p164 = scmp.eq.s32.totalorder %s93, 5
      %p165 = por %p163, %p164
      %p166 = scmp.ne.s32.totalorder %s157, %s158
      %p167 = scmp.eq.s32.totalorder %s93, 0
      %p168 = por %p166, %p167
      %p169 = scmp.ne.s32.totalorder %s157, %s158
      %p170 = scmp.eq.s32.totalorder %s94, 5
      %p171 = por %p169, %p170
      %p173 = scmp.ne.s32.totalorder %s158, %s172
      %p174 = scmp.eq.s32.totalorder %s94, 0
      %p175 = por %p173, %p174
      %s176 = ssub.s32 %s96, %s103
      %p177 = scmp.eq.s32.totalorder %s176, 0
      %s179 = sadd.s32 %s178, 1
      %s180 = scalar_select %p177, %s178, %s179
      %p183 = pneg %p177
      %p184 = scmp.eq.s32.totalorder %s88, 5
      %p185 = por %p183, %p184
      %p186 = scmp.ne.s32.totalorder %s178, %s181
      %p187 = scmp.eq.s32.totalorder %s88, 0
      %p188 = por %p186, %p187
      %p189 = scmp.ne.s32.totalorder %s178, %s181
      %p190 = scmp.eq.s32.totalorder %s93, 5
      %p191 = por %p189, %p190
      %p192 = scmp.ne.s32.totalorder %s181, %s182
      %p193 = scmp.eq.s32.totalorder %s93, 0
      %p194 = por %p192, %p193
      %p195 = scmp.ne.s32.totalorder %s181, %s182
      %p196 = scmp.eq.s32.totalorder %s94, 5
      %p197 = por %p195, %p196
      %p199 = scmp.ne.s32.totalorder %s182, %s198
      %p200 = scmp.eq.s32.totalorder %s94, 0
      %p201 = por %p199, %p200
      %s202 = ssub.s32 %s96, %s103
      %p203 = scmp.eq.s32.totalorder %s202, 0
      %s205 = sadd.s32 %s204, 1
      %s206 = scalar_select %p203, %s204, %s205
      %p209 = pneg %p203
      %p210 = scmp.eq.s32.totalorder %s88, 5
      %p211 = por %p209, %p210
      %p212 = scmp.ne.s32.totalorder %s204, %s207
      %p213 = scmp.eq.s32.totalorder %s88, 0
      %p214 = por %p212, %p213
      %p215 = scmp.ne.s32.totalorder %s204, %s207
      %p216 = scmp.eq.s32.totalorder %s93, 5
      %p217 = por %p215, %p216
      %p218 = scmp.ne.s32.totalorder %s207, %s208
      %p219 = scmp.eq.s32.totalorder %s93, 0
      %p220 = por %p218, %p219
      %p221 = scmp.ne.s32.totalorder %s207, %s208
      %p222 = scmp.eq.s32.totalorder %s94, 5
      %p223 = por %p221, %p222
      %p225 = scmp.ne.s32.totalorder %s208, %s224
      %p226 = scmp.eq.s32.totalorder %s94, 0
      %p227 = por %p225, %p226
      %s229 = sadd.s32 %s228, 1
      %p232 = scmp.eq.s32.totalorder %s88, 5
      %p233 = scmp.ne.s32.totalorder %s228, %s230
      %p234 = scmp.eq.s32.totalorder %s88, 0
      %p235 = por %p233, %p234
      %p236 = scmp.ne.s32.totalorder %s228, %s230
      %p237 = scmp.eq.s32.totalorder %s93, 5
      %p238 = por %p236, %p237
      %p239 = scmp.ne.s32.totalorder %s230, %s231
      %p240 = scmp.eq.s32.totalorder %s93, 0
      %p241 = por %p239, %p240
      %p242 = scmp.ne.s32.totalorder %s230, %s231
      %p243 = scmp.eq.s32.totalorder %s94, 5
      %p244 = por %p242, %p243
      %p246 = scmp.ne.s32.totalorder %s231, %s245
      %p247 = scmp.eq.s32.totalorder %s94, 0
      %p248 = por %p246, %p247
      %s250 = sadd.s32 %s249, 1
      %p253 = scmp.eq.s32.totalorder %s88, 5
      %p254 = scmp.ne.s32.totalorder %s249, %s251
      %p255 = scmp.eq.s32.totalorder %s88, 0
      %p256 = por %p254, %p255
      %p257 = scmp.ne.s32.totalorder %s249, %s251
      %p258 = scmp.eq.s32.totalorder %s93, 5
      %p259 = por %p257, %p258
      %p260 = scmp.ne.s32.totalorder %s251, %s252
      %p261 = scmp.eq.s32.totalorder %s93, 0
      %p262 = por %p260, %p261
      %p263 = scmp.ne.s32.totalorder %s251, %s252
      %p264 = scmp.eq.s32.totalorder %s94, 5
      %p265 = por %p263, %p264
      %p267 = scmp.ne.s32.totalorder %s252, %s266
      %p268 = scmp.eq.s32.totalorder %s94, 0
      %p269 = por %p267, %p268
      %s271 = sadd.s32 %s270, 1
      %p274 = scmp.eq.s32.totalorder %s88, 5
      %p275 = scmp.ne.s32.totalorder %s270, %s272
      %p276 = scmp.eq.s32.totalorder %s88, 0
      %p277 = por %p275, %p276
      %p278 = scmp.ne.s32.totalorder %s270, %s272
      %p279 = scmp.eq.s32.totalorder %s93, 5
      %p280 = por %p278, %p279
      %p281 = scmp.ne.s32.totalorder %s272, %s273
      %p282 = scmp.eq.s32.totalorder %s93, 0
      %p283 = por %p281, %p282
      %p284 = scmp.ne.s32.totalorder %s272, %s273
      %p285 = scmp.eq.s32.totalorder %s94, 5
      %p286 = por %p284, %p285
      %p288 = scmp.ne.s32.totalorder %s273, %s287
      %p289 = scmp.eq.s32.totalorder %s94, 0
      %p290 = por %p288, %p289
      %s291 = ssub.s32 %s95, %s107
      %p292 = scmp.eq.s32.totalorder %s291, 0
      %s294 = sadd.s32 %s293, 1
      %s295 = scalar_select %p292, %s293, %s294
      %p298 = pneg %p292
      %p299 = scmp.eq.s32.totalorder %s88, 5
      %p300 = por %p298, %p299
      %p301 = scmp.ne.s32.totalorder %s293, %s296
      %p302 = scmp.eq.s32.totalorder %s88, 0
      %p303 = por %p301, %p302
      %p304 = scmp.ne.s32.totalorder %s293, %s296
      %p305 = scmp.eq.s32.totalorder %s93, 5
      %p306 = por %p304, %p305
      %p307 = scmp.ne.s32.totalorder %s296, %s297
      %p308 = scmp.eq.s32.totalorder %s93, 0
      %p309 = por %p307, %p308
      %p310 = scmp.ne.s32.totalorder %s296, %s297
      %p311 = scmp.eq.s32.totalorder %s94, 5
      %p312 = por %p310, %p311
      %p314 = scmp.ne.s32.totalorder %s297, %s313
      %p315 = scmp.eq.s32.totalorder %s94, 0
      %p316 = por %p314, %p315
      %s317 = ssub.s32 %s95, %s107
      %p318 = scmp.eq.s32.totalorder %s317, 0
      %s320 = sadd.s32 %s319, 1
      %s321 = scalar_select %p318, %s319, %s320
      %p324 = pneg %p318
      %p325 = scmp.eq.s32.totalorder %s88, 5
      %p326 = por %p324, %p325
      %p327 = scmp.ne.s32.totalorder %s319, %s322
      %p328 = scmp.eq.s32.totalorder %s88, 0
      %p329 = por %p327, %p328
      %p330 = scmp.ne.s32.totalorder %s319, %s322
      %p331 = scmp.eq.s32.totalorder %s93, 5
      %p332 = por %p330, %p331
      %p333 = scmp.ne.s32.totalorder %s322, %s323
      %p334 = scmp.eq.s32.totalorder %s93, 0
      %p335 = por %p333, %p334
      %p336 = scmp.ne.s32.totalorder %s322, %s323
      %p337 = scmp.eq.s32.totalorder %s94, 5
      %p338 = por %p336, %p337
      %p340 = scmp.ne.s32.totalorder %s323, %s339
      %p341 = scmp.eq.s32.totalorder %s94, 0
      %p342 = por %p340, %p341
      %s344 = sadd.s32 %s343, 1
      %p347 = scmp.eq.s32.totalorder %s88, 5
      %p348 = scmp.ne.s32.totalorder %s343, %s345
      %p349 = scmp.eq.s32.totalorder %s88, 0
      %p350 = por %p348, %p349
      %p351 = scmp.ne.s32.totalorder %s343, %s345
      %p352 = scmp.eq.s32.totalorder %s93, 5
      %p353 = por %p351, %p352
      %p354 = scmp.ne.s32.totalorder %s345, %s346
      %p355 = scmp.eq.s32.totalorder %s93, 0
      %p356 = por %p354, %p355
      %p357 = scmp.ne.s32.totalorder %s345, %s346
      %p358 = scmp.eq.s32.totalorder %s94, 5
      %p359 = por %p357, %p358
      %p361 = scmp.ne.s32.totalorder %s346, %s360
      %p362 = scmp.eq.s32.totalorder %s94, 0
      %p363 = por %p361, %p362
      %s365 = sadd.s32 %s364, 1
      %p368 = scmp.eq.s32.totalorder %s88, 5
      %p369 = scmp.ne.s32.totalorder %s364, %s366
      %p370 = scmp.eq.s32.totalorder %s88, 0
      %p371 = por %p369, %p370
      %p372 = scmp.ne.s32.totalorder %s364, %s366
      %p373 = scmp.eq.s32.totalorder %s93, 5
      %p374 = por %p372, %p373
      %p375 = scmp.ne.s32.totalorder %s366, %s367
      %p376 = scmp.eq.s32.totalorder %s93, 0
      %p377 = por %p375, %p376
      %p378 = scmp.ne.s32.totalorder %s366, %s367
      %p379 = scmp.eq.s32.totalorder %s94, 5
      %p380 = por %p378, %p379
      %p382 = scmp.ne.s32.totalorder %s367, %s381
      %p383 = scmp.eq.s32.totalorder %s94, 0
      %p384 = por %p382, %p383
      %s386 = sadd.s32 %s385, 1
      %p389 = scmp.eq.s32.totalorder %s88, 5
      %p390 = scmp.ne.s32.totalorder %s385, %s387
      %p391 = scmp.eq.s32.totalorder %s88, 0
      %p392 = por %p390, %p391
      %p393 = scmp.ne.s32.totalorder %s385, %s387
      %p394 = scmp.eq.s32.totalorder %s93, 5
      %p395 = por %p393, %p394
      %p396 = scmp.ne.s32.totalorder %s387, %s388
      %p397 = scmp.eq.s32.totalorder %s93, 0
      %p398 = por %p396, %p397
      %p399 = scmp.ne.s32.totalorder %s387, %s388
      %p400 = scmp.eq.s32.totalorder %s94, 5
      %p401 = por %p399, %p400
      %p403 = scmp.ne.s32.totalorder %s388, %s402
      %p404 = scmp.eq.s32.totalorder %s94, 0
      %p405 = por %p403, %p404
      %s407 = sadd.s32 %s406, 1
      %p410 = scmp.eq.s32.totalorder %s88, 5
      %p411 = scmp.ne.s32.totalorder %s406, %s408
      %p412 = scmp.eq.s32.totalorder %s88, 0
      %p413 = por %p411, %p412
      %p414 = scmp.ne.s32.totalorder %s406, %s408
      %p415 = scmp.eq.s32.totalorder %s93, 5
      %p416 = por %p414, %p415
      %p417 = scmp.ne.s32.totalorder %s408, %s409
      %p418 = scmp.eq.s32.totalorder %s93, 0
      %p419 = por %p417, %p418
      %p420 = scmp.ne.s32.totalorder %s408, %s409
      %p421 = scmp.eq.s32.totalorder %s94, 5
      %p422 = por %p420, %p421
      %p424 = scmp.ne.s32.totalorder %s409, %s423
      %p425 = scmp.eq.s32.totalorder %s94, 0
      %p426 = por %p424, %p425
      %s427 = ssub.s32 %s95, %s107
      %p428 = scmp.eq.s32.totalorder %s427, 0
      %s430 = sadd.s32 %s429, 1
      %s431 = scalar_select %p428, %s429, %s430
      %p434 = pneg %p428
      %p435 = scmp.eq.s32.totalorder %s88, 5
      %p436 = por %p434, %p435
      %p437 = scmp.ne.s32.totalorder %s429, %s432
      %p438 = scmp.eq.s32.totalorder %s88, 0
      %p439 = por %p437, %p438
      %p440 = scmp.ne.s32.totalorder %s429, %s432
      %p441 = scmp.eq.s32.totalorder %s93, 5
      %p442 = por %p440, %p441
      %p443 = scmp.ne.s32.totalorder %s432, %s433
      %p444 = scmp.eq.s32.totalorder %s93, 0
      %p445 = por %p443, %p444
      %p446 = scmp.ne.s32.totalorder %s432, %s433
      %p447 = scmp.eq.s32.totalorder %s94, 5
      %p448 = por %p446, %p447
      %p450 = scmp.ne.s32.totalorder %s433, %s449
      %p451 = scmp.eq.s32.totalorder %s94, 0
      %p452 = por %p450, %p451
      %s453 = ssub.s32 %s95, %s107
      %p454 = scmp.eq.s32.totalorder %s453, 0
      %s456 = sadd.s32 %s455, 1
      %s457 = scalar_select %p454, %s455, %s456
      %p460 = pneg %p454
      %p461 = scmp.eq.s32.totalorder %s88, 5
      %p462 = por %p460, %p461
      %p463 = scmp.ne.s32.totalorder %s455, %s458
      %p464 = scmp.eq.s32.totalorder %s88, 0
      %p465 = por %p463, %p464
      %p466 = scmp.ne.s32.totalorder %s455, %s458
      %p467 = scmp.eq.s32.totalorder %s93, 5
      %p468 = por %p466, %p467
      %p469 = scmp.ne.s32.totalorder %s458, %s459
      %p470 = scmp.eq.s32.totalorder %s93, 0
      %p471 = por %p469, %p470
      %p472 = scmp.ne.s32.totalorder %s458, %s459
      %p473 = scmp.eq.s32.totalorder %s94, 5
      %p474 = por %p472, %p473
      %p476 = scmp.ne.s32.totalorder %s459, %s475
      %p477 = scmp.eq.s32.totalorder %s94, 0
      %p478 = por %p476, %p477
      %s479 = ssub.s32 %s95, %s107
      %p480 = scmp.eq.s32.totalorder %s479, 0
      %s482 = sadd.s32 %s481, 1
      %s483 = scalar_select %p480, %s481, %s482
      %p486 = pneg %p480
      %p487 = scmp.eq.s32.totalorder %s88, 5
      %p488 = por %p486, %p487
      %p489 = scmp.ne.s32.totalorder %s481, %s484
      %p490 = scmp.eq.s32.totalorder %s88, 0
      %p491 = por %p489, %p490
      %p492 = scmp.ne.s32.totalorder %s481, %s484
      %p493 = scmp.eq.s32.totalorder %s93, 5
      %p494 = por %p492, %p493
      %p495 = scmp.ne.s32.totalorder %s484, %s485
      %p496 = scmp.eq.s32.totalorder %s93, 0
      %p497 = por %p495, %p496
      %p498 = scmp.ne.s32.totalorder %s484, %s485
      %p499 = scmp.eq.s32.totalorder %s94, 5
      %p500 = por %p498, %p499
      %p502 = scmp.ne.s32.totalorder %s485, %s501
      %p503 = scmp.eq.s32.totalorder %s94, 0
      %p504 = por %p502, %p503
      %s505 = ssub.s32 %s95, %s107
      %p506 = scmp.eq.s32.totalorder %s505, 0
      %s508 = sadd.s32 %s507, 1
      %s509 = scalar_select %p506, %s507, %s508
      %p512 = pneg %p506
      %p513 = scmp.eq.s32.totalorder %s88, 5
      %p514 = por %p512, %p513
      %p515 = scmp.ne.s32.totalorder %s507, %s510
      %p516 = scmp.eq.s32.totalorder %s88, 0
      %p517 = por %p515, %p516
      %p518 = scmp.ne.s32.totalorder %s507, %s510
      %p519 = scmp.eq.s32.totalorder %s93, 5
      %p520 = por %p518, %p519
      %p521 = scmp.ne.s32.totalorder %s510, %s511
      %p522 = scmp.eq.s32.totalorder %s93, 0
      %p523 = por %p521, %p522
      %p524 = scmp.ne.s32.totalorder %s510, %s511
      %p525 = scmp.eq.s32.totalorder %s94, 5
      %p526 = por %p524, %p525
      %p528 = scmp.ne.s32.totalorder %s511, %s527
      %p529 = scmp.eq.s32.totalorder %s94, 0
      %p530 = por %p528, %p529
      %s531 = ssub.s32 %s95, %s107
      %p532 = scmp.eq.s32.totalorder %s531, 0
      %s534 = sadd.s32 %s533, 1
      %s535 = scalar_select %p532, %s533, %s534
      %p538 = pneg %p532
      %p539 = scmp.eq.s32.totalorder %s88, 5
      %p540 = por %p538, %p539
      %p541 = scmp.ne.s32.totalorder %s533, %s536
      %p542 = scmp.eq.s32.totalorder %s88, 0
      %p543 = por %p541, %p542
      %p544 = scmp.ne.s32.totalorder %s533, %s536
      %p545 = scmp.eq.s32.totalorder %s93, 5
      %p546 = por %p544, %p545
      %p547 = scmp.ne.s32.totalorder %s536, %s537
      %p548 = scmp.eq.s32.totalorder %s93, 0
      %p549 = por %p547, %p548
      %p550 = scmp.ne.s32.totalorder %s536, %s537
      %p551 = scmp.eq.s32.totalorder %s94, 5
      %p552 = por %p550, %p551
      %p554 = scmp.ne.s32.totalorder %s537, %s553
      %p555 = scmp.eq.s32.totalorder %s94, 0
      %p556 = por %p554, %p555
      %s557 = ssub.s32 %s95, %s107
      %p558 = scmp.eq.s32.totalorder %s557, 0
      %s560 = sadd.s32 %s559, 1
      %s561 = scalar_select %p558, %s559, %s560
      %p564 = pneg %p558
      %p565 = scmp.eq.s32.totalorder %s88, 5
      %p566 = por %p564, %p565
      %p567 = scmp.ne.s32.totalorder %s559, %s562
      %p568 = scmp.eq.s32.totalorder %s88, 0
      %p569 = por %p567, %p568
      %p570 = scmp.ne.s32.totalorder %s559, %s562
      %p571 = scmp.eq.s32.totalorder %s93, 5
      %p572 = por %p570, %p571
      %p573 = scmp.ne.s32.totalorder %s562, %s563
      %p574 = scmp.eq.s32.totalorder %s93, 0
      %p575 = por %p573, %p574
      %p576 = scmp.ne.s32.totalorder %s562, %s563
      %p577 = scmp.eq.s32.totalorder %s94, 5
      %p578 = por %p576, %p577
      %p580 = scmp.ne.s32.totalorder %s563, %s579
      %p581 = scmp.eq.s32.totalorder %s94, 0
      %p582 = por %p580, %p581
      %s583 = ssub.s32 %s95, %s107
      %p584 = scmp.eq.s32.totalorder %s583, 0
      %s586 = sadd.s32 %s585, 1
      %s587 = scalar_select %p584, %s585, %s586
      %p590 = pneg %p584
      %p591 = scmp.eq.s32.totalorder %s88, 5
      %p592 = por %p590, %p591
      %p593 = scmp.ne.s32.totalorder %s585, %s588
      %p594 = scmp.eq.s32.totalorder %s88, 0
      %p595 = por %p593, %p594
      %p596 = scmp.ne.s32.totalorder %s585, %s588
      %p597 = scmp.eq.s32.totalorder %s93, 5
      %p598 = por %p596, %p597
      %p599 = scmp.ne.s32.totalorder %s588, %s589
      %p600 = scmp.eq.s32.totalorder %s93, 0
      %p601 = por %p599, %p600
      %p602 = scmp.ne.s32.totalorder %s588, %s589
      %p603 = scmp.eq.s32.totalorder %s94, 5
      %p604 = por %p602, %p603
      %p606 = scmp.ne.s32.totalorder %s589, %s605
      %p607 = scmp.eq.s32.totalorder %s94, 0
      %p608 = por %p606, %p607
      %s609 = ssub.s32 %s95, %s107
      %p610 = scmp.eq.s32.totalorder %s609, 0
      %s612 = sadd.s32 %s611, 1
      %s613 = scalar_select %p610, %s611, %s612
      %p616 = pneg %p610
      %p617 = scmp.eq.s32.totalorder %s88, 5
      %p618 = por %p616, %p617
      %p619 = scmp.ne.s32.totalorder %s611, %s614
      %p620 = scmp.eq.s32.totalorder %s88, 0
      %p621 = por %p619, %p620
      %p622 = scmp.ne.s32.totalorder %s611, %s614
      %p623 = scmp.eq.s32.totalorder %s93, 5
      %p624 = por %p622, %p623
      %p625 = scmp.ne.s32.totalorder %s614, %s615
      %p626 = scmp.eq.s32.totalorder %s93, 0
      %p627 = por %p625, %p626
      %p628 = scmp.ne.s32.totalorder %s614, %s615
      %p629 = scmp.eq.s32.totalorder %s94, 5
      %p630 = por %p628, %p629
      %p632 = scmp.ne.s32.totalorder %s615, %s631
      %p633 = scmp.eq.s32.totalorder %s94, 0
      %p634 = por %p632, %p633
      %s635 = ssub.s32 %s95, %s107
      %p636 = scmp.eq.s32.totalorder %s635, 0
      %s638 = sadd.s32 %s637, 1
      %s639 = scalar_select %p636, %s637, %s638
      %p642 = pneg %p636
      %p643 = scmp.eq.s32.totalorder %s88, 5
      %p644 = por %p642, %p643
      %p645 = scmp.ne.s32.totalorder %s637, %s640
      %p646 = scmp.eq.s32.totalorder %s88, 0
      %p647 = por %p645, %p646
      %p648 = scmp.ne.s32.totalorder %s637, %s640
      %p649 = scmp.eq.s32.totalorder %s93, 5
      %p650 = por %p648, %p649
      %p651 = scmp.ne.s32.totalorder %s640, %s641
      %p652 = scmp.eq.s32.totalorder %s93, 0
      %p653 = por %p651, %p652
      %p654 = scmp.ne.s32.totalorder %s640, %s641
      %p655 = scmp.eq.s32.totalorder %s94, 5
      %p656 = por %p654, %p655
      %p658 = scmp.ne.s32.totalorder %s641, %s657
      %p659 = scmp.eq.s32.totalorder %s94, 0
      %p660 = por %p658, %p659
      %s661 = ssub.s32 %s95, %s107
      %p662 = scmp.eq.s32.totalorder %s661, 0
      %s664 = sadd.s32 %s663, 1
      %s665 = scalar_select %p662, %s663, %s664
      %p668 = pneg %p662
      %p669 = scmp.eq.s32.totalorder %s88, 5
      %p670 = por %p668, %p669
      %p671 = scmp.ne.s32.totalorder %s663, %s666
      %p672 = scmp.eq.s32.totalorder %s88, 0
      %p673 = por %p671, %p672
      %p674 = scmp.ne.s32.totalorder %s663, %s666
      %p675 = scmp.eq.s32.totalorder %s93, 5
      %p676 = por %p674, %p675
      %p677 = scmp.ne.s32.totalorder %s666, %s667
      %p678 = scmp.eq.s32.totalorder %s93, 0
      %p679 = por %p677, %p678
      %p680 = scmp.ne.s32.totalorder %s666, %s667
      %p681 = scmp.eq.s32.totalorder %s94, 5
      %p682 = por %p680, %p681
      %p684 = scmp.ne.s32.totalorder %s667, %s683
      %p685 = scmp.eq.s32.totalorder %s94, 0
      %p686 = por %p684, %p685
      %s687 = ssub.s32 %s95, %s107
      %p688 = scmp.eq.s32.totalorder %s687, 0
      %s690 = sadd.s32 %s689, 1
      %s691 = scalar_select %p688, %s689, %s690
      %p694 = pneg %p688
      %p695 = scmp.eq.s32.totalorder %s88, 5
      %p696 = por %p694, %p695
      %p697 = scmp.ne.s32.totalorder %s689, %s692
      %p698 = scmp.eq.s32.totalorder %s88, 0
      %p699 = por %p697, %p698
      %p700 = scmp.ne.s32.totalorder %s689, %s692
      %p701 = scmp.eq.s32.totalorder %s93, 5
      %p702 = por %p700, %p701
      %p703 = scmp.ne.s32.totalorder %s692, %s693
      %p704 = scmp.eq.s32.totalorder %s93, 0
      %p705 = por %p703, %p704
      %p706 = scmp.ne.s32.totalorder %s692, %s693
      %p707 = scmp.eq.s32.totalorder %s94, 5
      %p708 = por %p706, %p707
      %p710 = scmp.ne.s32.totalorder %s693, %s709
      %p711 = scmp.eq.s32.totalorder %s94, 0
      %p712 = por %p710, %p711
      %s713 = ssub.s32 %s95, %s107
      %p714 = scmp.eq.s32.totalorder %s713, 0
      %s716 = sadd.s32 %s715, 1
      %s717 = scalar_select %p714, %s715, %s716
      %p720 = pneg %p714
      %p721 = scmp.eq.s32.totalorder %s88, 5
      %p722 = por %p720, %p721
      %p723 = scmp.ne.s32.totalorder %s715, %s718
      %p724 = scmp.eq.s32.totalorder %s88, 0
      %p725 = por %p723, %p724
      %p726 = scmp.ne.s32.totalorder %s715, %s718
      %p727 = scmp.eq.s32.totalorder %s93, 5
      %p728 = por %p726, %p727
      %p729 = scmp.ne.s32.totalorder %s718, %s719
      %p730 = scmp.eq.s32.totalorder %s93, 0
      %p731 = por %p729, %p730
      %p732 = scmp.ne.s32.totalorder %s718, %s719
      %p733 = scmp.eq.s32.totalorder %s94, 5
      %p734 = por %p732, %p733
      %p736 = scmp.ne.s32.totalorder %s719, %s735
      %p737 = scmp.eq.s32.totalorder %s94, 0
      %p738 = por %p736, %p737
      %s739 = ssub.s32 %s95, %s107
      %p740 = scmp.eq.s32.totalorder %s739, 0
      %s742 = sadd.s32 %s741, 1
      %s743 = scalar_select %p740, %s741, %s742
      %p746 = pneg %p740
      %p747 = scmp.eq.s32.totalorder %s88, 5
      %p748 = por %p746, %p747
      %p749 = scmp.ne.s32.totalorder %s741, %s744
      %p750 = scmp.eq.s32.totalorder %s88, 0
      %p751 = por %p749, %p750
      %p752 = scmp.ne.s32.totalorder %s741, %s744
      %p753 = scmp.eq.s32.totalorder %s93, 5
      %p754 = por %p752, %p753
      %p755 = scmp.ne.s32.totalorder %s744, %s745
      %p756 = scmp.eq.s32.totalorder %s93, 0
      %p757 = por %p755, %p756
      %p758 = scmp.ne.s32.totalorder %s744, %s745
      %p759 = scmp.eq.s32.totalorder %s94, 5
      %p760 = por %p758, %p759
      %p762 = scmp.ne.s32.totalorder %s745, %s761
      %p763 = scmp.eq.s32.totalorder %s94, 0
      %p764 = por %p762, %p763
      %s765 = ssub.s32 %s95, %s107
      %p766 = scmp.eq.s32.totalorder %s765, 0
      %s768 = sadd.s32 %s767, 1
      %s769 = scalar_select %p766, %s767, %s768
      %p772 = pneg %p766
      %p773 = scmp.eq.s32.totalorder %s88, 5
      %p774 = por %p772, %p773
      %p775 = scmp.ne.s32.totalorder %s767, %s770
      %p776 = scmp.eq.s32.totalorder %s88, 0
      %p777 = por %p775, %p776
      %p778 = scmp.ne.s32.totalorder %s767, %s770
      %p779 = scmp.eq.s32.totalorder %s93, 5
      %p780 = por %p778, %p779
      %p781 = scmp.ne.s32.totalorder %s770, %s771
      %p782 = scmp.eq.s32.totalorder %s93, 0
      %p783 = por %p781, %p782
      %p784 = scmp.ne.s32.totalorder %s770, %s771
      %p785 = scmp.eq.s32.totalorder %s94, 5
      %p786 = por %p784, %p785
      %p788 = scmp.ne.s32.totalorder %s771, %s787
      %p789 = scmp.eq.s32.totalorder %s94, 0
      %p790 = por %p788, %p789
      %s791 = ssub.s32 %s95, %s107
      %p792 = scmp.eq.s32.totalorder %s791, 0
      %s794 = sadd.s32 %s793, 1
      %s795 = scalar_select %p792, %s793, %s794
      %p798 = pneg %p792
      %p799 = scmp.eq.s32.totalorder %s88, 5
      %p800 = por %p798, %p799
      %p801 = scmp.ne.s32.totalorder %s793, %s796
      %p802 = scmp.eq.s32.totalorder %s88, 0
      %p803 = por %p801, %p802
      %p804 = scmp.ne.s32.totalorder %s793, %s796
      %p805 = scmp.eq.s32.totalorder %s93, 5
      %p806 = por %p804, %p805
      %p807 = scmp.ne.s32.totalorder %s796, %s797
      %p808 = scmp.eq.s32.totalorder %s93, 0
      %p809 = por %p807, %p808
      %p810 = scmp.ne.s32.totalorder %s796, %s797
      %p811 = scmp.eq.s32.totalorder %s94, 5
      %p812 = por %p810, %p811
      %p814 = scmp.ne.s32.totalorder %s797, %s813
      %p815 = scmp.eq.s32.totalorder %s94, 0
      %p816 = por %p814, %p815
      %s818 = sadd.s32 %s817, 1
      %p821 = scmp.eq.s32.totalorder %s88, 5
      %p822 = scmp.ne.s32.totalorder %s817, %s819
      %p823 = scmp.eq.s32.totalorder %s88, 0
      %p824 = por %p822, %p823
      %p825 = scmp.ne.s32.totalorder %s817, %s819
      %p826 = scmp.eq.s32.totalorder %s93, 5
      %p827 = por %p825, %p826
      %p828 = scmp.ne.s32.totalorder %s819, %s820
      %p829 = scmp.eq.s32.totalorder %s93, 0
      %p830 = por %p828, %p829
      %p831 = scmp.ne.s32.totalorder %s819, %s820
      %p832 = scmp.eq.s32.totalorder %s94, 5
      %p833 = por %p831, %p832
      %p835 = scmp.ne.s32.totalorder %s820, %s834
      %p836 = scmp.eq.s32.totalorder %s94, 0
      %p837 = por %p835, %p836
      %s839 = sadd.s32 %s838, 1
      %p842 = scmp.eq.s32.totalorder %s88, 5
      %p843 = scmp.ne.s32.totalorder %s838, %s840
      %p844 = scmp.eq.s32.totalorder %s88, 0
      %p845 = por %p843, %p844
      %p846 = scmp.ne.s32.totalorder %s838, %s840
      %p847 = scmp.eq.s32.totalorder %s93, 5
      %p848 = por %p846, %p847
      %p849 = scmp.ne.s32.totalorder %s840, %s841
      %p850 = scmp.eq.s32.totalorder %s93, 0
      %p851 = por %p849, %p850
      %p852 = scmp.ne.s32.totalorder %s840, %s841
      %p853 = scmp.eq.s32.totalorder %s94, 5
      %p854 = por %p852, %p853
      %p856 = scmp.ne.s32.totalorder %s841, %s855
      %p857 = scmp.eq.s32.totalorder %s94, 0
      %p858 = por %p856, %p857
      %s860 = sadd.s32 %s859, 1
      %p863 = scmp.eq.s32.totalorder %s88, 5
      %p864 = scmp.ne.s32.totalorder %s859, %s861
      %p865 = scmp.eq.s32.totalorder %s88, 0
      %p866 = por %p864, %p865
      %p867 = scmp.ne.s32.totalorder %s859, %s861
      %p868 = scmp.eq.s32.totalorder %s93, 5
      %p869 = por %p867, %p868
      %p870 = scmp.ne.s32.totalorder %s861, %s862
      %p871 = scmp.eq.s32.totalorder %s93, 0
      %p872 = por %p870, %p871
      %p873 = scmp.ne.s32.totalorder %s861, %s862
      %p874 = scmp.eq.s32.totalorder %s94, 5
      %p875 = por %p873, %p874
      %p877 = scmp.ne.s32.totalorder %s862, %s876
      %p878 = scmp.eq.s32.totalorder %s94, 0
      %p879 = por %p877, %p878
      %s881 = sadd.s32 %s880, 1
      %p884 = scmp.eq.s32.totalorder %s88, 5
      %p885 = scmp.ne.s32.totalorder %s880, %s882
      %p886 = scmp.eq.s32.totalorder %s88, 0
      %p887 = por %p885, %p886
      %p888 = scmp.ne.s32.totalorder %s880, %s882
      %p889 = scmp.eq.s32.totalorder %s93, 5
      %p890 = por %p888, %p889
      %p891 = scmp.ne.s32.totalorder %s882, %s883
      %p892 = scmp.eq.s32.totalorder %s93, 0
      %p893 = por %p891, %p892
      %p894 = scmp.ne.s32.totalorder %s882, %s883
      %p895 = scmp.eq.s32.totalorder %s94, 5
      %p896 = por %p894, %p895
      %p898 = scmp.ne.s32.totalorder %s883, %s897
      %p899 = scmp.eq.s32.totalorder %s94, 0
      %p900 = por %p898, %p899
      %s902 = sadd.s32 %s901, 1
      %p905 = scmp.eq.s32.totalorder %s88, 5
      %p906 = scmp.ne.s32.totalorder %s901, %s903
      %p907 = scmp.eq.s32.totalorder %s88, 0
      %p908 = por %p906, %p907
      %p909 = scmp.ne.s32.totalorder %s901, %s903
      %p910 = scmp.eq.s32.totalorder %s93, 5
      %p911 = por %p909, %p910
      %p912 = scmp.ne.s32.totalorder %s903, %s904
      %p913 = scmp.eq.s32.totalorder %s93, 0
      %p914 = por %p912, %p913
      %p915 = scmp.ne.s32.totalorder %s903, %s904
      %p916 = scmp.eq.s32.totalorder %s94, 5
      %p917 = por %p915, %p916
      %p919 = scmp.ne.s32.totalorder %s904, %s918
      %p920 = scmp.eq.s32.totalorder %s94, 0
      %p921 = por %p919, %p920
      %s923 = sadd.s32 %s922, 1
      %p926 = scmp.eq.s32.totalorder %s88, 5
      %p927 = scmp.ne.s32.totalorder %s922, %s924
      %p928 = scmp.eq.s32.totalorder %s88, 0
      %p929 = por %p927, %p928
      %p930 = scmp.ne.s32.totalorder %s922, %s924
      %p931 = scmp.eq.s32.totalorder %s93, 5
      %p932 = por %p930, %p931
      %p933 = scmp.ne.s32.totalorder %s924, %s925
      %p934 = scmp.eq.s32.totalorder %s93, 0
      %p935 = por %p933, %p934
      %p936 = scmp.ne.s32.totalorder %s924, %s925
      %p937 = scmp.eq.s32.totalorder %s94, 5
      %p938 = por %p936, %p937
      %p940 = scmp.ne.s32.totalorder %s925, %s939
      %p941 = scmp.eq.s32.totalorder %s94, 0
      %p942 = por %p940, %p941
      %s944 = sadd.s32 %s943, 1
      %p947 = scmp.eq.s32.totalorder %s88, 5
      %p948 = scmp.ne.s32.totalorder %s943, %s945
      %p949 = scmp.eq.s32.totalorder %s88, 0
      %p950 = por %p948, %p949
      %p951 = scmp.ne.s32.totalorder %s943, %s945
      %p952 = scmp.eq.s32.totalorder %s93, 5
      %p953 = por %p951, %p952
      %p954 = scmp.ne.s32.totalorder %s945, %s946
      %p955 = scmp.eq.s32.totalorder %s93, 0
      %p956 = por %p954, %p955
      %p957 = scmp.ne.s32.totalorder %s945, %s946
      %p958 = scmp.eq.s32.totalorder %s94, 5
      %p959 = por %p957, %p958
      %p961 = scmp.ne.s32.totalorder %s946, %s960
      %p962 = scmp.eq.s32.totalorder %s94, 0
      %p963 = por %p961, %p962
      %s965 = sadd.s32 %s964, 1
      %p968 = scmp.eq.s32.totalorder %s88, 5
      %p969 = scmp.ne.s32.totalorder %s964, %s966
      %p970 = scmp.eq.s32.totalorder %s88, 0
      %p971 = por %p969, %p970
      %p972 = scmp.ne.s32.totalorder %s964, %s966
      %p973 = scmp.eq.s32.totalorder %s93, 5
      %p974 = por %p972, %p973
      %p975 = scmp.ne.s32.totalorder %s966, %s967
      %p976 = scmp.eq.s32.totalorder %s93, 0
      %p977 = por %p975, %p976
      %p978 = scmp.ne.s32.totalorder %s966, %s967
      %p979 = scmp.eq.s32.totalorder %s94, 5
      %p980 = por %p978, %p979
      %p982 = scmp.ne.s32.totalorder %s967, %s981
      %p983 = scmp.eq.s32.totalorder %s94, 0
      %p984 = por %p982, %p983
      %s986 = sadd.s32 %s985, 1
      %p989 = scmp.eq.s32.totalorder %s88, 5
      %p990 = scmp.ne.s32.totalorder %s985, %s987
      %p991 = scmp.eq.s32.totalorder %s88, 0
      %p992 = por %p990, %p991
      %p993 = scmp.ne.s32.totalorder %s985, %s987
      %p994 = scmp.eq.s32.totalorder %s93, 5
      %p995 = por %p993, %p994
      %p996 = scmp.ne.s32.totalorder %s987, %s988
      %p997 = scmp.eq.s32.totalorder %s93, 0
      %p998 = por %p996, %p997
      %p999 = scmp.ne.s32.totalorder %s987, %s988
      %p1000 = scmp.eq.s32.totalorder %s94, 5
      %p1001 = por %p999, %p1000
      %p1003 = scmp.ne.s32.totalorder %s988, %s1002
      %p1004 = scmp.eq.s32.totalorder %s94, 0
      %p1005 = por %p1003, %p1004
      %p1006 = scmp.le.s32.totalorder 1, %s88
      %p1007 = scmp.lt.s32.totalorder %s88, 7
      %p1008 = pnand %p1006, %p1007
      %p1009 = pneg %p1008
      // Predicated region
      $region9: #{tpu_custom_call.1} parent=5 // pred_check
        _
      $region10: #{tpu_custom_call.1} parent=5 // pred_check_branch
        %1011 = sbr.rel (%p1008) target = $region12
      $region11: #{tpu_custom_call.1} parent=5 // pred_region
        %s1012 = ssub.s32 %s88, 1
        // Predicated region
        $region13: #{tpu_custom_call.1} parent=11 // pred_check
          %p1013 = pneg %p121
        $region14: #{tpu_custom_call.1} parent=11 // pred_check_branch
          %1015 = sbr.rel (%p1013) target = $region16
        $region15: #{tpu_custom_call.1} parent=11 // pred_region
          %1017 = vsyncadd [#allocation5], 0
          %s1018 = sshll.u32 %s1, 4
          %s1019 = int_to_ptr.hbm [resolvable:$true] %s1018
          %s1020 = sshll.u32 [#allocation4], 4
          %s1021 = int_to_ptr.vmem [resolvable:$true] %s1020
          %1026 = dma.hbm_to_vmem [thread:$0]  %s1019, 256, %s1021, [#allocation5], 128, 128, 8
        $region16: #{tpu_custom_call.1} parent=11 // pred_fallthru
          _
        // Predicated region
        $region17: #{tpu_custom_call.1} parent=11 // pred_check
          %p1027 = pneg %p168
        $region18: #{tpu_custom_call.1} parent=11 // pred_check_branch
          %1029 = sbr.rel (%p1027) target = $region20
        $region19: #{tpu_custom_call.1} parent=11 // pred_region
          %1031 = vsyncadd [#allocation8], 0
          %s1032 = sshll.u32 %s5, 4
          %s1033 = int_to_ptr.hbm [resolvable:$true] %s1032
          %s1034 = sshll.u32 [#allocation7], 4
          %s1035 = int_to_ptr.vmem [resolvable:$true] %s1034
          %1040 = dma.hbm_to_vmem [thread:$0]  %s1033, 256, %s1035, [#allocation8], 128, 128, 8
        $region20: #{tpu_custom_call.1} parent=11 // pred_fallthru
          _
        // Predicated region
        $region21: #{tpu_custom_call.1} parent=11 // pred_check
          %p1041 = pneg %p241
        $region22: #{tpu_custom_call.1} parent=11 // pred_check_branch
          %1043 = sbr.rel (%p1041) target = $region24
        $region23: #{tpu_custom_call.1} parent=11 // pred_region
          _
        $region24: #{tpu_custom_call.1} parent=11 // pred_fallthru
          _
        // Predicated region
        $region25: #{tpu_custom_call.1} parent=11 // pred_check
          %p1044 = pneg %p262
        $region26: #{tpu_custom_call.1} parent=11 // pred_check_branch
          %1046 = sbr.rel (%p1044) target = $region28
        $region27: #{tpu_custom_call.1} parent=11 // pred_region
          _
        $region28: #{tpu_custom_call.1} parent=11 // pred_fallthru
          _
        // Predicated region
        $region29: #{tpu_custom_call.1} parent=11 // pred_check
          %p1047 = pneg %p283
        $region30: #{tpu_custom_call.1} parent=11 // pred_check_branch
          %1049 = sbr.rel (%p1047) target = $region32
        $region31: #{tpu_custom_call.1} parent=11 // pred_region
          _
        $region32: #{tpu_custom_call.1} parent=11 // pred_fallthru
          _
        // Predicated region
        $region33: #{tpu_custom_call.1} parent=11 // pred_check
          %p1050 = pneg %p356
        $region34: #{tpu_custom_call.1} parent=11 // pred_check_branch
          %1052 = sbr.rel (%p1050) target = $region36
        $region35: #{tpu_custom_call.1} parent=11 // pred_region
          %1054 = vsyncadd [#allocation8], 0
          %s1055 = sshll.u32 %s21, 4
          %s1056 = int_to_ptr.hbm [resolvable:$true] %s1055
          %s1057 = sshll.u32 [#allocation11], 4
          %s1058 = int_to_ptr.vmem [resolvable:$true] %s1057
          %1063 = dma.hbm_to_vmem [thread:$0]  %s1056, 128, %s1058, [#allocation8], 64, 64, 4
        $region36: #{tpu_custom_call.1} parent=11 // pred_fallthru
          _
        // Predicated region
        $region37: #{tpu_custom_call.1} parent=11 // pred_check
          %p1064 = pneg %p377
        $region38: #{tpu_custom_call.1} parent=11 // pred_check_branch
          %1066 = sbr.rel (%p1064) target = $region40
        $region39: #{tpu_custom_call.1} parent=11 // pred_region
          %1068 = vsyncadd [#allocation13], 0
          %s1070 = sshll.u32 %s23, 4
          %s1071 = int_to_ptr.hbm [resolvable:$true] %s1070
          %s1072 = sshll.u32 [#allocation12], 4
          %s1073 = int_to_ptr.vmem [resolvable:$true] %s1072
          %1075 = dma.hbm_to_vmem [thread:$0]  %s1071, 16, %s1073, [#allocation13]
        $region40: #{tpu_custom_call.1} parent=11 // pred_fallthru
          _
        // Predicated region
        $region41: #{tpu_custom_call.1} parent=11 // pred_check
          %p1076 = pneg %p398
        $region42: #{tpu_custom_call.1} parent=11 // pred_check_branch
          %1078 = sbr.rel (%p1076) target = $region44
        $region43: #{tpu_custom_call.1} parent=11 // pred_region
          %1080 = vsyncadd [#allocation13], 0
          %s1082 = sshll.u32 %s25, 4
          %s1083 = int_to_ptr.hbm [resolvable:$true] %s1082
          %s1084 = sshll.u32 [#allocation14], 4
          %s1085 = int_to_ptr.vmem [resolvable:$true] %s1084
          %1087 = dma.hbm_to_vmem [thread:$0]  %s1083, 16, %s1085, [#allocation13]
        $region44: #{tpu_custom_call.1} parent=11 // pred_fallthru
          _
        // Predicated region
        $region45: #{tpu_custom_call.1} parent=11 // pred_check
          %p1088 = pneg %p419
        $region46: #{tpu_custom_call.1} parent=11 // pred_check_branch
          %1090 = sbr.rel (%p1088) target = $region48
        $region47: #{tpu_custom_call.1} parent=11 // pred_region
          %1092 = vsyncadd [#allocation16], 0
          %s1094 = sshll.u32 %s27, 4
          %s1095 = int_to_ptr.hbm [resolvable:$true] %s1094
          %s1096 = sshll.u32 [#allocation15], 4
          %s1097 = int_to_ptr.vmem [resolvable:$true] %s1096
          %1099 = dma.hbm_to_vmem [thread:$0]  %s1095, 16, %s1097, [#allocation16]
        $region48: #{tpu_custom_call.1} parent=11 // pred_fallthru
          _
        // Predicated region
        $region49: #{tpu_custom_call.1} parent=11 // pred_check
          %p1100 = pneg %p830
        $region50: #{tpu_custom_call.1} parent=11 // pred_check_branch
          %1102 = sbr.rel (%p1100) target = $region52
        $region51: #{tpu_custom_call.1} parent=11 // pred_region
          _
        $region52: #{tpu_custom_call.1} parent=11 // pred_fallthru
          _
        // Predicated region
        $region53: #{tpu_custom_call.1} parent=11 // pred_check
          %p1103 = pneg %p851
        $region54: #{tpu_custom_call.1} parent=11 // pred_check_branch
          %1105 = sbr.rel (%p1103) target = $region56
        $region55: #{tpu_custom_call.1} parent=11 // pred_region
          _
        $region56: #{tpu_custom_call.1} parent=11 // pred_fallthru
          _
        // Predicated region
        $region57: #{tpu_custom_call.1} parent=11 // pred_check
          %p1106 = pneg %p872
        $region58: #{tpu_custom_call.1} parent=11 // pred_check_branch
          %1108 = sbr.rel (%p1106) target = $region60
        $region59: #{tpu_custom_call.1} parent=11 // pred_region
          _
        $region60: #{tpu_custom_call.1} parent=11 // pred_fallthru
          _
        // Predicated region
        $region61: #{tpu_custom_call.1} parent=11 // pred_check
          %p1109 = pneg %p893
        $region62: #{tpu_custom_call.1} parent=11 // pred_check_branch
          %1111 = sbr.rel (%p1109) target = $region64
        $region63: #{tpu_custom_call.1} parent=11 // pred_region
          %1113 = vsyncadd [#allocation8], 0
          %s1114 = sshll.u32 %s65, 4
          %s1115 = int_to_ptr.hbm [resolvable:$true] %s1114
          %s1116 = sshll.u32 [#allocation27], 4
          %s1117 = int_to_ptr.vmem [resolvable:$true] %s1116
          %1122 = dma.hbm_to_vmem [thread:$0]  %s1115, 1024, %s1117, [#allocation8], 64, 64, 4
        $region64: #{tpu_custom_call.1} parent=11 // pred_fallthru
          _
        // Predicated region
        $region65: #{tpu_custom_call.1} parent=11 // pred_check
          %p1123 = pneg %p914
        $region66: #{tpu_custom_call.1} parent=11 // pred_check_branch
          %1125 = sbr.rel (%p1123) target = $region68
        $region67: #{tpu_custom_call.1} parent=11 // pred_region
          _
        $region68: #{tpu_custom_call.1} parent=11 // pred_fallthru
          _
        // Predicated region
        $region69: #{tpu_custom_call.1} parent=11 // pred_check
          %p1126 = pneg %p935
        $region70: #{tpu_custom_call.1} parent=11 // pred_check_branch
          %1128 = sbr.rel (%p1126) target = $region72
        $region71: #{tpu_custom_call.1} parent=11 // pred_region
          %1130 = vsyncadd [#allocation13], 0
          %s1131 = sshll.u32 %s69, 4
          %s1132 = int_to_ptr.hbm [resolvable:$true] %s1131
          %s1133 = sshll.u32 [#allocation28], 4
          %s1134 = int_to_ptr.vmem [resolvable:$true] %s1133
          %1139 = dma.hbm_to_vmem [thread:$0]  %s1132, 1024, %s1134, [#allocation13], 64, 64, 4
        $region72: #{tpu_custom_call.1} parent=11 // pred_fallthru
          _
        // Predicated region
        $region73: #{tpu_custom_call.1} parent=11 // pred_check
          %p1140 = pneg %p956
        $region74: #{tpu_custom_call.1} parent=11 // pred_check_branch
          %1142 = sbr.rel (%p1140) target = $region76
        $region75: #{tpu_custom_call.1} parent=11 // pred_region
          _
        $region76: #{tpu_custom_call.1} parent=11 // pred_fallthru
          _
      $region12: #{tpu_custom_call.1} parent=5 // pred_fallthru
        _
      %p1143 = scmp.lt.s32.totalorder %s88, 6
      // Predicated region
      $region77: #{tpu_custom_call.1} parent=5 // pred_check
        %p1144 = pneg %p1143
      $region78: #{tpu_custom_call.1} parent=5 // pred_check_branch
        %1146 = sbr.rel (%p1144) target = $region80
      $region79: #{tpu_custom_call.1} parent=5 // pred_region
        // Predicated region
        $region81: #{tpu_custom_call.1} parent=79 // pred_check
          %p1147 = pneg %p141
        $region82: #{tpu_custom_call.1} parent=79 // pred_check_branch
          %1149 = sbr.rel (%p1147) target = $region84
        $region83: #{tpu_custom_call.1} parent=79 // pred_region
          %s1150 = smul.u32 2, %s96
          %p1151 = scmp.lt.s32.totalorder %s1150, 3
          %s1152 = scalar_select %p1151, %s1150, 3
          %s1153 = smul.addr %s1152, 8
          %s1154 = scalar_lea.vmem %s3, %s1153
          %s1155 = smul.u32 2, %s96
        $region84: #{tpu_custom_call.1} parent=79 // pred_fallthru
          _
        // Predicated region
        $region85: #{tpu_custom_call.1} parent=79 // pred_check
          %p1156 = pneg %p188
        $region86: #{tpu_custom_call.1} parent=79 // pred_check_branch
          %1158 = sbr.rel (%p1156) target = $region88
        $region87: #{tpu_custom_call.1} parent=79 // pred_region
          %s1159 = smul.u32 2, %s96
          %p1160 = scmp.lt.s32.totalorder %s1159, 3
          %s1161 = scalar_select %p1160, %s1159, 3
          %s1162 = smul.addr %s1161, 4
          %s1163 = scalar_lea.vmem %s7, %s1162
          %s1164 = smul.u32 2, %s96
        $region88: #{tpu_custom_call.1} parent=79 // pred_fallthru
          _
        // Predicated region
        $region89: #{tpu_custom_call.1} parent=79 // pred_check
          %p1165 = pneg %p214
        $region90: #{tpu_custom_call.1} parent=79 // pred_check_branch
          %1167 = sbr.rel (%p1165) target = $region92
        $region91: #{tpu_custom_call.1} parent=79 // pred_region
          %s1168 = smul.u32 2, %s96
          %p1169 = scmp.lt.s32.totalorder %s1168, 3
          %s1170 = scalar_select %p1169, %s1168, 3
          %s1171 = smul.addr %s1170, 4
          %s1172 = scalar_lea.vmem %s9, %s1171
          %s1173 = smul.u32 2, %s96
        $region92: #{tpu_custom_call.1} parent=79 // pred_fallthru
          _
        // Predicated region
        $region93: #{tpu_custom_call.1} parent=79 // pred_check
          %p1174 = pneg %p303
        $region94: #{tpu_custom_call.1} parent=79 // pred_check_branch
          %1176 = sbr.rel (%p1174) target = $region96
        $region95: #{tpu_custom_call.1} parent=79 // pred_region
          %s1177 = sand.u32 %s88, 1
          %s1178 = scalar_lea.sflag [#allocation5], %s1177
          %s1179 = sand.u32 %s293, 1
          %s1180 = scalar_lea.vmem [#allocation9], %s1179
          %1182 = vsyncadd %s1178, 0
          %s1183 = scalar_lea.hbm %s17, %s95
          %s1185 = sshll.u32 %s1183, 4
          %s1186 = int_to_ptr.hbm [resolvable:$true] %s1185
          %s1187 = sshll.u32 %s1180, 4
          %s1188 = int_to_ptr.vmem [resolvable:$true] %s1187
          %1190 = dma.hbm_to_vmem [thread:$0]  %s1186, 16, %s1188, %s1178
        $region96: #{tpu_custom_call.1} parent=79 // pred_fallthru
          _
        // Predicated region
        $region97: #{tpu_custom_call.1} parent=79 // pred_check
          %p1191 = pneg %p329
        $region98: #{tpu_custom_call.1} parent=79 // pred_check_branch
          %1193 = sbr.rel (%p1191) target = $region100
        $region99: #{tpu_custom_call.1} parent=79 // pred_region
          %s1194 = sand.u32 %s88, 1
          %s1195 = scalar_lea.sflag [#allocation5], %s1194
          %s1196 = sand.u32 %s319, 1
          %s1197 = scalar_lea.vmem [#allocation10], %s1196
          %1199 = vsyncadd %s1195, 0
          %s1200 = scalar_lea.hbm %s19, %s95
          %s1202 = sshll.u32 %s1200, 4
          %s1203 = int_to_ptr.hbm [resolvable:$true] %s1202
          %s1204 = sshll.u32 %s1197, 4
          %s1205 = int_to_ptr.vmem [resolvable:$true] %s1204
          %1207 = dma.hbm_to_vmem [thread:$0]  %s1203, 16, %s1205, %s1195
        $region100: #{tpu_custom_call.1} parent=79 // pred_fallthru
          _
        // Predicated region
        $region101: #{tpu_custom_call.1} parent=79 // pred_check
          %p1208 = pneg %p439
        $region102: #{tpu_custom_call.1} parent=79 // pred_check_branch
          %1210 = sbr.rel (%p1208) target = $region104
        $region103: #{tpu_custom_call.1} parent=79 // pred_region
          %s1211 = sand.u32 %s88, 1
          %s1212 = scalar_lea.sflag [#allocation5], %s1211
          %s1213 = sand.u32 %s429, 1
          %s1214 = smul.addr %s1213, 64
          %s1215 = scalar_lea.vmem [#allocation17], %s1214
          %1217 = vsyncadd %s1212, 0
          %s1218 = smul.addr %s95, 16
          %s1219 = smul.addr %s1218, 4
          %s1220 = scalar_lea.hbm %s29, %s1219
          %s1221 = sshll.u32 %s1220, 4
          %s1222 = int_to_ptr.hbm [resolvable:$true] %s1221
          %s1223 = sshll.u32 %s1215, 4
          %s1224 = int_to_ptr.vmem [resolvable:$true] %s1223
          %1229 = dma.hbm_to_vmem [thread:$0]  %s1222, 1024, %s1224, %s1212, 64, 64, 4
        $region104: #{tpu_custom_call.1} parent=79 // pred_fallthru
          _
        // Predicated region
        $region105: #{tpu_custom_call.1} parent=79 // pred_check
          %p1230 = pneg %p465
        $region106: #{tpu_custom_call.1} parent=79 // pred_check_branch
          %1232 = sbr.rel (%p1230) target = $region108
        $region107: #{tpu_custom_call.1} parent=79 // pred_region
          %s1233 = sand.u32 %s88, 1
          %s1234 = scalar_lea.sflag [#allocation5], %s1233
          %s1235 = sand.u32 %s455, 1
          %s1236 = smul.addr %s1235, 64
          %s1237 = scalar_lea.vmem [#allocation18], %s1236
          %1239 = vsyncadd %s1234, 0
          %s1240 = smul.addr %s95, 16
          %s1241 = smul.addr %s1240, 4
          %s1242 = scalar_lea.hbm %s31, %s1241
          %s1243 = sshll.u32 %s1242, 4
          %s1244 = int_to_ptr.hbm [resolvable:$true] %s1243
          %s1245 = sshll.u32 %s1237, 4
          %s1246 = int_to_ptr.vmem [resolvable:$true] %s1245
          %1251 = dma.hbm_to_vmem [thread:$0]  %s1244, 1024, %s1246, %s1234, 64, 64, 4
        $region108: #{tpu_custom_call.1} parent=79 // pred_fallthru
          _
        // Predicated region
        $region109: #{tpu_custom_call.1} parent=79 // pred_check
          %p1252 = pneg %p491
        $region110: #{tpu_custom_call.1} parent=79 // pred_check_branch
          %1254 = sbr.rel (%p1252) target = $region112
        $region111: #{tpu_custom_call.1} parent=79 // pred_region
          %p1255 = scmp.lt.s32.totalorder %s95, 2
          %s1256 = scalar_select %p1255, %s95, 2
          %s1257 = scalar_lea.vmem %s33, %s1256
        $region112: #{tpu_custom_call.1} parent=79 // pred_fallthru
          _
        // Predicated region
        $region113: #{tpu_custom_call.1} parent=79 // pred_check
          %p1258 = pneg %p517
        $region114: #{tpu_custom_call.1} parent=79 // pred_check_branch
          %1260 = sbr.rel (%p1258) target = $region116
        $region115: #{tpu_custom_call.1} parent=79 // pred_region
          %s1261 = sand.u32 %s88, 1
          %s1262 = scalar_lea.sflag [#allocation5], %s1261
          %s1263 = sand.u32 %s507, 1
          %s1264 = smul.addr %s1263, 64
          %s1265 = scalar_lea.vmem [#allocation19], %s1264
          %1267 = vsyncadd %s1262, 0
          %s1268 = smul.addr %s95, 16
          %s1269 = smul.addr %s1268, 4
          %s1270 = scalar_lea.hbm %s35, %s1269
          %s1271 = sshll.u32 %s1270, 4
          %s1272 = int_to_ptr.hbm [resolvable:$true] %s1271
          %s1273 = sshll.u32 %s1265, 4
          %s1274 = int_to_ptr.vmem [resolvable:$true] %s1273
          %1279 = dma.hbm_to_vmem [thread:$0]  %s1272, 1024, %s1274, %s1262, 64, 64, 4
        $region116: #{tpu_custom_call.1} parent=79 // pred_fallthru
          _
        // Predicated region
        $region117: #{tpu_custom_call.1} parent=79 // pred_check
          %p1280 = pneg %p543
        $region118: #{tpu_custom_call.1} parent=79 // pred_check_branch
          %1282 = sbr.rel (%p1280) target = $region120
        $region119: #{tpu_custom_call.1} parent=79 // pred_region
          %p1283 = scmp.lt.s32.totalorder %s95, 2
          %s1284 = scalar_select %p1283, %s95, 2
          %s1285 = scalar_lea.vmem %s37, %s1284
        $region120: #{tpu_custom_call.1} parent=79 // pred_fallthru
          _
        // Predicated region
        $region121: #{tpu_custom_call.1} parent=79 // pred_check
          %p1286 = pneg %p569
        $region122: #{tpu_custom_call.1} parent=79 // pred_check_branch
          %1288 = sbr.rel (%p1286) target = $region124
        $region123: #{tpu_custom_call.1} parent=79 // pred_region
          %s1289 = sand.u32 %s88, 1
          %s1290 = scalar_lea.sflag [#allocation5], %s1289
          %s1291 = sand.u32 %s559, 1
          %s1292 = smul.addr %s1291, 64
          %s1293 = scalar_lea.vmem [#allocation20], %s1292
          %1295 = vsyncadd %s1290, 0
          %s1296 = smul.addr %s95, 16
          %s1297 = smul.addr %s1296, 4
          %s1298 = scalar_lea.hbm %s39, %s1297
          %s1299 = sshll.u32 %s1298, 4
          %s1300 = int_to_ptr.hbm [resolvable:$true] %s1299
          %s1301 = sshll.u32 %s1293, 4
          %s1302 = int_to_ptr.vmem [resolvable:$true] %s1301
          %1307 = dma.hbm_to_vmem [thread:$0]  %s1300, 1024, %s1302, %s1290, 64, 64, 4
        $region124: #{tpu_custom_call.1} parent=79 // pred_fallthru
          _
        // Predicated region
        $region125: #{tpu_custom_call.1} parent=79 // pred_check
          %p1308 = pneg %p595
        $region126: #{tpu_custom_call.1} parent=79 // pred_check_branch
          %1310 = sbr.rel (%p1308) target = $region128
        $region127: #{tpu_custom_call.1} parent=79 // pred_region
          %p1311 = scmp.lt.s32.totalorder %s95, 2
          %s1312 = scalar_select %p1311, %s95, 2
          %s1313 = scalar_lea.vmem %s41, %s1312
        $region128: #{tpu_custom_call.1} parent=79 // pred_fallthru
          _
        // Predicated region
        $region129: #{tpu_custom_call.1} parent=79 // pred_check
          %p1314 = pneg %p621
        $region130: #{tpu_custom_call.1} parent=79 // pred_check_branch
          %1316 = sbr.rel (%p1314) target = $region132
        $region131: #{tpu_custom_call.1} parent=79 // pred_region
          %s1317 = sand.u32 %s88, 1
          %s1318 = scalar_lea.sflag [#allocation5], %s1317
          %s1319 = sand.u32 %s611, 1
          %s1320 = smul.addr %s1319, 64
          %s1321 = scalar_lea.vmem [#allocation21], %s1320
          %1323 = vsyncadd %s1318, 0
          %s1324 = smul.addr %s95, 16
          %s1325 = smul.addr %s1324, 4
          %s1326 = scalar_lea.hbm %s43, %s1325
          %s1327 = sshll.u32 %s1326, 4
          %s1328 = int_to_ptr.hbm [resolvable:$true] %s1327
          %s1329 = sshll.u32 %s1321, 4
          %s1330 = int_to_ptr.vmem [resolvable:$true] %s1329
          %1335 = dma.hbm_to_vmem [thread:$0]  %s1328, 1024, %s1330, %s1318, 64, 64, 4
        $region132: #{tpu_custom_call.1} parent=79 // pred_fallthru
          _
        // Predicated region
        $region133: #{tpu_custom_call.1} parent=79 // pred_check
          %p1336 = pneg %p647
        $region134: #{tpu_custom_call.1} parent=79 // pred_check_branch
          %1338 = sbr.rel (%p1336) target = $region136
        $region135: #{tpu_custom_call.1} parent=79 // pred_region
          %p1339 = scmp.lt.s32.totalorder %s95, 2
          %s1340 = scalar_select %p1339, %s95, 2
          %s1341 = scalar_lea.vmem %s45, %s1340
        $region136: #{tpu_custom_call.1} parent=79 // pred_fallthru
          _
        // Predicated region
        $region137: #{tpu_custom_call.1} parent=79 // pred_check
          %p1342 = pneg %p673
        $region138: #{tpu_custom_call.1} parent=79 // pred_check_branch
          %1344 = sbr.rel (%p1342) target = $region140
        $region139: #{tpu_custom_call.1} parent=79 // pred_region
          %s1345 = sand.u32 %s88, 1
          %s1346 = scalar_lea.sflag [#allocation5], %s1345
          %s1347 = sand.u32 %s663, 1
          %s1348 = scalar_lea.vmem [#allocation22], %s1347
          %1350 = vsyncadd %s1346, 0
          %s1351 = scalar_lea.hbm %s47, %s95
          %s1353 = sshll.u32 %s1351, 4
          %s1354 = int_to_ptr.hbm [resolvable:$true] %s1353
          %s1355 = sshll.u32 %s1348, 4
          %s1356 = int_to_ptr.vmem [resolvable:$true] %s1355
          %1358 = dma.hbm_to_vmem [thread:$0]  %s1354, 16, %s1356, %s1346
        $region140: #{tpu_custom_call.1} parent=79 // pred_fallthru
          _
        // Predicated region
        $region141: #{tpu_custom_call.1} parent=79 // pred_check
          %p1359 = pneg %p699
        $region142: #{tpu_custom_call.1} parent=79 // pred_check_branch
          %1361 = sbr.rel (%p1359) target = $region144
        $region143: #{tpu_custom_call.1} parent=79 // pred_region
          %s1362 = sand.u32 %s88, 1
          %s1363 = scalar_lea.sflag [#allocation5], %s1362
          %s1364 = sand.u32 %s689, 1
          %s1365 = smul.addr %s1364, 64
          %s1366 = scalar_lea.vmem [#allocation23], %s1365
          %1368 = vsyncadd %s1363, 0
          %s1369 = smul.addr %s95, 16
          %s1370 = smul.addr %s1369, 4
          %s1371 = scalar_lea.hbm %s49, %s1370
          %s1372 = sshll.u32 %s1371, 4
          %s1373 = int_to_ptr.hbm [resolvable:$true] %s1372
          %s1374 = sshll.u32 %s1366, 4
          %s1375 = int_to_ptr.vmem [resolvable:$true] %s1374
          %1380 = dma.hbm_to_vmem [thread:$0]  %s1373, 1024, %s1375, %s1363, 64, 64, 4
        $region144: #{tpu_custom_call.1} parent=79 // pred_fallthru
          _
        // Predicated region
        $region145: #{tpu_custom_call.1} parent=79 // pred_check
          %p1381 = pneg %p725
        $region146: #{tpu_custom_call.1} parent=79 // pred_check_branch
          %1383 = sbr.rel (%p1381) target = $region148
        $region147: #{tpu_custom_call.1} parent=79 // pred_region
          %s1384 = sand.u32 %s88, 1
          %s1385 = scalar_lea.sflag [#allocation5], %s1384
          %s1386 = sand.u32 %s715, 1
          %s1387 = smul.addr %s1386, 64
          %s1388 = scalar_lea.vmem [#allocation24], %s1387
          %1390 = vsyncadd %s1385, 0
          %s1391 = smul.addr %s95, 16
          %s1392 = smul.addr %s1391, 4
          %s1393 = scalar_lea.hbm %s51, %s1392
          %s1394 = sshll.u32 %s1393, 4
          %s1395 = int_to_ptr.hbm [resolvable:$true] %s1394
          %s1396 = sshll.u32 %s1388, 4
          %s1397 = int_to_ptr.vmem [resolvable:$true] %s1396
          %1402 = dma.hbm_to_vmem [thread:$0]  %s1395, 1024, %s1397, %s1385, 64, 64, 4
        $region148: #{tpu_custom_call.1} parent=79 // pred_fallthru
          _
        // Predicated region
        $region149: #{tpu_custom_call.1} parent=79 // pred_check
          %p1403 = pneg %p751
        $region150: #{tpu_custom_call.1} parent=79 // pred_check_branch
          %1405 = sbr.rel (%p1403) target = $region152
        $region151: #{tpu_custom_call.1} parent=79 // pred_region
          %p1406 = scmp.lt.s32.totalorder %s95, 2
          %s1407 = scalar_select %p1406, %s95, 2
          %s1408 = scalar_lea.vmem %s53, %s1407
        $region152: #{tpu_custom_call.1} parent=79 // pred_fallthru
          _
        // Predicated region
        $region153: #{tpu_custom_call.1} parent=79 // pred_check
          %p1409 = pneg %p777
        $region154: #{tpu_custom_call.1} parent=79 // pred_check_branch
          %1411 = sbr.rel (%p1409) target = $region156
        $region155: #{tpu_custom_call.1} parent=79 // pred_region
          %s1412 = sand.u32 %s88, 1
          %s1413 = scalar_lea.sflag [#allocation5], %s1412
          %s1414 = sand.u32 %s767, 1
          %s1415 = smul.addr %s1414, 64
          %s1416 = scalar_lea.vmem [#allocation25], %s1415
          %1418 = vsyncadd %s1413, 0
          %s1419 = smul.addr %s95, 16
          %s1420 = smul.addr %s1419, 4
          %s1421 = scalar_lea.hbm %s55, %s1420
          %s1422 = sshll.u32 %s1421, 4
          %s1423 = int_to_ptr.hbm [resolvable:$true] %s1422
          %s1424 = sshll.u32 %s1416, 4
          %s1425 = int_to_ptr.vmem [resolvable:$true] %s1424
          %1430 = dma.hbm_to_vmem [thread:$0]  %s1423, 1024, %s1425, %s1413, 64, 64, 4
        $region156: #{tpu_custom_call.1} parent=79 // pred_fallthru
          _
        // Predicated region
        $region157: #{tpu_custom_call.1} parent=79 // pred_check
          %p1431 = pneg %p803
        $region158: #{tpu_custom_call.1} parent=79 // pred_check_branch
          %1433 = sbr.rel (%p1431) target = $region160
        $region159: #{tpu_custom_call.1} parent=79 // pred_region
          %s1434 = sand.u32 %s88, 1
          %s1435 = scalar_lea.sflag [#allocation5], %s1434
          %s1436 = sand.u32 %s793, 1
          %s1437 = scalar_lea.vmem [#allocation26], %s1436
          %1439 = vsyncadd %s1435, 0
          %s1440 = scalar_lea.hbm %s57, %s95
          %s1442 = sshll.u32 %s1440, 4
          %s1443 = int_to_ptr.hbm [resolvable:$true] %s1442
          %s1444 = sshll.u32 %s1437, 4
          %s1445 = int_to_ptr.vmem [resolvable:$true] %s1444
          %1447 = dma.hbm_to_vmem [thread:$0]  %s1443, 16, %s1445, %s1435
        $region160: #{tpu_custom_call.1} parent=79 // pred_fallthru
          _
      $region80: #{tpu_custom_call.1} parent=5 // pred_fallthru
        _
      %p1448 = scmp.le.s32.totalorder 1, %s88
      %p1449 = scmp.lt.s32.totalorder %s88, 7
      %p1450 = pnand %p1448, %p1449
      %p1451 = pneg %p1450
      // Predicated region
      $region161: #{tpu_custom_call.1} parent=5 // pred_check
        _
      $region162: #{tpu_custom_call.1} parent=5 // pred_check_branch
        %1453 = sbr.rel (%p1450) target = $region164
      $region163: #{tpu_custom_call.1} parent=5 // pred_region
        %s1454 = ssub.s32 %s88, 1
        // Predicated region
        $region165: #{tpu_custom_call.1} parent=163 // pred_check
          %p1455 = pneg %p121
        $region166: #{tpu_custom_call.1} parent=163 // pred_check_branch
          %1457 = sbr.rel (%p1455) target = $region168
        $region167: #{tpu_custom_call.1} parent=163 // pred_region
          %1459 = dma.done [#allocation5], 256
        $region168: #{tpu_custom_call.1} parent=163 // pred_fallthru
          _
        // Predicated region
        $region169: #{tpu_custom_call.1} parent=163 // pred_check
          %p1460 = pneg %p168
        $region170: #{tpu_custom_call.1} parent=163 // pred_check_branch
          %1462 = sbr.rel (%p1460) target = $region172
        $region171: #{tpu_custom_call.1} parent=163 // pred_region
          %1464 = dma.done [#allocation8], 256
        $region172: #{tpu_custom_call.1} parent=163 // pred_fallthru
          _
        %s1465 = sand.u32 %s93, 1
        %s1466 = scalar_lea.sflag [#allocation5], %s1465
        %s1467 = sand.u32 %s296, 1
        %s1468 = scalar_lea.vmem [#allocation9], %s1467
        // Predicated region
        $region173: #{tpu_custom_call.1} parent=163 // pred_check
          %p1469 = pneg %p309
        $region174: #{tpu_custom_call.1} parent=163 // pred_check_branch
          %1471 = sbr.rel (%p1469) target = $region176
        $region175: #{tpu_custom_call.1} parent=163 // pred_region
          %1473 = dma.done %s1466, 16
        $region176: #{tpu_custom_call.1} parent=163 // pred_fallthru
          _
        %s1474 = sand.u32 %s93, 1
        %s1475 = scalar_lea.sflag [#allocation5], %s1474
        %s1476 = sand.u32 %s322, 1
        %s1477 = scalar_lea.vmem [#allocation10], %s1476
        // Predicated region
        $region177: #{tpu_custom_call.1} parent=163 // pred_check
          %p1478 = pneg %p335
        $region178: #{tpu_custom_call.1} parent=163 // pred_check_branch
          %1480 = sbr.rel (%p1478) target = $region180
        $region179: #{tpu_custom_call.1} parent=163 // pred_region
          %1482 = dma.done %s1475, 16
        $region180: #{tpu_custom_call.1} parent=163 // pred_fallthru
          _
        // Predicated region
        $region181: #{tpu_custom_call.1} parent=163 // pred_check
          %p1483 = pneg %p356
        $region182: #{tpu_custom_call.1} parent=163 // pred_check_branch
          %1485 = sbr.rel (%p1483) target = $region184
        $region183: #{tpu_custom_call.1} parent=163 // pred_region
          %1487 = dma.done [#allocation8], 128
        $region184: #{tpu_custom_call.1} parent=163 // pred_fallthru
          _
        // Predicated region
        $region185: #{tpu_custom_call.1} parent=163 // pred_check
          %p1488 = pneg %p377
        $region186: #{tpu_custom_call.1} parent=163 // pred_check_branch
          %1490 = sbr.rel (%p1488) target = $region188
        $region187: #{tpu_custom_call.1} parent=163 // pred_region
          %1492 = dma.done [#allocation13], 16
        $region188: #{tpu_custom_call.1} parent=163 // pred_fallthru
          _
        // Predicated region
        $region189: #{tpu_custom_call.1} parent=163 // pred_check
          %p1493 = pneg %p398
        $region190: #{tpu_custom_call.1} parent=163 // pred_check_branch
          %1495 = sbr.rel (%p1493) target = $region192
        $region191: #{tpu_custom_call.1} parent=163 // pred_region
          %1497 = dma.done [#allocation13], 16
        $region192: #{tpu_custom_call.1} parent=163 // pred_fallthru
          _
        // Predicated region
        $region193: #{tpu_custom_call.1} parent=163 // pred_check
          %p1498 = pneg %p419
        $region194: #{tpu_custom_call.1} parent=163 // pred_check_branch
          %1500 = sbr.rel (%p1498) target = $region196
        $region195: #{tpu_custom_call.1} parent=163 // pred_region
          %1502 = dma.done [#allocation16], 16
        $region196: #{tpu_custom_call.1} parent=163 // pred_fallthru
          _
        %s1503 = sand.u32 %s93, 1
        %s1504 = scalar_lea.sflag [#allocation5], %s1503
        %s1505 = sand.u32 %s432, 1
        %s1506 = smul.addr %s1505, 64
        %s1507 = scalar_lea.vmem [#allocation17], %s1506
        // Predicated region
        $region197: #{tpu_custom_call.1} parent=163 // pred_check
          %p1508 = pneg %p445
        $region198: #{tpu_custom_call.1} parent=163 // pred_check_branch
          %1510 = sbr.rel (%p1508) target = $region200
        $region199: #{tpu_custom_call.1} parent=163 // pred_region
          %1512 = dma.done %s1504, 1024
        $region200: #{tpu_custom_call.1} parent=163 // pred_fallthru
          _
        %s1513 = sand.u32 %s93, 1
        %s1514 = scalar_lea.sflag [#allocation5], %s1513
        %s1515 = sand.u32 %s458, 1
        %s1516 = smul.addr %s1515, 64
        %s1517 = scalar_lea.vmem [#allocation18], %s1516
        // Predicated region
        $region201: #{tpu_custom_call.1} parent=163 // pred_check
          %p1518 = pneg %p471
        $region202: #{tpu_custom_call.1} parent=163 // pred_check_branch
          %1520 = sbr.rel (%p1518) target = $region204
        $region203: #{tpu_custom_call.1} parent=163 // pred_region
          %1522 = dma.done %s1514, 1024
        $region204: #{tpu_custom_call.1} parent=163 // pred_fallthru
          _
        %s1523 = sand.u32 %s93, 1
        %s1524 = scalar_lea.sflag [#allocation5], %s1523
        %s1525 = sand.u32 %s510, 1
        %s1526 = smul.addr %s1525, 64
        %s1527 = scalar_lea.vmem [#allocation19], %s1526
        // Predicated region
        $region205: #{tpu_custom_call.1} parent=163 // pred_check
          %p1528 = pneg %p523
        $region206: #{tpu_custom_call.1} parent=163 // pred_check_branch
          %1530 = sbr.rel (%p1528) target = $region208
        $region207: #{tpu_custom_call.1} parent=163 // pred_region
          %1532 = dma.done %s1524, 1024
        $region208: #{tpu_custom_call.1} parent=163 // pred_fallthru
          _
        %s1533 = sand.u32 %s93, 1
        %s1534 = scalar_lea.sflag [#allocation5], %s1533
        %s1535 = sand.u32 %s562, 1
        %s1536 = smul.addr %s1535, 64
        %s1537 = scalar_lea.vmem [#allocation20], %s1536
        // Predicated region
        $region209: #{tpu_custom_call.1} parent=163 // pred_check
          %p1538 = pneg %p575
        $region210: #{tpu_custom_call.1} parent=163 // pred_check_branch
          %1540 = sbr.rel (%p1538) target = $region212
        $region211: #{tpu_custom_call.1} parent=163 // pred_region
          %1542 = dma.done %s1534, 1024
        $region212: #{tpu_custom_call.1} parent=163 // pred_fallthru
          _
        %s1543 = sand.u32 %s93, 1
        %s1544 = scalar_lea.sflag [#allocation5], %s1543
        %s1545 = sand.u32 %s614, 1
        %s1546 = smul.addr %s1545, 64
        %s1547 = scalar_lea.vmem [#allocation21], %s1546
        // Predicated region
        $region213: #{tpu_custom_call.1} parent=163 // pred_check
          %p1548 = pneg %p627
        $region214: #{tpu_custom_call.1} parent=163 // pred_check_branch
          %1550 = sbr.rel (%p1548) target = $region216
        $region215: #{tpu_custom_call.1} parent=163 // pred_region
          %1552 = dma.done %s1544, 1024
        $region216: #{tpu_custom_call.1} parent=163 // pred_fallthru
          _
        %s1553 = sand.u32 %s93, 1
        %s1554 = scalar_lea.sflag [#allocation5], %s1553
        %s1555 = sand.u32 %s666, 1
        %s1556 = scalar_lea.vmem [#allocation22], %s1555
        // Predicated region
        $region217: #{tpu_custom_call.1} parent=163 // pred_check
          %p1557 = pneg %p679
        $region218: #{tpu_custom_call.1} parent=163 // pred_check_branch
          %1559 = sbr.rel (%p1557) target = $region220
        $region219: #{tpu_custom_call.1} parent=163 // pred_region
          %1561 = dma.done %s1554, 16
        $region220: #{tpu_custom_call.1} parent=163 // pred_fallthru
          _
        %s1562 = sand.u32 %s93, 1
        %s1563 = scalar_lea.sflag [#allocation5], %s1562
        %s1564 = sand.u32 %s692, 1
        %s1565 = smul.addr %s1564, 64
        %s1566 = scalar_lea.vmem [#allocation23], %s1565
        // Predicated region
        $region221: #{tpu_custom_call.1} parent=163 // pred_check
          %p1567 = pneg %p705
        $region222: #{tpu_custom_call.1} parent=163 // pred_check_branch
          %1569 = sbr.rel (%p1567) target = $region224
        $region223: #{tpu_custom_call.1} parent=163 // pred_region
          %1571 = dma.done %s1563, 1024
        $region224: #{tpu_custom_call.1} parent=163 // pred_fallthru
          _
        %s1572 = sand.u32 %s93, 1
        %s1573 = scalar_lea.sflag [#allocation5], %s1572
        %s1574 = sand.u32 %s718, 1
        %s1575 = smul.addr %s1574, 64
        %s1576 = scalar_lea.vmem [#allocation24], %s1575
        // Predicated region
        $region225: #{tpu_custom_call.1} parent=163 // pred_check
          %p1577 = pneg %p731
        $region226: #{tpu_custom_call.1} parent=163 // pred_check_branch
          %1579 = sbr.rel (%p1577) target = $region228
        $region227: #{tpu_custom_call.1} parent=163 // pred_region
          %1581 = dma.done %s1573, 1024
        $region228: #{tpu_custom_call.1} parent=163 // pred_fallthru
          _
        %s1582 = sand.u32 %s93, 1
        %s1583 = scalar_lea.sflag [#allocation5], %s1582
        %s1584 = sand.u32 %s770, 1
        %s1585 = smul.addr %s1584, 64
        %s1586 = scalar_lea.vmem [#allocation25], %s1585
        // Predicated region
        $region229: #{tpu_custom_call.1} parent=163 // pred_check
          %p1587 = pneg %p783
        $region230: #{tpu_custom_call.1} parent=163 // pred_check_branch
          %1589 = sbr.rel (%p1587) target = $region232
        $region231: #{tpu_custom_call.1} parent=163 // pred_region
          %1591 = dma.done %s1583, 1024
        $region232: #{tpu_custom_call.1} parent=163 // pred_fallthru
          _
        %s1592 = sand.u32 %s93, 1
        %s1593 = scalar_lea.sflag [#allocation5], %s1592
        %s1594 = sand.u32 %s796, 1
        %s1595 = scalar_lea.vmem [#allocation26], %s1594
        // Predicated region
        $region233: #{tpu_custom_call.1} parent=163 // pred_check
          %p1596 = pneg %p809
        $region234: #{tpu_custom_call.1} parent=163 // pred_check_branch
          %1598 = sbr.rel (%p1596) target = $region236
        $region235: #{tpu_custom_call.1} parent=163 // pred_region
          %1600 = dma.done %s1593, 16
        $region236: #{tpu_custom_call.1} parent=163 // pred_fallthru
          _
        // Predicated region
        $region237: #{tpu_custom_call.1} parent=163 // pred_check
          %p1601 = pneg %p893
        $region238: #{tpu_custom_call.1} parent=163 // pred_check_branch
          %1603 = sbr.rel (%p1601) target = $region240
        $region239: #{tpu_custom_call.1} parent=163 // pred_region
          %1605 = dma.done [#allocation8], 1024
        $region240: #{tpu_custom_call.1} parent=163 // pred_fallthru
          _
        // Predicated region
        $region241: #{tpu_custom_call.1} parent=163 // pred_check
          %p1606 = pneg %p935
        $region242: #{tpu_custom_call.1} parent=163 // pred_check_branch
          %1608 = sbr.rel (%p1606) target = $region244
        $region243: #{tpu_custom_call.1} parent=163 // pred_region
          %1610 = dma.done [#allocation13], 1024
        $region244: #{tpu_custom_call.1} parent=163 // pred_fallthru
          _
        %p1611 = pneg %p121
        %p1612 = pneg %p118
        %s1613 = smul.u32 2, %s98
        %p1614 = scmp.lt.s32.totalorder %s1613, 3
        %s1615 = scalar_select %p1614, %s1613, 3
        %s1616 = smul.addr %s1615, 8
        %s1617 = scalar_lea.vmem %s3, %s1616
        %p1618 = pneg %p147
        %p1619 = pneg %p144
        %p1620 = pneg %p168
        %p1621 = pneg %p165
        %s1622 = smul.u32 2, %s98
        %p1623 = scmp.lt.s32.totalorder %s1622, 3
        %s1624 = scalar_select %p1623, %s1622, 3
        %s1625 = smul.addr %s1624, 4
        %s1626 = scalar_lea.vmem %s7, %s1625
        %p1627 = pneg %p194
        %p1628 = pneg %p191
        %s1629 = smul.u32 2, %s98
        %p1630 = scmp.lt.s32.totalorder %s1629, 3
        %s1631 = scalar_select %p1630, %s1629, 3
        %s1632 = smul.addr %s1631, 4
        %s1633 = scalar_lea.vmem %s9, %s1632
        %p1634 = pneg %p220
        %p1635 = pneg %p217
        %p1636 = pneg %p241
        %p1637 = pneg %p238
        %p1638 = pneg %p262
        %p1639 = pneg %p259
        %p1640 = pneg %p283
        %p1641 = pneg %p280
        %s1642 = sand.u32 %s93, 1
        %s1643 = scalar_lea.sflag [#allocation5], %s1642
        %s1644 = sand.u32 %s296, 1
        %s1645 = scalar_lea.vmem [#allocation9], %s1644
        %p1646 = pneg %p309
        %p1647 = pneg %p306
        %s1648 = sand.u32 %s93, 1
        %s1649 = scalar_lea.sflag [#allocation5], %s1648
        %s1650 = sand.u32 %s322, 1
        %s1651 = scalar_lea.vmem [#allocation10], %s1650
        %p1652 = pneg %p335
        %p1653 = pneg %p332
        %p1654 = pneg %p356
        %p1655 = pneg %p353
        %p1656 = pneg %p377
        %p1657 = pneg %p374
        %p1658 = pneg %p398
        %p1659 = pneg %p395
        %p1660 = pneg %p419
        %p1661 = pneg %p416
        %s1662 = sand.u32 %s93, 1
        %s1663 = scalar_lea.sflag [#allocation5], %s1662
        %s1664 = sand.u32 %s432, 1
        %s1665 = smul.addr %s1664, 64
        %s1666 = scalar_lea.vmem [#allocation17], %s1665
        %p1667 = pneg %p445
        %p1668 = pneg %p442
        %s1669 = sand.u32 %s93, 1
        %s1670 = scalar_lea.sflag [#allocation5], %s1669
        %s1671 = sand.u32 %s458, 1
        %s1672 = smul.addr %s1671, 64
        %s1673 = scalar_lea.vmem [#allocation18], %s1672
        %p1674 = pneg %p471
        %p1675 = pneg %p468
        %p1676 = scmp.lt.s32.totalorder %s97, 2
        %s1677 = scalar_select %p1676, %s97, 2
        %s1678 = scalar_lea.vmem %s33, %s1677
        %p1679 = pneg %p497
        %p1680 = pneg %p494
        %s1681 = sand.u32 %s93, 1
        %s1682 = scalar_lea.sflag [#allocation5], %s1681
        %s1683 = sand.u32 %s510, 1
        %s1684 = smul.addr %s1683, 64
        %s1685 = scalar_lea.vmem [#allocation19], %s1684
        %p1686 = pneg %p523
        %p1687 = pneg %p520
        %p1688 = scmp.lt.s32.totalorder %s97, 2
        %s1689 = scalar_select %p1688, %s97, 2
        %s1690 = scalar_lea.vmem %s37, %s1689
        %p1691 = pneg %p549
        %p1692 = pneg %p546
        %s1693 = sand.u32 %s93, 1
        %s1694 = scalar_lea.sflag [#allocation5], %s1693
        %s1695 = sand.u32 %s562, 1
        %s1696 = smul.addr %s1695, 64
        %s1697 = scalar_lea.vmem [#allocation20], %s1696
        %p1698 = pneg %p575
        %p1699 = pneg %p572
        %p1700 = scmp.lt.s32.totalorder %s97, 2
        %s1701 = scalar_select %p1700, %s97, 2
        %s1702 = scalar_lea.vmem %s41, %s1701
        %p1703 = pneg %p601
        %p1704 = pneg %p598
        %s1705 = sand.u32 %s93, 1
        %s1706 = scalar_lea.sflag [#allocation5], %s1705
        %s1707 = sand.u32 %s614, 1
        %s1708 = smul.addr %s1707, 64
        %s1709 = scalar_lea.vmem [#allocation21], %s1708
        %p1710 = pneg %p627
        %p1711 = pneg %p624
        %p1712 = scmp.lt.s32.totalorder %s97, 2
        %s1713 = scalar_select %p1712, %s97, 2
        %s1714 = scalar_lea.vmem %s45, %s1713
        %p1715 = pneg %p653
        %p1716 = pneg %p650
        %s1717 = sand.u32 %s93, 1
        %s1718 = scalar_lea.sflag [#allocation5], %s1717
        %s1719 = sand.u32 %s666, 1
        %s1720 = scalar_lea.vmem [#allocation22], %s1719
        %p1721 = pneg %p679
        %p1722 = pneg %p676
        %s1723 = sand.u32 %s93, 1
        %s1724 = scalar_lea.sflag [#allocation5], %s1723
        %s1725 = sand.u32 %s692, 1
        %s1726 = smul.addr %s1725, 64
        %s1727 = scalar_lea.vmem [#allocation23], %s1726
        %p1728 = pneg %p705
        %p1729 = pneg %p702
        %s1730 = sand.u32 %s93, 1
        %s1731 = scalar_lea.sflag [#allocation5], %s1730
        %s1732 = sand.u32 %s718, 1
        %s1733 = smul.addr %s1732, 64
        %s1734 = scalar_lea.vmem [#allocation24], %s1733
        %p1735 = pneg %p731
        %p1736 = pneg %p728
        %p1737 = scmp.lt.s32.totalorder %s97, 2
        %s1738 = scalar_select %p1737, %s97, 2
        %s1739 = scalar_lea.vmem %s53, %s1738
        %p1740 = pneg %p757
        %p1741 = pneg %p754
        %s1742 = sand.u32 %s93, 1
        %s1743 = scalar_lea.sflag [#allocation5], %s1742
        %s1744 = sand.u32 %s770, 1
        %s1745 = smul.addr %s1744, 64
        %s1746 = scalar_lea.vmem [#allocation25], %s1745
        %p1747 = pneg %p783
        %p1748 = pneg %p780
        %s1749 = sand.u32 %s93, 1
        %s1750 = scalar_lea.sflag [#allocation5], %s1749
        %s1751 = sand.u32 %s796, 1
        %s1752 = scalar_lea.vmem [#allocation26], %s1751
        %p1753 = pneg %p809
        %p1754 = pneg %p806
        %p1755 = pneg %p830
        %p1756 = pneg %p827
        %p1757 = pneg %p851
        %p1758 = pneg %p848
        %p1759 = pneg %p872
        %p1760 = pneg %p869
        %p1761 = pneg %p893
        %p1762 = pneg %p890
        %p1763 = pneg %p914
        %p1764 = pneg %p911
        %p1765 = pneg %p935
        %p1766 = pneg %p932
        %p1767 = pneg %p956
        %p1768 = pneg %p953
        %p1769 = pneg %p977
        %p1770 = pneg %p974
        %p1771 = pneg %p998
        %p1772 = pneg %p995
        %s1773 = smul.u32 2, %s98
        %p1774 = scmp.lt.s32.totalorder %s1773, 3
        %s1775 = scalar_select %p1774, %s1773, 3
        %s1776 = smul.addr %s1775, 8
        %s1777 = scalar_lea.vmem %s3, %s1776
        %s1778 = smul.u32 2, %s98
        %s1779 = smul.u32 2, %s98
        %p1780 = scmp.lt.s32.totalorder %s1779, 3
        %s1781 = scalar_select %p1780, %s1779, 3
        %s1782 = smul.addr %s1781, 4
        %s1783 = scalar_lea.vmem %s7, %s1782
        %s1784 = smul.u32 2, %s98
        %s1785 = smul.u32 2, %s98
        %p1786 = scmp.lt.s32.totalorder %s1785, 3
        %s1787 = scalar_select %p1786, %s1785, 3
        %s1788 = smul.addr %s1787, 4
        %s1789 = scalar_lea.vmem %s9, %s1788
        %s1790 = smul.u32 2, %s98
        %p1791 = scmp.lt.s32.totalorder %s97, 2
        %s1792 = scalar_select %p1791, %s97, 2
        %s1793 = scalar_lea.vmem %s33, %s1792
        %p1794 = scmp.lt.s32.totalorder %s97, 2
        %s1795 = scalar_select %p1794, %s97, 2
        %s1796 = scalar_lea.vmem %s37, %s1795
        %p1797 = scmp.lt.s32.totalorder %s97, 2
        %s1798 = scalar_select %p1797, %s97, 2
        %s1799 = scalar_lea.vmem %s41, %s1798
        %p1800 = scmp.lt.s32.totalorder %s97, 2
        %s1801 = scalar_select %p1800, %s97, 2
        %s1802 = scalar_lea.vmem %s45, %s1801
        %p1803 = scmp.lt.s32.totalorder %s97, 2
        %s1804 = scalar_select %p1803, %s97, 2
        %s1805 = scalar_lea.vmem %s53, %s1804
        %p1807 = scmp.eq.s32.totalorder %s97, 0
        %p1808 = scmp.eq.s32.totalorder %s98, 0
        %p1809 = pnand %p1807, %p1808
        %p1810 = pneg %p1809
        // Predicated region
        $region245: #{tpu_custom_call.1} parent=163 // pred_check
          _
        $region246: #{tpu_custom_call.1} parent=163 // pred_check_branch
          %1812 = sbr.rel (%p1809) target = $region248
        $region247: #{tpu_custom_call.1} parent=163 // pred_region
          %v1813 = vld [vmem:[#allocation4] sm:$0xff]
          %v1814 = vld [vmem:[#allocation4 + $0x8] sm:$0xff]
          %v1815 = vpack.c.bf16 %v1814, %v1813
          %v1816 = vld [vmem:[#allocation11] sm:$0xf]
          %v1817 = vld [vmem:[#allocation11 + $0x4] sm:$0xf]
          %v1818 = vld [vmem:[#allocation12] sm:$0x1]
          %v1820 = vperm.slane %v1818, 0
          %v1824 = vunpack.c.l.b16 %v1816
          %v1825 = vunpack.c.l.b16 %v1817
          %v1826 = vpack.c.b16 %v1825, %v1824
          %vm1828 = vcmask 130048
          %v1830 = vsel %vm1828, %v1815, 0
          %1832 = vmatpush.bf16.msra.mxu0 0
          %1833 = vmatpush.bf16.msra.mxu0 0
          %1834 = vmatpush.bf16.msra.mxu0 0
          %1835 = vmatpush.bf16.msra.mxu0 0
          %1836 = vmatpush.bf16.msra.mxu0 0
          %1837 = vmatpush.bf16.msra.mxu0 0
          %1838 = vmatpush.bf16.msra.mxu0 0
          %1839 = vmatpush.bf16.msra.mxu0 %v1826
          %1840 = vmatmul.bf16.gmra.mxu0 %v1830
          %v1841 = vpop.f32.mrf.mxu0
          %v1842 = vadd.f32 %v1820, %v1841
          %v1843 = vpop.f32.mrf.mxu0
          %v1844 = vadd.f32 %v1820, %v1843
          %1845 = vdwg.mxu0
          %1846 = vst [vmem:[#allocation2] sm:$0xff] %v1842
          %1847 = vst [vmem:[#allocation2 + $0x10] sm:$0xff] %v1844
          %v1848 = vld [vmem:[#allocation7] sm:$0xff]
          %v1849 = vld [vmem:[#allocation7 + $0x8] sm:$0xff]
          %1850 = vst [vmem:[#allocation2 + $0x8] sm:$0xff] %v1848
          %1851 = vst [vmem:[#allocation2 + $0x18] sm:$0xff] %v1849
        $region248: #{tpu_custom_call.1} parent=163 // pred_fallthru
          _
        // Predicated region
        $region249: #{tpu_custom_call.1} parent=163 // pred_check
          %p1852 = pneg %p1808
        $region250: #{tpu_custom_call.1} parent=163 // pred_check_branch
          %1854 = sbr.rel (%p1852) target = $region252
        $region251: #{tpu_custom_call.1} parent=163 // pred_region
          %v1855 = vld [vmem:[%s1468] sm:$0x1]
          %v1856 = vld [vmem:[#allocation2] sm:$0xff]
          %v1857 = vld [vmem:[#allocation2 + $0x10] sm:$0xff]
          %v1859 = vperm.slane %v1855, 0
          %v1861 = vmul.f32 %v1859, %v1856
          %v1862 = vmul.f32 %v1859, %v1857
          %v1863 = vld [vmem:[%s1477] sm:$0x1]
          %v1865 = vperm.slane %v1863, 0
          %v1867 = vadd.f32 %v1861, %v1865
          %v1868 = vadd.f32 %v1862, %v1865
          %1869 = vst [vmem:[#allocation2] sm:$0xff] %v1867
          %1870 = vst [vmem:[#allocation2 + $0x10] sm:$0xff] %v1868
          %1871 = vst [vmem:[#allocation3] sm:$0xff] 0.0
          %1872 = vst [vmem:[#allocation3 + $0x8] sm:$0xff] 0.0
          %1873 = vst [vmem:[#allocation3 + $0x10] sm:$0xff] 0.0
          %1874 = vst [vmem:[#allocation3 + $0x18] sm:$0xff] 0.0
        $region252: #{tpu_custom_call.1} parent=163 // pred_fallthru
          _
        %v1875 = vld [vmem:[%s1783] sm:$0xf]
        %v1876 = vld [vmem:[%s1783 + $0x4] sm:$0xf]
        %v1877 = vld [vmem:[%s1789] sm:$0xf]
        %v1878 = vld [vmem:[%s1789 + $0x4] sm:$0xf]
        %v1879 = vld [vmem:[#allocation2] sm:$0xff]
        %v1880 = vld [vmem:[#allocation2 + $0x8] sm:$0xff]
        %v1881 = vld [vmem:[#allocation2 + $0x10] sm:$0xff]
        %v1882 = vld [vmem:[#allocation2 + $0x18] sm:$0xff]
        %v1883 = vpack.c.bf16 %v1881, %v1879
        %v1884 = vpack.c.bf16 %v1882, %v1880
        %v1887 = vunpack.c.l.b16 %v1875
        %v1888 = vunpack.c.l.b16 %v1876
        %v1889 = vpack.c.b16 %v1888, %v1887
        %vm1890 = vcmask 130048
        %v1892 = vsel %vm1890, %v1889, 0
        %1894 = vmatpush.bf16.msra.mxu0 0
        %1895 = vmatpush.bf16.msra.mxu0 0
        %1896 = vmatpush.bf16.msra.mxu0 0
        %1897 = vmatpush.bf16.msra.mxu0 0
        %1898 = vmatpush.bf16.msra.mxu0 0
        %1899 = vmatpush.bf16.msra.mxu0 0
        %1900 = vmatpush.bf16.msra.mxu0 0
        %1901 = vmatpush.bf16.msra.mxu0 %v1883
        %1902 = vmatmul.bf16.gmra.mxu0 %v1892
        %v1903 = vpop.f32.mrf.mxu0
        %v1904 = vadd.f32 0.0, %v1903
        %v1905 = vpop.f32.mrf.mxu0
        %v1906 = vadd.f32 0.0, %v1905
        %1907 = vdwg.mxu0
        %1908 = vmatpush.bf16.msra.mxu0 0
        %1909 = vmatpush.bf16.msra.mxu0 0
        %1910 = vmatpush.bf16.msra.mxu0 0
        %1911 = vmatpush.bf16.msra.mxu0 0
        %1912 = vmatpush.bf16.msra.mxu0 0
        %1913 = vmatpush.bf16.msra.mxu0 0
        %1914 = vmatpush.bf16.msra.mxu0 0
        %1915 = vmatpush.bf16.msra.mxu0 %v1884
        %1916 = vmatmul.bf16.gmra.mxu0 %v1892
        %v1917 = vpop.f32.mrf.mxu0
        %v1918 = vadd.f32 0.0, %v1917
        %v1919 = vpop.f32.mrf.mxu0
        %v1920 = vadd.f32 0.0, %v1919
        %1921 = vdwg.mxu0
        %v1924 = vunpack.c.l.b16 %v1877
        %v1925 = vunpack.c.l.b16 %v1878
        %v1926 = vpack.c.b16 %v1925, %v1924
        %v1928 = vsel %vm1890, %v1926, 0
        %1930 = vmatpush.bf16.msra.mxu0 0
        %1931 = vmatpush.bf16.msra.mxu0 0
        %1932 = vmatpush.bf16.msra.mxu0 0
        %1933 = vmatpush.bf16.msra.mxu0 0
        %1934 = vmatpush.bf16.msra.mxu0 0
        %1935 = vmatpush.bf16.msra.mxu0 0
        %1936 = vmatpush.bf16.msra.mxu0 0
        %1937 = vmatpush.bf16.msra.mxu0 %v1883
        %1938 = vmatmul.bf16.gmra.mxu0 %v1928
        %v1939 = vpop.f32.mrf.mxu0
        %v1940 = vadd.f32 0.0, %v1939
        %v1941 = vpop.f32.mrf.mxu0
        %v1942 = vadd.f32 0.0, %v1941
        %1943 = vdwg.mxu0
        %1944 = vmatpush.bf16.msra.mxu0 0
        %1945 = vmatpush.bf16.msra.mxu0 0
        %1946 = vmatpush.bf16.msra.mxu0 0
        %1947 = vmatpush.bf16.msra.mxu0 0
        %1948 = vmatpush.bf16.msra.mxu0 0
        %1949 = vmatpush.bf16.msra.mxu0 0
        %1950 = vmatpush.bf16.msra.mxu0 0
        %1951 = vmatpush.bf16.msra.mxu0 %v1884
        %1952 = vmatmul.bf16.gmra.mxu0 %v1928
        %v1953 = vpop.f32.mrf.mxu0
        %v1954 = vadd.f32 0.0, %v1953
        %v1955 = vpop.f32.mrf.mxu0
        %v1956 = vadd.f32 0.0, %v1955
        %1957 = vdwg.mxu0
        %v1958 = vsub.f32 %v1918, %v1954
        %v1959 = vsub.f32 %v1920, %v1956
        %v1960 = vmul.f32 %v1958, %v1958
        %v1961 = vmul.f32 %v1959, %v1959
        %1962 = vadd.xlane.f32.xlu0 %v1960
        %v1963 = vpop.xlane.xlu0 %1962
        %1964 = vadd.xlane.f32.xlu0 %v1961
        %v1965 = vpop.xlane.xlu0 %1964
        %v1966 = vrsqrt.pop %v1963
        %v1967 = vmul.f32 %v1966, %v1963
        %v1968 = vmul.f32 %v1967, %v1966
        %v1969 = vmul.f32 0.5, %v1968
        %v1970 = vsub.f32 1.5, %v1969
        %v1971 = vmul.f32 %v1966, %v1970
        %v1972 = vmul.f32 %v1963, %v1971
        %vm1973 = vcmp.eq.f32.partialorder %v1963, inf
        %v1974 = vsel %vm1973, %v1963, %v1972
        %vm1975 = vcmp.eq.f32.partialorder %v1963, 0.0
        %v1976 = vand.u32 %v1963, 2147483648
        %v1977 = vsel %vm1975, %v1976, %v1974
        %v1978 = vrsqrt.pop %v1965
        %v1979 = vmul.f32 %v1978, %v1965
        %v1980 = vmul.f32 %v1979, %v1978
        %v1981 = vmul.f32 0.5, %v1980
        %v1982 = vsub.f32 1.5, %v1981
        %v1983 = vmul.f32 %v1978, %v1982
        %v1984 = vmul.f32 %v1965, %v1983
        %vm1985 = vcmp.eq.f32.partialorder %v1965, inf
        %v1986 = vsel %vm1985, %v1965, %v1984
        %vm1987 = vcmp.eq.f32.partialorder %v1965, 0.0
        %v1988 = vand.u32 %v1965, 2147483648
        %v1989 = vsel %vm1987, %v1988, %v1986
        %v1990 = vadd.f32 %v1977, 1e-08
        %v1991 = vadd.f32 %v1989, 1e-08
        %v1992 = vrcp.pop %v1990
        %v1993 = vrcp.pop %v1991
        %v1994 = vmul.f32 %v1958, %v1992
        %v1995 = vmul.f32 %v1959, %v1993
        %v1996 = vld [vmem:[%s1777] sm:$0xff]
        %v1997 = vld [vmem:[%s1777 + $0x8] sm:$0xff]
        %v1998 = vld [vmem:[#allocation14] sm:$0x1]
        %2000 = vset.pattern.permute.xlu0 0
        %2001 = vperm.xlu0 %2000, %v1996
        %v2002 = vpop.permute.xlu0 %2001
        %2005 = vset.pattern.permute.xlu0 0
        %2006 = vperm.xlu0 %2005, %v1997
        %v2007 = vpop.permute.xlu0 %2006
        %v2010 = vperm.slane %v1998, 0
        %v2012 = vmul.f32 %v2002, %v2010
        %v2013 = vmul.f32 %v2007, %v2010
        %v2014 = vld [vmem:[#allocation15] sm:$0x1]
        %v2016 = vperm.slane %v2014, 0
        %v2018 = vadd.f32 %v2012, %v2016
        %v2019 = vadd.f32 %v2013, %v2016
        %v2020 = vpack.c.bf16 %v1906, %v1904
        %v2021 = vld [vmem:[%s1507] sm:$0xf]
        %v2022 = vld [vmem:[%s1507 + $0x4] sm:$0xf]
        %v2023 = vld [vmem:[%s1507 + $0x8] sm:$0xf]
        %v2024 = vld [vmem:[%s1507 + $0xc] sm:$0xf]
        %v2025 = vld [vmem:[%s1507 + $0x10] sm:$0xf]
        %v2026 = vld [vmem:[%s1507 + $0x14] sm:$0xf]
        %v2027 = vld [vmem:[%s1507 + $0x18] sm:$0xf]
        %v2028 = vld [vmem:[%s1507 + $0x1c] sm:$0xf]
        %v2029 = vld [vmem:[%s1507 + $0x20] sm:$0xf]
        %v2030 = vld [vmem:[%s1507 + $0x24] sm:$0xf]
        %v2031 = vld [vmem:[%s1507 + $0x28] sm:$0xf]
        %v2032 = vld [vmem:[%s1507 + $0x2c] sm:$0xf]
        %v2033 = vld [vmem:[%s1507 + $0x30] sm:$0xf]
        %v2034 = vld [vmem:[%s1507 + $0x34] sm:$0xf]
        %v2035 = vld [vmem:[%s1507 + $0x38] sm:$0xf]
        %v2036 = vld [vmem:[%s1507 + $0x3c] sm:$0xf]
        %v2037 = vpack.c.bf16 %v1942, %v1940
        %v2038 = vld [vmem:[%s1517] sm:$0xf]
        %v2039 = vld [vmem:[%s1517 + $0x4] sm:$0xf]
        %v2040 = vld [vmem:[%s1517 + $0x8] sm:$0xf]
        %v2041 = vld [vmem:[%s1517 + $0xc] sm:$0xf]
        %v2042 = vld [vmem:[%s1517 + $0x10] sm:$0xf]
        %v2043 = vld [vmem:[%s1517 + $0x14] sm:$0xf]
        %v2044 = vld [vmem:[%s1517 + $0x18] sm:$0xf]
        %v2045 = vld [vmem:[%s1517 + $0x1c] sm:$0xf]
        %v2046 = vld [vmem:[%s1517 + $0x20] sm:$0xf]
        %v2047 = vld [vmem:[%s1517 + $0x24] sm:$0xf]
        %v2048 = vld [vmem:[%s1517 + $0x28] sm:$0xf]
        %v2049 = vld [vmem:[%s1517 + $0x2c] sm:$0xf]
        %v2050 = vld [vmem:[%s1517 + $0x30] sm:$0xf]
        %v2051 = vld [vmem:[%s1517 + $0x34] sm:$0xf]
        %v2052 = vld [vmem:[%s1517 + $0x38] sm:$0xf]
        %v2053 = vld [vmem:[%s1517 + $0x3c] sm:$0xf]
        %v2070 = vunpack.c.l.b16 %v2038
        %v2071 = vunpack.c.l.b16 %v2039
        %v2072 = vunpack.c.l.b16 %v2040
        %v2073 = vunpack.c.l.b16 %v2041
        %v2074 = vunpack.c.l.b16 %v2042
        %v2075 = vunpack.c.l.b16 %v2043
        %v2076 = vunpack.c.l.b16 %v2044
        %v2077 = vunpack.c.l.b16 %v2045
        %v2078 = vunpack.c.l.b16 %v2046
        %v2079 = vunpack.c.l.b16 %v2047
        %v2080 = vunpack.c.l.b16 %v2048
        %v2081 = vunpack.c.l.b16 %v2049
        %v2082 = vunpack.c.l.b16 %v2050
        %v2083 = vunpack.c.l.b16 %v2051
        %v2084 = vunpack.c.l.b16 %v2052
        %v2085 = vunpack.c.l.b16 %v2053
        %v2086 = vpack.c.b16 %v2071, %v2070
        %v2087 = vpack.c.b16 %v2073, %v2072
        %v2088 = vpack.c.b16 %v2075, %v2074
        %v2089 = vpack.c.b16 %v2077, %v2076
        %v2090 = vpack.c.b16 %v2079, %v2078
        %v2091 = vpack.c.b16 %v2081, %v2080
        %v2092 = vpack.c.b16 %v2083, %v2082
        %v2093 = vpack.c.b16 %v2085, %v2084
        %2102 = vmatpush.bf16.msra.mxu0 %v2093
        %2103 = vmatpush.bf16.msra.mxu0 %v2092
        %2104 = vmatpush.bf16.msra.mxu0 %v2091
        %2105 = vmatpush.bf16.msra.mxu0 %v2090
        %2106 = vmatpush.bf16.msra.mxu0 %v2089
        %2107 = vmatpush.bf16.msra.mxu0 %v2088
        %2108 = vmatpush.bf16.msra.mxu0 %v2087
        %2109 = vmatpush.bf16.msra.mxu0 %v2086
        %2110 = vmatmul.bf16.gmra.mxu0 %v2037
        %v2111 = vpop.f32.mrf.mxu0
        %v2112 = vadd.f32 0.0, %v2111
        %v2113 = vpop.f32.mrf.mxu0
        %v2114 = vadd.f32 0.0, %v2113
        %2115 = vdwg.mxu0
        %v2132 = vunpack.c.l.b16 %v2021
        %v2133 = vunpack.c.l.b16 %v2022
        %v2134 = vunpack.c.l.b16 %v2023
        %v2135 = vunpack.c.l.b16 %v2024
        %v2136 = vunpack.c.l.b16 %v2025
        %v2137 = vunpack.c.l.b16 %v2026
        %v2138 = vunpack.c.l.b16 %v2027
        %v2139 = vunpack.c.l.b16 %v2028
        %v2140 = vunpack.c.l.b16 %v2029
        %v2141 = vunpack.c.l.b16 %v2030
        %v2142 = vunpack.c.l.b16 %v2031
        %v2143 = vunpack.c.l.b16 %v2032
        %v2144 = vunpack.c.l.b16 %v2033
        %v2145 = vunpack.c.l.b16 %v2034
        %v2146 = vunpack.c.l.b16 %v2035
        %v2147 = vunpack.c.l.b16 %v2036
        %v2148 = vpack.c.b16 %v2133, %v2132
        %v2149 = vpack.c.b16 %v2135, %v2134
        %v2150 = vpack.c.b16 %v2137, %v2136
        %v2151 = vpack.c.b16 %v2139, %v2138
        %v2152 = vpack.c.b16 %v2141, %v2140
        %v2153 = vpack.c.b16 %v2143, %v2142
        %v2154 = vpack.c.b16 %v2145, %v2144
        %v2155 = vpack.c.b16 %v2147, %v2146
        %2164 = vmatpush.bf16.msra.mxu0 %v2155
        %2165 = vmatpush.bf16.msra.mxu0 %v2154
        %2166 = vmatpush.bf16.msra.mxu0 %v2153
        %2167 = vmatpush.bf16.msra.mxu0 %v2152
        %2168 = vmatpush.bf16.msra.mxu0 %v2151
        %2169 = vmatpush.bf16.msra.mxu0 %v2150
        %2170 = vmatpush.bf16.msra.mxu0 %v2149
        %2171 = vmatpush.bf16.msra.mxu0 %v2148
        %2172 = vmatmul.bf16.gmra.mxu0 %v2020
        %v2173 = vpop.f32.mrf.mxu0
        %v2174 = vadd.f32 %v2112, %v2173
        %v2175 = vpop.f32.mrf.mxu0
        %v2176 = vadd.f32 %v2114, %v2175
        %2177 = vdwg.mxu0
        %v2178 = vld [vmem:[%s1793] sm:$0x1]
        %v2180 = vperm.slane %v2178, 0
        %v2182 = vmul.f32 %v1963, %v2180
        %v2183 = vmul.f32 %v1965, %v2180
        %v2184 = vadd.f32 %v2174, %v2182
        %v2185 = vadd.f32 %v2176, %v2183
        %v2186 = vpack.c.bf16 %v2019, %v2018
        %v2187 = vld [vmem:[%s1527] sm:$0xf]
        %v2188 = vld [vmem:[%s1527 + $0x4] sm:$0xf]
        %v2189 = vld [vmem:[%s1527 + $0x8] sm:$0xf]
        %v2190 = vld [vmem:[%s1527 + $0xc] sm:$0xf]
        %v2191 = vld [vmem:[%s1527 + $0x10] sm:$0xf]
        %v2192 = vld [vmem:[%s1527 + $0x14] sm:$0xf]
        %v2193 = vld [vmem:[%s1527 + $0x18] sm:$0xf]
        %v2194 = vld [vmem:[%s1527 + $0x1c] sm:$0xf]
        %v2195 = vld [vmem:[%s1527 + $0x20] sm:$0xf]
        %v2196 = vld [vmem:[%s1527 + $0x24] sm:$0xf]
        %v2197 = vld [vmem:[%s1527 + $0x28] sm:$0xf]
        %v2198 = vld [vmem:[%s1527 + $0x2c] sm:$0xf]
        %v2199 = vld [vmem:[%s1527 + $0x30] sm:$0xf]
        %v2200 = vld [vmem:[%s1527 + $0x34] sm:$0xf]
        %v2201 = vld [vmem:[%s1527 + $0x38] sm:$0xf]
        %v2202 = vld [vmem:[%s1527 + $0x3c] sm:$0xf]
        %v2219 = vunpack.c.l.b16 %v2187
        %v2220 = vunpack.c.l.b16 %v2188
        %v2221 = vunpack.c.l.b16 %v2189
        %v2222 = vunpack.c.l.b16 %v2190
        %v2223 = vunpack.c.l.b16 %v2191
        %v2224 = vunpack.c.l.b16 %v2192
        %v2225 = vunpack.c.l.b16 %v2193
        %v2226 = vunpack.c.l.b16 %v2194
        %v2227 = vunpack.c.l.b16 %v2195
        %v2228 = vunpack.c.l.b16 %v2196
        %v2229 = vunpack.c.l.b16 %v2197
        %v2230 = vunpack.c.l.b16 %v2198
        %v2231 = vunpack.c.l.b16 %v2199
        %v2232 = vunpack.c.l.b16 %v2200
        %v2233 = vunpack.c.l.b16 %v2201
        %v2234 = vunpack.c.l.b16 %v2202
        %v2235 = vpack.c.b16 %v2220, %v2219
        %v2236 = vpack.c.b16 %v2222, %v2221
        %v2237 = vpack.c.b16 %v2224, %v2223
        %v2238 = vpack.c.b16 %v2226, %v2225
        %v2239 = vpack.c.b16 %v2228, %v2227
        %v2240 = vpack.c.b16 %v2230, %v2229
        %v2241 = vpack.c.b16 %v2232, %v2231
        %v2242 = vpack.c.b16 %v2234, %v2233
        %2251 = vmatpush.bf16.msra.mxu0 %v2242
        %2252 = vmatpush.bf16.msra.mxu0 %v2241
        %2253 = vmatpush.bf16.msra.mxu0 %v2240
        %2254 = vmatpush.bf16.msra.mxu0 %v2239
        %2255 = vmatpush.bf16.msra.mxu0 %v2238
        %2256 = vmatpush.bf16.msra.mxu0 %v2237
        %2257 = vmatpush.bf16.msra.mxu0 %v2236
        %2258 = vmatpush.bf16.msra.mxu0 %v2235
        %2259 = vmatmul.bf16.gmra.mxu0 %v2186
        %v2260 = vpop.f32.mrf.mxu0
        %v2261 = vadd.f32 0.0, %v2260
        %v2262 = vpop.f32.mrf.mxu0
        %v2263 = vadd.f32 0.0, %v2262
        %2264 = vdwg.mxu0
        %v2265 = vadd.f32 %v2184, %v2261
        %v2266 = vadd.f32 %v2185, %v2263
        %v2267 = vld [vmem:[%s1796] sm:$0x1]
        %v2269 = vperm.slane %v2267, 0
        %v2271 = vadd.f32 %v2265, %v2269
        %v2272 = vadd.f32 %v2266, %v2269
        %v2273 = vxor.u32 %v2271, 2147483648
        %v2274 = vxor.u32 %v2272, 2147483648
        %v2275 = vmul.f32 %v2273, 1.442695
        %v2276 = vpow.pop %v2275
        %v2277 = vmul.f32 %v2274, 1.442695
        %v2278 = vpow.pop %v2277
        %v2279 = vadd.f32 %v2276, 1.0
        %v2280 = vadd.f32 %v2278, 1.0
        %v2281 = vrcp.pop %v2279
        %v2282 = vmul.f32 %v2279, %v2281
        %v2283 = vsub.f32 1.0, %v2282
        %v2284 = vmul.f32 %v2281, %v2283
        %v2285 = vadd.f32 %v2281, %v2284
        %vm2286 = vweird.f32 %v2279
        %vm2287 = vweird.f32 %v2281
        %vm2288 = vmor %vm2286, %vm2287
        %v2289 = vsel %vm2288, %v2281, %v2285
        %v2290 = vand.u32 2147483647, %v2279
        %vm2291 = vcmp.eq.f32.partialorder %v2290, 8.507059e+37
        %v2292 = vand.u32 %v2279, 2147483648
        %v2293 = vor.u32 1.1754944e-38, %v2292
        %v2294 = vsel %vm2291, %v2293, %v2289
        %v2295 = vmul.f32 1.0, %v2294
        %v2296 = vrcp.pop %v2280
        %v2297 = vmul.f32 %v2280, %v2296
        %v2298 = vsub.f32 1.0, %v2297
        %v2299 = vmul.f32 %v2296, %v2298
        %v2300 = vadd.f32 %v2296, %v2299
        %vm2301 = vweird.f32 %v2280
        %vm2302 = vweird.f32 %v2296
        %vm2303 = vmor %vm2301, %vm2302
        %v2304 = vsel %vm2303, %v2296, %v2300
        %v2305 = vand.u32 2147483647, %v2280
        %vm2306 = vcmp.eq.f32.partialorder %v2305, 8.507059e+37
        %v2307 = vand.u32 %v2280, 2147483648
        %v2308 = vor.u32 1.1754944e-38, %v2307
        %v2309 = vsel %vm2306, %v2308, %v2304
        %v2310 = vmul.f32 1.0, %v2309
        %v2311 = vmul.f32 %v2271, %v2295
        %v2312 = vmul.f32 %v2272, %v2310
        %v2313 = vpack.c.bf16 %v2312, %v2311
        %v2314 = vld [vmem:[%s1537] sm:$0xf]
        %v2315 = vld [vmem:[%s1537 + $0x4] sm:$0xf]
        %v2316 = vld [vmem:[%s1537 + $0x8] sm:$0xf]
        %v2317 = vld [vmem:[%s1537 + $0xc] sm:$0xf]
        %v2318 = vld [vmem:[%s1537 + $0x10] sm:$0xf]
        %v2319 = vld [vmem:[%s1537 + $0x14] sm:$0xf]
        %v2320 = vld [vmem:[%s1537 + $0x18] sm:$0xf]
        %v2321 = vld [vmem:[%s1537 + $0x1c] sm:$0xf]
        %v2322 = vld [vmem:[%s1537 + $0x20] sm:$0xf]
        %v2323 = vld [vmem:[%s1537 + $0x24] sm:$0xf]
        %v2324 = vld [vmem:[%s1537 + $0x28] sm:$0xf]
        %v2325 = vld [vmem:[%s1537 + $0x2c] sm:$0xf]
        %v2326 = vld [vmem:[%s1537 + $0x30] sm:$0xf]
        %v2327 = vld [vmem:[%s1537 + $0x34] sm:$0xf]
        %v2328 = vld [vmem:[%s1537 + $0x38] sm:$0xf]
        %v2329 = vld [vmem:[%s1537 + $0x3c] sm:$0xf]
        %v2330 = vld [vmem:[%s1799] sm:$0x1]
        %v2332 = vperm.slane %v2330, 0
        %v2350 = vunpack.c.l.b16 %v2314
        %v2351 = vunpack.c.l.b16 %v2315
        %v2352 = vunpack.c.l.b16 %v2316
        %v2353 = vunpack.c.l.b16 %v2317
        %v2354 = vunpack.c.l.b16 %v2318
        %v2355 = vunpack.c.l.b16 %v2319
        %v2356 = vunpack.c.l.b16 %v2320
        %v2357 = vunpack.c.l.b16 %v2321
        %v2358 = vunpack.c.l.b16 %v2322
        %v2359 = vunpack.c.l.b16 %v2323
        %v2360 = vunpack.c.l.b16 %v2324
        %v2361 = vunpack.c.l.b16 %v2325
        %v2362 = vunpack.c.l.b16 %v2326
        %v2363 = vunpack.c.l.b16 %v2327
        %v2364 = vunpack.c.l.b16 %v2328
        %v2365 = vunpack.c.l.b16 %v2329
        %v2366 = vpack.c.b16 %v2351, %v2350
        %v2367 = vpack.c.b16 %v2353, %v2352
        %v2368 = vpack.c.b16 %v2355, %v2354
        %v2369 = vpack.c.b16 %v2357, %v2356
        %v2370 = vpack.c.b16 %v2359, %v2358
        %v2371 = vpack.c.b16 %v2361, %v2360
        %v2372 = vpack.c.b16 %v2363, %v2362
        %v2373 = vpack.c.b16 %v2365, %v2364
        %2382 = vmatpush.bf16.msra.mxu0 %v2373
        %2383 = vmatpush.bf16.msra.mxu0 %v2372
        %2384 = vmatpush.bf16.msra.mxu0 %v2371
        %2385 = vmatpush.bf16.msra.mxu0 %v2370
        %2386 = vmatpush.bf16.msra.mxu0 %v2369
        %2387 = vmatpush.bf16.msra.mxu0 %v2368
        %2388 = vmatpush.bf16.msra.mxu0 %v2367
        %2389 = vmatpush.bf16.msra.mxu0 %v2366
        %2390 = vmatmul.bf16.gmra.mxu0 %v2313
        %v2391 = vpop.f32.mrf.mxu0
        %v2392 = vadd.f32 %v2332, %v2391
        %v2393 = vpop.f32.mrf.mxu0
        %v2394 = vadd.f32 %v2332, %v2393
        %2395 = vdwg.mxu0
        %v2396 = vxor.u32 %v2392, 2147483648
        %v2397 = vxor.u32 %v2394, 2147483648
        %v2398 = vmul.f32 %v2396, 1.442695
        %v2399 = vpow.pop %v2398
        %v2400 = vmul.f32 %v2397, 1.442695
        %v2401 = vpow.pop %v2400
        %v2402 = vadd.f32 %v2399, 1.0
        %v2403 = vadd.f32 %v2401, 1.0
        %v2404 = vrcp.pop %v2402
        %v2405 = vmul.f32 %v2402, %v2404
        %v2406 = vsub.f32 1.0, %v2405
        %v2407 = vmul.f32 %v2404, %v2406
        %v2408 = vadd.f32 %v2404, %v2407
        %vm2409 = vweird.f32 %v2402
        %vm2410 = vweird.f32 %v2404
        %vm2411 = vmor %vm2409, %vm2410
        %v2412 = vsel %vm2411, %v2404, %v2408
        %v2413 = vand.u32 2147483647, %v2402
        %vm2414 = vcmp.eq.f32.partialorder %v2413, 8.507059e+37
        %v2415 = vand.u32 %v2402, 2147483648
        %v2416 = vor.u32 1.1754944e-38, %v2415
        %v2417 = vsel %vm2414, %v2416, %v2412
        %v2418 = vmul.f32 1.0, %v2417
        %v2419 = vrcp.pop %v2403
        %v2420 = vmul.f32 %v2403, %v2419
        %v2421 = vsub.f32 1.0, %v2420
        %v2422 = vmul.f32 %v2419, %v2421
        %v2423 = vadd.f32 %v2419, %v2422
        %vm2424 = vweird.f32 %v2403
        %vm2425 = vweird.f32 %v2419
        %vm2426 = vmor %vm2424, %vm2425
        %v2427 = vsel %vm2426, %v2419, %v2423
        %v2428 = vand.u32 2147483647, %v2403
        %vm2429 = vcmp.eq.f32.partialorder %v2428, 8.507059e+37
        %v2430 = vand.u32 %v2403, 2147483648
        %v2431 = vor.u32 1.1754944e-38, %v2430
        %v2432 = vsel %vm2429, %v2431, %v2427
        %v2433 = vmul.f32 1.0, %v2432
        %v2434 = vmul.f32 %v2392, %v2418
        %v2435 = vmul.f32 %v2394, %v2433
        %v2436 = vpack.c.bf16 %v2435, %v2434
        %v2437 = vld [vmem:[%s1547] sm:$0xf]
        %v2438 = vld [vmem:[%s1547 + $0x4] sm:$0xf]
        %v2439 = vld [vmem:[%s1547 + $0x8] sm:$0xf]
        %v2440 = vld [vmem:[%s1547 + $0xc] sm:$0xf]
        %v2441 = vld [vmem:[%s1547 + $0x10] sm:$0xf]
        %v2442 = vld [vmem:[%s1547 + $0x14] sm:$0xf]
        %v2443 = vld [vmem:[%s1547 + $0x18] sm:$0xf]
        %v2444 = vld [vmem:[%s1547 + $0x1c] sm:$0xf]
        %v2445 = vld [vmem:[%s1547 + $0x20] sm:$0xf]
        %v2446 = vld [vmem:[%s1547 + $0x24] sm:$0xf]
        %v2447 = vld [vmem:[%s1547 + $0x28] sm:$0xf]
        %v2448 = vld [vmem:[%s1547 + $0x2c] sm:$0xf]
        %v2449 = vld [vmem:[%s1547 + $0x30] sm:$0xf]
        %v2450 = vld [vmem:[%s1547 + $0x34] sm:$0xf]
        %v2451 = vld [vmem:[%s1547 + $0x38] sm:$0xf]
        %v2452 = vld [vmem:[%s1547 + $0x3c] sm:$0xf]
        %v2453 = vld [vmem:[%s1802] sm:$0x1]
        %v2455 = vperm.slane %v2453, 0
        %v2473 = vunpack.c.l.b16 %v2437
        %v2474 = vunpack.c.l.b16 %v2438
        %v2475 = vunpack.c.l.b16 %v2439
        %v2476 = vunpack.c.l.b16 %v2440
        %v2477 = vunpack.c.l.b16 %v2441
        %v2478 = vunpack.c.l.b16 %v2442
        %v2479 = vunpack.c.l.b16 %v2443
        %v2480 = vunpack.c.l.b16 %v2444
        %v2481 = vunpack.c.l.b16 %v2445
        %v2482 = vunpack.c.l.b16 %v2446
        %v2483 = vunpack.c.l.b16 %v2447
        %v2484 = vunpack.c.l.b16 %v2448
        %v2485 = vunpack.c.l.b16 %v2449
        %v2486 = vunpack.c.l.b16 %v2450
        %v2487 = vunpack.c.l.b16 %v2451
        %v2488 = vunpack.c.l.b16 %v2452
        %v2489 = vpack.c.b16 %v2474, %v2473
        %v2490 = vpack.c.b16 %v2476, %v2475
        %v2491 = vpack.c.b16 %v2478, %v2477
        %v2492 = vpack.c.b16 %v2480, %v2479
        %v2493 = vpack.c.b16 %v2482, %v2481
        %v2494 = vpack.c.b16 %v2484, %v2483
        %v2495 = vpack.c.b16 %v2486, %v2485
        %v2496 = vpack.c.b16 %v2488, %v2487
        %2505 = vmatpush.bf16.msra.mxu0 %v2496
        %2506 = vmatpush.bf16.msra.mxu0 %v2495
        %2507 = vmatpush.bf16.msra.mxu0 %v2494
        %2508 = vmatpush.bf16.msra.mxu0 %v2493
        %2509 = vmatpush.bf16.msra.mxu0 %v2492
        %2510 = vmatpush.bf16.msra.mxu0 %v2491
        %2511 = vmatpush.bf16.msra.mxu0 %v2490
        %2512 = vmatpush.bf16.msra.mxu0 %v2489
        %2513 = vmatmul.bf16.gmra.mxu0 %v2436
        %v2514 = vpop.f32.mrf.mxu0
        %v2515 = vadd.f32 %v2455, %v2514
        %v2516 = vpop.f32.mrf.mxu0
        %v2517 = vadd.f32 %v2455, %v2516
        %2518 = vdwg.mxu0
        %v2519 = vxor.u32 %v2515, 2147483648
        %v2520 = vxor.u32 %v2517, 2147483648
        %v2521 = vmul.f32 %v2519, 1.442695
        %v2522 = vpow.pop %v2521
        %v2523 = vmul.f32 %v2520, 1.442695
        %v2524 = vpow.pop %v2523
        %v2525 = vadd.f32 %v2522, 1.0
        %v2526 = vadd.f32 %v2524, 1.0
        %v2527 = vrcp.pop %v2525
        %v2528 = vmul.f32 %v2525, %v2527
        %v2529 = vsub.f32 1.0, %v2528
        %v2530 = vmul.f32 %v2527, %v2529
        %v2531 = vadd.f32 %v2527, %v2530
        %vm2532 = vweird.f32 %v2525
        %vm2533 = vweird.f32 %v2527
        %vm2534 = vmor %vm2532, %vm2533
        %v2535 = vsel %vm2534, %v2527, %v2531
        %v2536 = vand.u32 2147483647, %v2525
        %vm2537 = vcmp.eq.f32.partialorder %v2536, 8.507059e+37
        %v2538 = vand.u32 %v2525, 2147483648
        %v2539 = vor.u32 1.1754944e-38, %v2538
        %v2540 = vsel %vm2537, %v2539, %v2535
        %v2541 = vmul.f32 1.0, %v2540
        %v2542 = vrcp.pop %v2526
        %v2543 = vmul.f32 %v2526, %v2542
        %v2544 = vsub.f32 1.0, %v2543
        %v2545 = vmul.f32 %v2542, %v2544
        %v2546 = vadd.f32 %v2542, %v2545
        %vm2547 = vweird.f32 %v2526
        %vm2548 = vweird.f32 %v2542
        %vm2549 = vmor %vm2547, %vm2548
        %v2550 = vsel %vm2549, %v2542, %v2546
        %v2551 = vand.u32 2147483647, %v2526
        %vm2552 = vcmp.eq.f32.partialorder %v2551, 8.507059e+37
        %v2553 = vand.u32 %v2526, 2147483648
        %v2554 = vor.u32 1.1754944e-38, %v2553
        %v2555 = vsel %vm2552, %v2554, %v2550
        %v2556 = vmul.f32 1.0, %v2555
        %v2557 = vmul.f32 %v2515, %v2541
        %v2558 = vmul.f32 %v2517, %v2556
        %v2559 = vld [vmem:[%s1556] sm:$0x1]
        %v2561 = vperm.slane %v2559, 0
        %v2563 = vmul.f32 %v2557, %v2561
        %v2564 = vmul.f32 %v2558, %v2561
        %2565 = vadd.xlane.f32.xlu0 %v2563
        %v2566 = vpop.xlane.xlu0 %2565
        %2567 = vadd.xlane.f32.xlu0 %v2564
        %v2568 = vpop.xlane.xlu0 %2567
        %v2569 = vmul.f32 %v1994, %v2566
        %v2570 = vmul.f32 %v1995, %v2568
        %v2571 = vld [vmem:[#allocation3] sm:$0xff]
        %v2572 = vld [vmem:[#allocation3 + $0x8] sm:$0xff]
        %v2573 = vld [vmem:[#allocation3 + $0x10] sm:$0xff]
        %v2574 = vld [vmem:[#allocation3 + $0x18] sm:$0xff]
        %v2575 = vpack.c.bf16 %v2570, %v2569
        %2577 = vxpose.xlu0.c.b16.start [1/8] %v1889, 128
        %2578 = vxpose.xlu0.c.b16.cont [2/8] 0, 128
        %2579 = vxpose.xlu0.c.b16.cont [3/8] 0, 128
        %2580 = vxpose.xlu0.c.b16.cont [4/8] 0, 128
        %2581 = vxpose.xlu0.c.b16.cont [5/8] 0, 128
        %2582 = vxpose.xlu0.c.b16.cont [6/8] 0, 128
        %2583 = vxpose.xlu0.c.b16.cont [7/8] 0, 128
        %2584 = vxpose.xlu0.c.b16.end [8/8] 0, 128
        %v2585 = vpop.trf.xlu0
        %v2586 = vpop.trf.xlu0
        %v2587 = vpop.trf.xlu0
        %v2588 = vpop.trf.xlu0
        %v2589 = vpop.trf.xlu0
        %v2590 = vpop.trf.xlu0
        %v2591 = vpop.trf.xlu0
        %v2592 = vpop.trf.xlu0
        %v2594 = vsel %vm1890, %v2585, 0
        %2596 = vmatpush.bf16.msra.mxu0 0
        %2597 = vmatpush.bf16.msra.mxu0 0
        %2598 = vmatpush.bf16.msra.mxu0 0
        %2599 = vmatpush.bf16.msra.mxu0 0
        %2600 = vmatpush.bf16.msra.mxu0 0
        %2601 = vmatpush.bf16.msra.mxu0 0
        %2602 = vmatpush.bf16.msra.mxu0 0
        %2603 = vmatpush.bf16.msra.mxu0 %v2436
        %2604 = vmatmul.bf16.gmra.mxu0 %v2594
        %v2605 = vpop.f32.mrf.mxu0
        %v2606 = vadd.f32 0.0, %v2605
        %v2607 = vpop.f32.mrf.mxu0
        %v2608 = vadd.f32 0.0, %v2607
        %2609 = vdwg.mxu0
        %2610 = vmatpush.bf16.msra.mxu0 0
        %2611 = vmatpush.bf16.msra.mxu0 0
        %2612 = vmatpush.bf16.msra.mxu0 0
        %2613 = vmatpush.bf16.msra.mxu0 0
        %2614 = vmatpush.bf16.msra.mxu0 0
        %2615 = vmatpush.bf16.msra.mxu0 0
        %2616 = vmatpush.bf16.msra.mxu0 0
        %2617 = vmatpush.bf16.msra.mxu0 %v2575
        %2618 = vmatmul.bf16.gmra.mxu0 %v2594
        %v2619 = vpop.f32.mrf.mxu0
        %v2620 = vadd.f32 0.0, %v2619
        %v2621 = vpop.f32.mrf.mxu0
        %v2622 = vadd.f32 0.0, %v2621
        %2623 = vdwg.mxu0
        %v2624 = vadd.f32 %v2571, %v2606
        %v2625 = vadd.f32 %v2572, %v2620
        %v2626 = vadd.f32 %v2573, %v2608
        %v2627 = vadd.f32 %v2574, %v2622
        %2628 = vst [vmem:[#allocation3] sm:$0xff] %v2624
        %2629 = vst [vmem:[#allocation3 + $0x8] sm:$0xff] %v2625
        %2630 = vst [vmem:[#allocation3 + $0x10] sm:$0xff] %v2626
        %2631 = vst [vmem:[#allocation3 + $0x18] sm:$0xff] %v2627
        %p2632 = scmp.eq.s32.totalorder %s98, 1
        // Predicated region
        $region253: #{tpu_custom_call.1} parent=163 // pred_check
          %p2633 = pneg %p2632
        $region254: #{tpu_custom_call.1} parent=163 // pred_check_branch
          %2635 = sbr.rel (%p2633) target = $region256
        $region255: #{tpu_custom_call.1} parent=163 // pred_region
          %v2636 = vld [vmem:[#allocation2] sm:$0xff]
          %v2637 = vld [vmem:[#allocation2 + $0x10] sm:$0xff]
          %v2638 = vld [vmem:[#allocation3] sm:$0xff]
          %v2639 = vld [vmem:[#allocation3 + $0x10] sm:$0xff]
          %v2640 = vpack.c.bf16 %v2637, %v2636
          %v2641 = vld [vmem:[%s1566] sm:$0xf]
          %v2642 = vld [vmem:[%s1566 + $0x4] sm:$0xf]
          %v2643 = vld [vmem:[%s1566 + $0x8] sm:$0xf]
          %v2644 = vld [vmem:[%s1566 + $0xc] sm:$0xf]
          %v2645 = vld [vmem:[%s1566 + $0x10] sm:$0xf]
          %v2646 = vld [vmem:[%s1566 + $0x14] sm:$0xf]
          %v2647 = vld [vmem:[%s1566 + $0x18] sm:$0xf]
          %v2648 = vld [vmem:[%s1566 + $0x1c] sm:$0xf]
          %v2649 = vld [vmem:[%s1566 + $0x20] sm:$0xf]
          %v2650 = vld [vmem:[%s1566 + $0x24] sm:$0xf]
          %v2651 = vld [vmem:[%s1566 + $0x28] sm:$0xf]
          %v2652 = vld [vmem:[%s1566 + $0x2c] sm:$0xf]
          %v2653 = vld [vmem:[%s1566 + $0x30] sm:$0xf]
          %v2654 = vld [vmem:[%s1566 + $0x34] sm:$0xf]
          %v2655 = vld [vmem:[%s1566 + $0x38] sm:$0xf]
          %v2656 = vld [vmem:[%s1566 + $0x3c] sm:$0xf]
          %v2657 = vpack.c.bf16 %v2639, %v2638
          %v2658 = vld [vmem:[%s1576] sm:$0xf]
          %v2659 = vld [vmem:[%s1576 + $0x4] sm:$0xf]
          %v2660 = vld [vmem:[%s1576 + $0x8] sm:$0xf]
          %v2661 = vld [vmem:[%s1576 + $0xc] sm:$0xf]
          %v2662 = vld [vmem:[%s1576 + $0x10] sm:$0xf]
          %v2663 = vld [vmem:[%s1576 + $0x14] sm:$0xf]
          %v2664 = vld [vmem:[%s1576 + $0x18] sm:$0xf]
          %v2665 = vld [vmem:[%s1576 + $0x1c] sm:$0xf]
          %v2666 = vld [vmem:[%s1576 + $0x20] sm:$0xf]
          %v2667 = vld [vmem:[%s1576 + $0x24] sm:$0xf]
          %v2668 = vld [vmem:[%s1576 + $0x28] sm:$0xf]
          %v2669 = vld [vmem:[%s1576 + $0x2c] sm:$0xf]
          %v2670 = vld [vmem:[%s1576 + $0x30] sm:$0xf]
          %v2671 = vld [vmem:[%s1576 + $0x34] sm:$0xf]
          %v2672 = vld [vmem:[%s1576 + $0x38] sm:$0xf]
          %v2673 = vld [vmem:[%s1576 + $0x3c] sm:$0xf]
          %v2690 = vunpack.c.l.b16 %v2658
          %v2691 = vunpack.c.l.b16 %v2659
          %v2692 = vunpack.c.l.b16 %v2660
          %v2693 = vunpack.c.l.b16 %v2661
          %v2694 = vunpack.c.l.b16 %v2662
          %v2695 = vunpack.c.l.b16 %v2663
          %v2696 = vunpack.c.l.b16 %v2664
          %v2697 = vunpack.c.l.b16 %v2665
          %v2698 = vunpack.c.l.b16 %v2666
          %v2699 = vunpack.c.l.b16 %v2667
          %v2700 = vunpack.c.l.b16 %v2668
          %v2701 = vunpack.c.l.b16 %v2669
          %v2702 = vunpack.c.l.b16 %v2670
          %v2703 = vunpack.c.l.b16 %v2671
          %v2704 = vunpack.c.l.b16 %v2672
          %v2705 = vunpack.c.l.b16 %v2673
          %v2706 = vpack.c.b16 %v2691, %v2690
          %v2707 = vpack.c.b16 %v2693, %v2692
          %v2708 = vpack.c.b16 %v2695, %v2694
          %v2709 = vpack.c.b16 %v2697, %v2696
          %v2710 = vpack.c.b16 %v2699, %v2698
          %v2711 = vpack.c.b16 %v2701, %v2700
          %v2712 = vpack.c.b16 %v2703, %v2702
          %v2713 = vpack.c.b16 %v2705, %v2704
          %2722 = vmatpush.bf16.msra.mxu0 %v2713
          %2723 = vmatpush.bf16.msra.mxu0 %v2712
          %2724 = vmatpush.bf16.msra.mxu0 %v2711
          %2725 = vmatpush.bf16.msra.mxu0 %v2710
          %2726 = vmatpush.bf16.msra.mxu0 %v2709
          %2727 = vmatpush.bf16.msra.mxu0 %v2708
          %2728 = vmatpush.bf16.msra.mxu0 %v2707
          %2729 = vmatpush.bf16.msra.mxu0 %v2706
          %2730 = vmatmul.bf16.gmra.mxu0 %v2657
          %v2731 = vpop.f32.mrf.mxu0
          %v2732 = vadd.f32 0.0, %v2731
          %v2733 = vpop.f32.mrf.mxu0
          %v2734 = vadd.f32 0.0, %v2733
          %2735 = vdwg.mxu0
          %v2752 = vunpack.c.l.b16 %v2641
          %v2753 = vunpack.c.l.b16 %v2642
          %v2754 = vunpack.c.l.b16 %v2643
          %v2755 = vunpack.c.l.b16 %v2644
          %v2756 = vunpack.c.l.b16 %v2645
          %v2757 = vunpack.c.l.b16 %v2646
          %v2758 = vunpack.c.l.b16 %v2647
          %v2759 = vunpack.c.l.b16 %v2648
          %v2760 = vunpack.c.l.b16 %v2649
          %v2761 = vunpack.c.l.b16 %v2650
          %v2762 = vunpack.c.l.b16 %v2651
          %v2763 = vunpack.c.l.b16 %v2652
          %v2764 = vunpack.c.l.b16 %v2653
          %v2765 = vunpack.c.l.b16 %v2654
          %v2766 = vunpack.c.l.b16 %v2655
          %v2767 = vunpack.c.l.b16 %v2656
          %v2768 = vpack.c.b16 %v2753, %v2752
          %v2769 = vpack.c.b16 %v2755, %v2754
          %v2770 = vpack.c.b16 %v2757, %v2756
          %v2771 = vpack.c.b16 %v2759, %v2758
          %v2772 = vpack.c.b16 %v2761, %v2760
          %v2773 = vpack.c.b16 %v2763, %v2762
          %v2774 = vpack.c.b16 %v2765, %v2764
          %v2775 = vpack.c.b16 %v2767, %v2766
          %2784 = vmatpush.bf16.msra.mxu0 %v2775
          %2785 = vmatpush.bf16.msra.mxu0 %v2774
          %2786 = vmatpush.bf16.msra.mxu0 %v2773
          %2787 = vmatpush.bf16.msra.mxu0 %v2772
          %2788 = vmatpush.bf16.msra.mxu0 %v2771
          %2789 = vmatpush.bf16.msra.mxu0 %v2770
          %2790 = vmatpush.bf16.msra.mxu0 %v2769
          %2791 = vmatpush.bf16.msra.mxu0 %v2768
          %2792 = vmatmul.bf16.gmra.mxu0 %v2640
          %v2793 = vpop.f32.mrf.mxu0
          %v2794 = vadd.f32 %v2732, %v2793
          %v2795 = vpop.f32.mrf.mxu0
          %v2796 = vadd.f32 %v2734, %v2795
          %2797 = vdwg.mxu0
          %v2798 = vld [vmem:[%s1805] sm:$0x1]
          %v2800 = vperm.slane %v2798, 0
          %v2802 = vadd.f32 %v2794, %v2800
          %v2803 = vadd.f32 %v2796, %v2800
          %v2804 = vxor.u32 %v2802, 2147483648
          %v2805 = vxor.u32 %v2803, 2147483648
          %v2806 = vmul.f32 %v2804, 1.442695
          %v2807 = vpow.pop %v2806
          %v2808 = vmul.f32 %v2805, 1.442695
          %v2809 = vpow.pop %v2808
          %v2810 = vadd.f32 %v2807, 1.0
          %v2811 = vadd.f32 %v2809, 1.0
          %v2812 = vrcp.pop %v2810
          %v2813 = vmul.f32 %v2810, %v2812
          %v2814 = vsub.f32 1.0, %v2813
          %v2815 = vmul.f32 %v2812, %v2814
          %v2816 = vadd.f32 %v2812, %v2815
          %vm2817 = vweird.f32 %v2810
          %vm2818 = vweird.f32 %v2812
          %vm2819 = vmor %vm2817, %vm2818
          %v2820 = vsel %vm2819, %v2812, %v2816
          %v2821 = vand.u32 2147483647, %v2810
          %vm2822 = vcmp.eq.f32.partialorder %v2821, 8.507059e+37
          %v2823 = vand.u32 %v2810, 2147483648
          %v2824 = vor.u32 1.1754944e-38, %v2823
          %v2825 = vsel %vm2822, %v2824, %v2820
          %v2826 = vmul.f32 1.0, %v2825
          %v2827 = vrcp.pop %v2811
          %v2828 = vmul.f32 %v2811, %v2827
          %v2829 = vsub.f32 1.0, %v2828
          %v2830 = vmul.f32 %v2827, %v2829
          %v2831 = vadd.f32 %v2827, %v2830
          %vm2832 = vweird.f32 %v2811
          %vm2833 = vweird.f32 %v2827
          %vm2834 = vmor %vm2832, %vm2833
          %v2835 = vsel %vm2834, %v2827, %v2831
          %v2836 = vand.u32 2147483647, %v2811
          %vm2837 = vcmp.eq.f32.partialorder %v2836, 8.507059e+37
          %v2838 = vand.u32 %v2811, 2147483648
          %v2839 = vor.u32 1.1754944e-38, %v2838
          %v2840 = vsel %vm2837, %v2839, %v2835
          %v2841 = vmul.f32 1.0, %v2840
          %v2842 = vmul.f32 %v2802, %v2826
          %v2843 = vmul.f32 %v2803, %v2841
          %v2844 = vpack.c.bf16 %v2843, %v2842
          %v2845 = vld [vmem:[%s1586] sm:$0xf]
          %v2846 = vld [vmem:[%s1586 + $0x4] sm:$0xf]
          %v2847 = vld [vmem:[%s1586 + $0x8] sm:$0xf]
          %v2848 = vld [vmem:[%s1586 + $0xc] sm:$0xf]
          %v2849 = vld [vmem:[%s1586 + $0x10] sm:$0xf]
          %v2850 = vld [vmem:[%s1586 + $0x14] sm:$0xf]
          %v2851 = vld [vmem:[%s1586 + $0x18] sm:$0xf]
          %v2852 = vld [vmem:[%s1586 + $0x1c] sm:$0xf]
          %v2853 = vld [vmem:[%s1586 + $0x20] sm:$0xf]
          %v2854 = vld [vmem:[%s1586 + $0x24] sm:$0xf]
          %v2855 = vld [vmem:[%s1586 + $0x28] sm:$0xf]
          %v2856 = vld [vmem:[%s1586 + $0x2c] sm:$0xf]
          %v2857 = vld [vmem:[%s1586 + $0x30] sm:$0xf]
          %v2858 = vld [vmem:[%s1586 + $0x34] sm:$0xf]
          %v2859 = vld [vmem:[%s1586 + $0x38] sm:$0xf]
          %v2860 = vld [vmem:[%s1586 + $0x3c] sm:$0xf]
          %v2877 = vunpack.c.l.b16 %v2845
          %v2878 = vunpack.c.l.b16 %v2846
          %v2879 = vunpack.c.l.b16 %v2847
          %v2880 = vunpack.c.l.b16 %v2848
          %v2881 = vunpack.c.l.b16 %v2849
          %v2882 = vunpack.c.l.b16 %v2850
          %v2883 = vunpack.c.l.b16 %v2851
          %v2884 = vunpack.c.l.b16 %v2852
          %v2885 = vunpack.c.l.b16 %v2853
          %v2886 = vunpack.c.l.b16 %v2854
          %v2887 = vunpack.c.l.b16 %v2855
          %v2888 = vunpack.c.l.b16 %v2856
          %v2889 = vunpack.c.l.b16 %v2857
          %v2890 = vunpack.c.l.b16 %v2858
          %v2891 = vunpack.c.l.b16 %v2859
          %v2892 = vunpack.c.l.b16 %v2860
          %v2893 = vpack.c.b16 %v2878, %v2877
          %v2894 = vpack.c.b16 %v2880, %v2879
          %v2895 = vpack.c.b16 %v2882, %v2881
          %v2896 = vpack.c.b16 %v2884, %v2883
          %v2897 = vpack.c.b16 %v2886, %v2885
          %v2898 = vpack.c.b16 %v2888, %v2887
          %v2899 = vpack.c.b16 %v2890, %v2889
          %v2900 = vpack.c.b16 %v2892, %v2891
          %2909 = vmatpush.bf16.msra.mxu0 %v2900
          %2910 = vmatpush.bf16.msra.mxu0 %v2899
          %2911 = vmatpush.bf16.msra.mxu0 %v2898
          %2912 = vmatpush.bf16.msra.mxu0 %v2897
          %2913 = vmatpush.bf16.msra.mxu0 %v2896
          %2914 = vmatpush.bf16.msra.mxu0 %v2895
          %2915 = vmatpush.bf16.msra.mxu0 %v2894
          %2916 = vmatpush.bf16.msra.mxu0 %v2893
          %2917 = vmatmul.bf16.gmra.mxu0 %v2844
          %v2918 = vpop.f32.mrf.mxu0
          %v2919 = vadd.f32 0.0, %v2918
          %v2920 = vpop.f32.mrf.mxu0
          %v2921 = vadd.f32 0.0, %v2920
          %2922 = vdwg.mxu0
          %v2923 = vadd.f32 %v2636, %v2919
          %v2924 = vadd.f32 %v2637, %v2921
          %v2925 = vld [vmem:[%s1595] sm:$0x1]
          %v2927 = vperm.slane %v2925, 0
          %v2929 = vadd.f32 %v2923, %v2927
          %v2930 = vadd.f32 %v2924, %v2927
          %2931 = vst [vmem:[#allocation2] sm:$0xff] %v2929
          %2932 = vst [vmem:[#allocation2 + $0x10] sm:$0xff] %v2930
          %v2933 = vld [vmem:[#allocation2 + $0x8] sm:$0xff]
          %v2934 = vld [vmem:[#allocation2 + $0x18] sm:$0xff]
          %v2935 = vld [vmem:[#allocation3 + $0x8] sm:$0xff]
          %v2936 = vld [vmem:[#allocation3 + $0x18] sm:$0xff]
          %v2937 = vld [vmem:[%s13] sm:$0xff]
          %v2938 = vld [vmem:[%s13 + $0x8] sm:$0xff]
          %2940 = vset.pattern.permute.xlu0 0
          %2941 = vperm.xlu0 %2940, %v2937
          %v2942 = vpop.permute.xlu0 %2941
          %2945 = vset.pattern.permute.xlu0 0
          %2946 = vperm.xlu0 %2945, %v2938
          %v2947 = vpop.permute.xlu0 %2946
          %v2949 = vmul.f32 %v2935, %v2942
          %v2950 = vmul.f32 %v2936, %v2947
          %v2951 = vadd.f32 %v2933, %v2949
          %v2952 = vadd.f32 %v2934, %v2950
          %2953 = vst [vmem:[#allocation2 + $0x8] sm:$0xff] %v2951
          %2954 = vst [vmem:[#allocation2 + $0x18] sm:$0xff] %v2952
        $region256: #{tpu_custom_call.1} parent=163 // pred_fallthru
          _
        %p2955 = scmp.eq.s32.totalorder %s97, 2
        %p2956 = pnand %p2955, %p2632
        %p2957 = pneg %p2956
        // Predicated region
        $region257: #{tpu_custom_call.1} parent=163 // pred_check
          _
        $region258: #{tpu_custom_call.1} parent=163 // pred_check_branch
          %2959 = sbr.rel (%p2956) target = $region260
        $region259: #{tpu_custom_call.1} parent=163 // pred_region
          %v2960 = vld [vmem:[#allocation2] sm:$0xff]
          %v2961 = vld [vmem:[#allocation2 + $0x10] sm:$0xff]
          %v2962 = vpack.c.bf16 %v2961, %v2960
          %v2963 = vld [vmem:[%s11] sm:$0xf]
          %v2964 = vld [vmem:[%s11 + $0x4] sm:$0xf]
          %v2967 = vunpack.c.l.b16 %v2963
          %v2968 = vunpack.c.l.b16 %v2964
          %v2969 = vpack.c.b16 %v2968, %v2967
          %2971 = vxpose.xlu0.c.b16.start [1/8] %v2969, 128
          %2972 = vxpose.xlu0.c.b16.cont [2/8] 0, 128
          %2973 = vxpose.xlu0.c.b16.cont [3/8] 0, 128
          %2974 = vxpose.xlu0.c.b16.cont [4/8] 0, 128
          %2975 = vxpose.xlu0.c.b16.cont [5/8] 0, 128
          %2976 = vxpose.xlu0.c.b16.cont [6/8] 0, 128
          %2977 = vxpose.xlu0.c.b16.cont [7/8] 0, 128
          %2978 = vxpose.xlu0.c.b16.end [8/8] 0, 128
          %v2979 = vpop.trf.xlu0
          %v2980 = vpop.trf.xlu0
          %v2981 = vpop.trf.xlu0
          %v2982 = vpop.trf.xlu0
          %v2983 = vpop.trf.xlu0
          %v2984 = vpop.trf.xlu0
          %v2985 = vpop.trf.xlu0
          %v2986 = vpop.trf.xlu0
          %v2988 = vsel %vm1890, %v2979, 0
          %2990 = vmatpush.bf16.msra.mxu0 0
          %2991 = vmatpush.bf16.msra.mxu0 0
          %2992 = vmatpush.bf16.msra.mxu0 0
          %2993 = vmatpush.bf16.msra.mxu0 0
          %2994 = vmatpush.bf16.msra.mxu0 0
          %2995 = vmatpush.bf16.msra.mxu0 0
          %2996 = vmatpush.bf16.msra.mxu0 0
          %2997 = vmatpush.bf16.msra.mxu0 %v2962
          %2998 = vmatmul.bf16.gmra.mxu0 %v2988
          %v2999 = vpop.f32.mrf.mxu0
          %v3000 = vadd.f32 0.0, %v2999
          %v3001 = vpop.f32.mrf.mxu0
          %3002 = vdwg.mxu0
          %v3003 = vld [vmem:[%s15] sm:$0xff]
          %3005 = vset.pattern.permute.xlu0 0
          %3006 = vperm.xlu0 %3005, %v3003
          %v3007 = vpop.permute.xlu0 %3006
          %v3009 = vmul.f32 %v3000, %v3007
          %v3010 = vpack.c.bf16 %v3009, %v3009
          %vm3011 = vcmask 64512
          %v3013 = vsel %vm3011, %v2969, 0
          %vm3015 = vcmask 1043456
          %v3017 = vsel %vm3015, %v3010, 0
          %3019 = vmatpush.bf16.msra.mxu0 0
          %3020 = vmatpush.bf16.msra.mxu0 0
          %3021 = vmatpush.bf16.msra.mxu0 0
          %3022 = vmatpush.bf16.msra.mxu0 0
          %3023 = vmatpush.bf16.msra.mxu0 0
          %3024 = vmatpush.bf16.msra.mxu0 0
          %3025 = vmatpush.bf16.msra.mxu0 0
          %3026 = vmatpush.bf16.msra.mxu0 %v3017
          %3027 = vmatmul.bf16.gmra.mxu0 %v3013
          %v3028 = vpop.f32.mrf.mxu0
          %v3029 = vadd.f32 0.0, %v3028
          %v3030 = vpop.f32.mrf.mxu0
          %v3031 = vadd.f32 0.0, %v3030
          %3032 = vdwg.mxu0
          %v3033 = vpack.c.bf16 %v3031, %v3029
          %v3034 = vld [vmem:[%s59] sm:$0xf]
          %v3035 = vld [vmem:[%s59 + $0x4] sm:$0xf]
          %v3036 = vld [vmem:[%s59 + $0x8] sm:$0xf]
          %v3037 = vld [vmem:[%s59 + $0xc] sm:$0xf]
          %v3038 = vld [vmem:[%s59 + $0x10] sm:$0xf]
          %v3039 = vld [vmem:[%s59 + $0x14] sm:$0xf]
          %v3040 = vld [vmem:[%s59 + $0x18] sm:$0xf]
          %v3041 = vld [vmem:[%s59 + $0x1c] sm:$0xf]
          %v3042 = vld [vmem:[%s59 + $0x20] sm:$0xf]
          %v3043 = vld [vmem:[%s59 + $0x24] sm:$0xf]
          %v3044 = vld [vmem:[%s59 + $0x28] sm:$0xf]
          %v3045 = vld [vmem:[%s59 + $0x2c] sm:$0xf]
          %v3046 = vld [vmem:[%s59 + $0x30] sm:$0xf]
          %v3047 = vld [vmem:[%s59 + $0x34] sm:$0xf]
          %v3048 = vld [vmem:[%s59 + $0x38] sm:$0xf]
          %v3049 = vld [vmem:[%s59 + $0x3c] sm:$0xf]
          %v3050 = vld [vmem:[%s61] sm:$0xf]
          %v3051 = vld [vmem:[%s61 + $0x4] sm:$0xf]
          %v3052 = vld [vmem:[%s61 + $0x8] sm:$0xf]
          %v3053 = vld [vmem:[%s61 + $0xc] sm:$0xf]
          %v3054 = vld [vmem:[%s61 + $0x10] sm:$0xf]
          %v3055 = vld [vmem:[%s61 + $0x14] sm:$0xf]
          %v3056 = vld [vmem:[%s61 + $0x18] sm:$0xf]
          %v3057 = vld [vmem:[%s61 + $0x1c] sm:$0xf]
          %v3058 = vld [vmem:[%s61 + $0x20] sm:$0xf]
          %v3059 = vld [vmem:[%s61 + $0x24] sm:$0xf]
          %v3060 = vld [vmem:[%s61 + $0x28] sm:$0xf]
          %v3061 = vld [vmem:[%s61 + $0x2c] sm:$0xf]
          %v3062 = vld [vmem:[%s61 + $0x30] sm:$0xf]
          %v3063 = vld [vmem:[%s61 + $0x34] sm:$0xf]
          %v3064 = vld [vmem:[%s61 + $0x38] sm:$0xf]
          %v3065 = vld [vmem:[%s61 + $0x3c] sm:$0xf]
          %v3082 = vunpack.c.l.b16 %v3050
          %v3083 = vunpack.c.l.b16 %v3051
          %v3084 = vunpack.c.l.b16 %v3052
          %v3085 = vunpack.c.l.b16 %v3053
          %v3086 = vunpack.c.l.b16 %v3054
          %v3087 = vunpack.c.l.b16 %v3055
          %v3088 = vunpack.c.l.b16 %v3056
          %v3089 = vunpack.c.l.b16 %v3057
          %v3090 = vunpack.c.l.b16 %v3058
          %v3091 = vunpack.c.l.b16 %v3059
          %v3092 = vunpack.c.l.b16 %v3060
          %v3093 = vunpack.c.l.b16 %v3061
          %v3094 = vunpack.c.l.b16 %v3062
          %v3095 = vunpack.c.l.b16 %v3063
          %v3096 = vunpack.c.l.b16 %v3064
          %v3097 = vunpack.c.l.b16 %v3065
          %v3098 = vpack.c.b16 %v3083, %v3082
          %v3099 = vpack.c.b16 %v3085, %v3084
          %v3100 = vpack.c.b16 %v3087, %v3086
          %v3101 = vpack.c.b16 %v3089, %v3088
          %v3102 = vpack.c.b16 %v3091, %v3090
          %v3103 = vpack.c.b16 %v3093, %v3092
          %v3104 = vpack.c.b16 %v3095, %v3094
          %v3105 = vpack.c.b16 %v3097, %v3096
          %3114 = vmatpush.bf16.msra.mxu0 %v3105
          %3115 = vmatpush.bf16.msra.mxu0 %v3104
          %3116 = vmatpush.bf16.msra.mxu0 %v3103
          %3117 = vmatpush.bf16.msra.mxu0 %v3102
          %3118 = vmatpush.bf16.msra.mxu0 %v3101
          %3119 = vmatpush.bf16.msra.mxu0 %v3100
          %3120 = vmatpush.bf16.msra.mxu0 %v3099
          %3121 = vmatpush.bf16.msra.mxu0 %v3098
          %3122 = vmatmul.bf16.gmra.mxu0 %v2962
          %v3123 = vpop.f32.mrf.mxu0
          %v3124 = vadd.f32 0.0, %v3123
          %v3125 = vpop.f32.mrf.mxu0
          %v3126 = vadd.f32 0.0, %v3125
          %3127 = vdwg.mxu0
          %v3144 = vunpack.c.l.b16 %v3034
          %v3145 = vunpack.c.l.b16 %v3035
          %v3146 = vunpack.c.l.b16 %v3036
          %v3147 = vunpack.c.l.b16 %v3037
          %v3148 = vunpack.c.l.b16 %v3038
          %v3149 = vunpack.c.l.b16 %v3039
          %v3150 = vunpack.c.l.b16 %v3040
          %v3151 = vunpack.c.l.b16 %v3041
          %v3152 = vunpack.c.l.b16 %v3042
          %v3153 = vunpack.c.l.b16 %v3043
          %v3154 = vunpack.c.l.b16 %v3044
          %v3155 = vunpack.c.l.b16 %v3045
          %v3156 = vunpack.c.l.b16 %v3046
          %v3157 = vunpack.c.l.b16 %v3047
          %v3158 = vunpack.c.l.b16 %v3048
          %v3159 = vunpack.c.l.b16 %v3049
          %v3160 = vpack.c.b16 %v3145, %v3144
          %v3161 = vpack.c.b16 %v3147, %v3146
          %v3162 = vpack.c.b16 %v3149, %v3148
          %v3163 = vpack.c.b16 %v3151, %v3150
          %v3164 = vpack.c.b16 %v3153, %v3152
          %v3165 = vpack.c.b16 %v3155, %v3154
          %v3166 = vpack.c.b16 %v3157, %v3156
          %v3167 = vpack.c.b16 %v3159, %v3158
          %3176 = vmatpush.bf16.msra.mxu0 %v3167
          %3177 = vmatpush.bf16.msra.mxu0 %v3166
          %3178 = vmatpush.bf16.msra.mxu0 %v3165
          %3179 = vmatpush.bf16.msra.mxu0 %v3164
          %3180 = vmatpush.bf16.msra.mxu0 %v3163
          %3181 = vmatpush.bf16.msra.mxu0 %v3162
          %3182 = vmatpush.bf16.msra.mxu0 %v3161
          %3183 = vmatpush.bf16.msra.mxu0 %v3160
          %3184 = vmatmul.bf16.gmra.mxu0 %v3033
          %v3185 = vpop.f32.mrf.mxu0
          %v3186 = vadd.f32 %v3124, %v3185
          %v3187 = vpop.f32.mrf.mxu0
          %v3188 = vadd.f32 %v3126, %v3187
          %3189 = vdwg.mxu0
          %v3190 = vld [vmem:[%s63] sm:$0x1]
          %v3192 = vperm.slane %v3190, 0
          %v3194 = vadd.f32 %v3186, %v3192
          %v3195 = vadd.f32 %v3188, %v3192
          %v3196 = vmax.f32 %v3194, 0.0
          %v3197 = vmax.f32 %v3195, 0.0
          %v3198 = vpack.c.bf16 %v3197, %v3196
          %v3199 = vld [vmem:[#allocation27] sm:$0xf]
          %v3200 = vld [vmem:[#allocation27 + $0x4] sm:$0xf]
          %v3201 = vld [vmem:[#allocation27 + $0x8] sm:$0xf]
          %v3202 = vld [vmem:[#allocation27 + $0xc] sm:$0xf]
          %v3203 = vld [vmem:[#allocation27 + $0x10] sm:$0xf]
          %v3204 = vld [vmem:[#allocation27 + $0x14] sm:$0xf]
          %v3205 = vld [vmem:[#allocation27 + $0x18] sm:$0xf]
          %v3206 = vld [vmem:[#allocation27 + $0x1c] sm:$0xf]
          %v3207 = vld [vmem:[#allocation27 + $0x20] sm:$0xf]
          %v3208 = vld [vmem:[#allocation27 + $0x24] sm:$0xf]
          %v3209 = vld [vmem:[#allocation27 + $0x28] sm:$0xf]
          %v3210 = vld [vmem:[#allocation27 + $0x2c] sm:$0xf]
          %v3211 = vld [vmem:[#allocation27 + $0x30] sm:$0xf]
          %v3212 = vld [vmem:[#allocation27 + $0x34] sm:$0xf]
          %v3213 = vld [vmem:[#allocation27 + $0x38] sm:$0xf]
          %v3214 = vld [vmem:[#allocation27 + $0x3c] sm:$0xf]
          %v3215 = vld [vmem:[%s67] sm:$0x1]
          %v3217 = vperm.slane %v3215, 0
          %v3235 = vunpack.c.l.b16 %v3199
          %v3236 = vunpack.c.l.b16 %v3200
          %v3237 = vunpack.c.l.b16 %v3201
          %v3238 = vunpack.c.l.b16 %v3202
          %v3239 = vunpack.c.l.b16 %v3203
          %v3240 = vunpack.c.l.b16 %v3204
          %v3241 = vunpack.c.l.b16 %v3205
          %v3242 = vunpack.c.l.b16 %v3206
          %v3243 = vunpack.c.l.b16 %v3207
          %v3244 = vunpack.c.l.b16 %v3208
          %v3245 = vunpack.c.l.b16 %v3209
          %v3246 = vunpack.c.l.b16 %v3210
          %v3247 = vunpack.c.l.b16 %v3211
          %v3248 = vunpack.c.l.b16 %v3212
          %v3249 = vunpack.c.l.b16 %v3213
          %v3250 = vunpack.c.l.b16 %v3214
          %v3251 = vpack.c.b16 %v3236, %v3235
          %v3252 = vpack.c.b16 %v3238, %v3237
          %v3253 = vpack.c.b16 %v3240, %v3239
          %v3254 = vpack.c.b16 %v3242, %v3241
          %v3255 = vpack.c.b16 %v3244, %v3243
          %v3256 = vpack.c.b16 %v3246, %v3245
          %v3257 = vpack.c.b16 %v3248, %v3247
          %v3258 = vpack.c.b16 %v3250, %v3249
          %3267 = vmatpush.bf16.msra.mxu0 %v3258
          %3268 = vmatpush.bf16.msra.mxu0 %v3257
          %3269 = vmatpush.bf16.msra.mxu0 %v3256
          %3270 = vmatpush.bf16.msra.mxu0 %v3255
          %3271 = vmatpush.bf16.msra.mxu0 %v3254
          %3272 = vmatpush.bf16.msra.mxu0 %v3253
          %3273 = vmatpush.bf16.msra.mxu0 %v3252
          %3274 = vmatpush.bf16.msra.mxu0 %v3251
          %3275 = vmatmul.bf16.gmra.mxu0 %v3198
          %v3276 = vpop.f32.mrf.mxu0
          %v3277 = vadd.f32 %v3217, %v3276
          %v3278 = vpop.f32.mrf.mxu0
          %v3279 = vadd.f32 %v3217, %v3278
          %3280 = vdwg.mxu0
          %v3281 = vmax.f32 %v3277, 0.0
          %v3282 = vmax.f32 %v3279, 0.0
          %v3283 = vpack.c.bf16 %v3282, %v3281
          %v3284 = vld [vmem:[#allocation28] sm:$0xf]
          %v3285 = vld [vmem:[#allocation28 + $0x4] sm:$0xf]
          %v3286 = vld [vmem:[#allocation28 + $0x8] sm:$0xf]
          %v3287 = vld [vmem:[#allocation28 + $0xc] sm:$0xf]
          %v3288 = vld [vmem:[#allocation28 + $0x10] sm:$0xf]
          %v3289 = vld [vmem:[#allocation28 + $0x14] sm:$0xf]
          %v3290 = vld [vmem:[#allocation28 + $0x18] sm:$0xf]
          %v3291 = vld [vmem:[#allocation28 + $0x1c] sm:$0xf]
          %v3292 = vld [vmem:[#allocation28 + $0x20] sm:$0xf]
          %v3293 = vld [vmem:[#allocation28 + $0x24] sm:$0xf]
          %v3294 = vld [vmem:[#allocation28 + $0x28] sm:$0xf]
          %v3295 = vld [vmem:[#allocation28 + $0x2c] sm:$0xf]
          %v3296 = vld [vmem:[#allocation28 + $0x30] sm:$0xf]
          %v3297 = vld [vmem:[#allocation28 + $0x34] sm:$0xf]
          %v3298 = vld [vmem:[#allocation28 + $0x38] sm:$0xf]
          %v3299 = vld [vmem:[#allocation28 + $0x3c] sm:$0xf]
          %v3300 = vld [vmem:[%s71] sm:$0x1]
          %v3302 = vperm.slane %v3300, 0
          %v3320 = vunpack.c.l.b16 %v3284
          %v3321 = vunpack.c.l.b16 %v3285
          %v3322 = vunpack.c.l.b16 %v3286
          %v3323 = vunpack.c.l.b16 %v3287
          %v3324 = vunpack.c.l.b16 %v3288
          %v3325 = vunpack.c.l.b16 %v3289
          %v3326 = vunpack.c.l.b16 %v3290
          %v3327 = vunpack.c.l.b16 %v3291
          %v3328 = vunpack.c.l.b16 %v3292
          %v3329 = vunpack.c.l.b16 %v3293
          %v3330 = vunpack.c.l.b16 %v3294
          %v3331 = vunpack.c.l.b16 %v3295
          %v3332 = vunpack.c.l.b16 %v3296
          %v3333 = vunpack.c.l.b16 %v3297
          %v3334 = vunpack.c.l.b16 %v3298
          %v3335 = vunpack.c.l.b16 %v3299
          %v3336 = vpack.c.b16 %v3321, %v3320
          %v3337 = vpack.c.b16 %v3323, %v3322
          %v3338 = vpack.c.b16 %v3325, %v3324
          %v3339 = vpack.c.b16 %v3327, %v3326
          %v3340 = vpack.c.b16 %v3329, %v3328
          %v3341 = vpack.c.b16 %v3331, %v3330
          %v3342 = vpack.c.b16 %v3333, %v3332
          %v3343 = vpack.c.b16 %v3335, %v3334
          %3352 = vmatpush.bf16.msra.mxu0 %v3343
          %3353 = vmatpush.bf16.msra.mxu0 %v3342
          %3354 = vmatpush.bf16.msra.mxu0 %v3341
          %3355 = vmatpush.bf16.msra.mxu0 %v3340
          %3356 = vmatpush.bf16.msra.mxu0 %v3339
          %3357 = vmatpush.bf16.msra.mxu0 %v3338
          %3358 = vmatpush.bf16.msra.mxu0 %v3337
          %3359 = vmatpush.bf16.msra.mxu0 %v3336
          %3360 = vmatmul.bf16.gmra.mxu0 %v3283
          %v3361 = vpop.f32.mrf.mxu0
          %v3362 = vadd.f32 %v3302, %v3361
          %v3363 = vpop.f32.mrf.mxu0
          %v3364 = vadd.f32 %v3302, %v3363
          %3365 = vdwg.mxu0
          %3366 = vst [vmem:[#allocation29] sm:$0xff] %v3362
          %3367 = vst [vmem:[#allocation29 + $0x8] sm:$0xff] %v3364
          %v3368 = vld [vmem:[#allocation2 + $0x8] sm:$0xff]
          %v3369 = vld [vmem:[#allocation2 + $0x18] sm:$0xff]
          %3370 = vst [vmem:[#allocation30] sm:$0xff] %v3368
          %3371 = vst [vmem:[#allocation30 + $0x8] sm:$0xff] %v3369
        $region260: #{tpu_custom_call.1} parent=163 // pred_fallthru
          _
        // Predicated region
        $region261: #{tpu_custom_call.1} parent=163 // pred_check
          %p3372 = pneg %p974
        $region262: #{tpu_custom_call.1} parent=163 // pred_check_branch
          %3374 = sbr.rel (%p3372) target = $region264
        $region263: #{tpu_custom_call.1} parent=163 // pred_region
          %3376 = vsyncadd [#allocation6], 0
          %s3377 = sshll.u32 [#allocation29], 4
          %s3378 = int_to_ptr.vmem [resolvable:$true] %s3377
          %s3379 = sshll.u32 %s73, 4
          %s3380 = int_to_ptr.hbm [resolvable:$true] %s3379
          %3385 = dma.vmem_to_hbm [thread:$0]  %s3378, 256, %s3380, [#allocation6], 128, 128, 8
        $region264: #{tpu_custom_call.1} parent=163 // pred_fallthru
          _
        // Predicated region
        $region265: #{tpu_custom_call.1} parent=163 // pred_check
          %p3386 = pneg %p995
        $region266: #{tpu_custom_call.1} parent=163 // pred_check_branch
          %3388 = sbr.rel (%p3386) target = $region268
        $region267: #{tpu_custom_call.1} parent=163 // pred_region
          %3390 = vsyncadd [#allocation31], 0
          %s3391 = sshll.u32 [#allocation30], 4
          %s3392 = int_to_ptr.vmem [resolvable:$true] %s3391
          %s3393 = sshll.u32 %s75, 4
          %s3394 = int_to_ptr.hbm [resolvable:$true] %s3393
          %3399 = dma.vmem_to_hbm [thread:$0]  %s3392, 256, %s3394, [#allocation31], 128, 128, 8
        $region268: #{tpu_custom_call.1} parent=163 // pred_fallthru
          _
        // Predicated region
        $region269: #{tpu_custom_call.1} parent=163 // pred_check
          %p3400 = pneg %p974
        $region270: #{tpu_custom_call.1} parent=163 // pred_check_branch
          %3402 = sbr.rel (%p3400) target = $region272
        $region271: #{tpu_custom_call.1} parent=163 // pred_region
          %3404 = dma.done [#allocation6], 256
        $region272: #{tpu_custom_call.1} parent=163 // pred_fallthru
          _
        // Predicated region
        $region273: #{tpu_custom_call.1} parent=163 // pred_check
          %p3405 = pneg %p995
        $region274: #{tpu_custom_call.1} parent=163 // pred_check_branch
          %3407 = sbr.rel (%p3405) target = $region276
        $region275: #{tpu_custom_call.1} parent=163 // pred_region
          %3409 = dma.done [#allocation31], 256
        $region276: #{tpu_custom_call.1} parent=163 // pred_fallthru
          _
      $region164: #{tpu_custom_call.1} parent=5 // pred_fallthru
        _
      %p3410 = scmp.le.s32.totalorder 2, %s88
      // Predicated region
      $region277: #{tpu_custom_call.1} parent=5 // pred_check
        %p3411 = pneg %p3410
      $region278: #{tpu_custom_call.1} parent=5 // pred_check_branch
        %3413 = sbr.rel (%p3411) target = $region280
      $region279: #{tpu_custom_call.1} parent=5 // pred_region
        %s3414 = ssub.s32 %s88, 2
      $region280: #{tpu_custom_call.1} parent=5 // pred_fallthru
        _
    $region6: #{tpu_custom_call.1} parent=1 // loop_footer
      %s92 = sadd.s32 1, %s88
    $region7: #{tpu_custom_call.1} parent=1 // loop_footer_branch
      %87 = sbr.rel target = $region3
    $region8: #{tpu_custom_call.1} parent=1 // loop_exit
      _
    %3415 = vsyncpa [#allocation5], 1
    %s3416 = scalar_lea.sflag [#allocation5], 1
    %3417 = vsyncpa %s3416, 1
    %3418 = vsyncpa [#allocation8], 1
    %3419 = vsyncpa [#allocation13], 1
    %3420 = vsyncpa [#allocation16], 1
    %3421 = vsyncpa [#allocation6], 1
    %s3422 = scalar_lea.sflag [#allocation6], 1
    %3423 = vsyncpa %s3422, 1
    %3424 = vsyncpa [#allocation31], 1

</llo_original>
